<compile_context>
chip_gen: v7x
topology: tpu7x:2x2x1
jax: 0.10.0
libtpu: 0.0.40
codegen_flags: <defaults>
</compile_context>

<pallas_src>
import jax
import jax.numpy as jnp
from jax import lax
from jax.experimental import pallas as pl
from jax.experimental.pallas import tpu as pltpu

START_TAG = "<START>"
END_TAG = "<END>"

LANE = 128


def _round_up(x, m):
    return (x + m - 1) // m * m


# ------------------------------- kernel --------------------------------------
def bilstm_linear_kernel(x_ref, w_in_ref, b_in_ref,
                         whh_f_ref, whh_b_ref,
                         wlf_ref, wlb_ref, blin_ref,
                         feats_ref,
                         gx_ref, hfwd_ref, hbwd_ref):
    """Fused BiLSTM recurrence + output linear.

    Hp = lane-padded hidden, G = 4*Hp, Op = lane-padded output.
      x_ref      (T, E)
      w_in_ref   (E, 2G)   concat fwd/bwd input-projection weights (per-gate lane padded)
      b_in_ref   (1, 2G)   fused biases (b_ih + b_hh), per-gate lane padded
      whh_*_ref  (Hp, G)
      wl*_ref    (Hp, Op)  split halves of the output linear weight
      blin_ref   (1, Op)
      feats_ref  (T, Op)
      gx_ref     (T, 2G)   scratch: precomputed input projection
      h*_ref     (T, Hp)   scratch: per-direction hidden states
    """
    T = x_ref.shape[0]
    Hp = whh_f_ref.shape[0]
    G = 4 * Hp

    # (1) Hoisted input projection: one big MXU matmul + one bias add, out of the loop.
    gx_ref[...] = (
        jnp.dot(x_ref[...], w_in_ref[...], preferred_element_type=jnp.float32)
        + b_in_ref[...])

    def gate_math(gates, c):
        # torch.nn.LSTM gate order [i, f, g, o]; each slice is a full-lane (1, Hp) block.
        i = jax.nn.sigmoid(gates[:, 0:Hp])
        f = jax.nn.sigmoid(gates[:, Hp:2 * Hp])
        g = jnp.tanh(gates[:, 2 * Hp:3 * Hp])
        o = jax.nn.sigmoid(gates[:, 3 * Hp:4 * Hp])
        c_new = f * c + i * g
        h_new = o * jnp.tanh(c_new)
        return h_new, c_new

    # (2) Fused fwd/bwd recurrence, fully unrolled (T static & small).
    def body(t, carry):
        hf, cf, hb, cb = carry
        tb = T - 1 - t
        gates_f = (gx_ref[pl.ds(t, 1), pl.ds(0, G)]
                   + jnp.dot(hf, whh_f_ref[...], preferred_element_type=jnp.float32))
        gates_b = (gx_ref[pl.ds(tb, 1), pl.ds(G, G)]
                   + jnp.dot(hb, whh_b_ref[...], preferred_element_type=jnp.float32))
        hf, cf = gate_math(gates_f, cf)
        hb, cb = gate_math(gates_b, cb)
        hfwd_ref[pl.ds(t, 1), :] = hf
        hbwd_ref[pl.ds(tb, 1), :] = hb
        return (hf, cf, hb, cb)

    z = jnp.zeros((1, Hp), jnp.float32)
    lax.fori_loop(0, T, body, (z, z, z, z), unroll=True)

    # (3) Output linear: two half-width matmuls, no lane-axis concatenate.
    feats_ref[...] = (
        jnp.dot(hfwd_ref[...], wlf_ref[...], preferred_element_type=jnp.float32)
        + jnp.dot(hbwd_ref[...], wlb_ref[...], preferred_element_type=jnp.float32)
        + blin_ref[...])


# ---------------------- wrapper / parameter repacking ------------------------
def _pad_gate_cols(w, H, Hp):
    """(..., 4H) -> (..., 4Hp): each gate block placed at lane offset k*Hp (rest zero)."""
    out = jnp.zeros(w.shape[:-1] + (4 * Hp,), w.dtype)
    for k in range(4):
        out = out.at[..., k * Hp:k * Hp + H].set(w[..., k * H:(k + 1) * H])
    return out


def _pad_whh(w, H, Hp):
    """(H, 4H) -> (Hp, 4Hp); zero padding keeps padded hidden lanes inert (c=h=0)."""
    return jnp.zeros((Hp, 4 * Hp), w.dtype).at[:H, :].set(_pad_gate_cols(w, H, Hp))


def prepare_kernel_params(params):
    """One-time repack of torch-layout params into the lane-padded kernel layout."""
    H = params["whh_f"].shape[0]
    O = params["w_lin"].shape[1]
    Hp = _round_up(H, LANE)
    Op = _round_up(O, LANE)
    w_in = jnp.concatenate([_pad_gate_cols(params["wih_f"], H, Hp),
                            _pad_gate_cols(params["wih_b"], H, Hp)], axis=1)   # (E, 8Hp)
    b_in = jnp.concatenate([_pad_gate_cols(params["b_f"], H, Hp),
                            _pad_gate_cols(params["b_b"], H, Hp)], axis=1)     # (1, 8Hp)
    whh_f = _pad_whh(params["whh_f"], H, Hp)
    whh_b = _pad_whh(params["whh_b"], H, Hp)
    wlf = jnp.zeros((Hp, Op), jnp.float32).at[:H, :O].set(params["w_lin"][:H])
    wlb = jnp.zeros((Hp, Op), jnp.float32).at[:H, :O].set(params["w_lin"][H:])
    blin = jnp.zeros((1, Op), jnp.float32).at[:, :O].set(params["b_lin"])
    return dict(w_in=w_in, b_in=b_in, whh_f=whh_f, whh_b=whh_b,
                wlf=wlf, wlb=wlb, blin=blin, Hp=Hp, Op=Op, O=O)


def bilstm_linear(x_emb, kp):
    """x_emb: (T, E) float32 -> feats (T, O) float32."""
    T, _ = x_emb.shape
    Hp, Op, O = kp["Hp"], kp["Op"], kp["O"]
    vmem = pl.BlockSpec(memory_space=pltpu.MemorySpace.VMEM)
    feats_p = pl.pallas_call(
        bilstm_linear_kernel,
        out_shape=jax.ShapeDtypeStruct((T, Op), jnp.float32),
        in_specs=[vmem] * 8,
        out_specs=vmem,
        scratch_shapes=[pltpu.VMEM((T, 8 * Hp), jnp.float32),   # gates_x
                        pltpu.VMEM((T, Hp), jnp.float32),       # h forward
                        pltpu.VMEM((T, Hp), jnp.float32)],      # h backward
        # TODO(synk): for long T / large H, tile T with a grid + set vmem_limit_bytes
        # (whole-array residency scales as T*(E+10*Hp)*4 B; fine at these toy sizes).
    )(x_emb, kp["w_in"], kp["b_in"], kp["whh_f"], kp["whh_b"],
      kp["wlf"], kp["wlb"], kp["blin"])
    return feats_p[:, :O]


def model_forward(sentence, params, kernel_params=None):
    if kernel_params is None:
        kernel_params = prepare_kernel_params(params)
    emb = params["embedding"][sentence]          # (T, E)   embedding gather (glue)
    return bilstm_linear(emb, kernel_params)     # (T, O)   == feats.squeeze()


# ---------------- pure-JAX reference (for correctness check) ----------------
def _lstm_ref(x, wih, whh, b, reverse):
    H = whh.shape[0]

    def step(carry, x_t):
        h, c = carry
        gates = x_t @ wih + h @ whh + b[0]
        i = jax.nn.sigmoid(gates[0:H])
        f = jax.nn.sigmoid(gates[H:2 * H])
        g = jnp.tanh(gates[2 * H:3 * H])
        o = jax.nn.sigmoid(gates[3 * H:4 * H])
        c_new = f * c + i * g
        h_new = o * jnp.tanh(c_new)
        return (h_new, c_new), h_new

    h0 = jnp.zeros((H,), jnp.float32)
    _, hs = lax.scan(step, (h0, h0), x, reverse=reverse)
    return hs


def model_forward_ref(sentence, params):
    x = params["embedding"][sentence]
    hf = _lstm_ref(x, params["wih_f"], params["whh_f"], params["b_f"], False)
    hb = _lstm_ref(x, params["wih_b"], params["whh_b"], params["b_b"], True)
    hidden = jnp.concatenate([hf, hb], axis=-1)
    return hidden @ params["w_lin"] + params["b_lin"][0]


# ---------------------------- parameter init --------------------------------
def init_params(key, vocab_size, embedding_dim, hidden_dim, output_dim):
    ks = jax.random.split(key, 10)
    s = 0.1
    return {
        "embedding": jax.random.normal(ks[0], (vocab_size, embedding_dim), jnp.float32),
        # torch weights are (4H, E)/(4H, H); we store the transposed (E, 4H)/(H, 4H)
        "wih_f": s * jax.random.normal(ks[1], (embedding_dim, 4 * hidden_dim), jnp.float32),
        "whh_f": s * jax.random.normal(ks[2], (hidden_dim, 4 * hidden_dim), jnp.float32),
        "b_f":   s * jax.random.normal(ks[3], (1, 4 * hidden_dim), jnp.float32),  # b_ih + b_hh fused
        "wih_b": s * jax.random.normal(ks[4], (embedding_dim, 4 * hidden_dim), jnp.float32),
        "whh_b": s * jax.random.normal(ks[5], (hidden_dim, 4 * hidden_dim), jnp.float32),
        "b_b":   s * jax.random.normal(ks[6], (1, 4 * hidden_dim), jnp.float32),
        "w_lin": s * jax.random.normal(ks[7], (2 * hidden_dim, output_dim), jnp.float32),
        "b_lin": s * jax.random.normal(ks[8], (1, output_dim), jnp.float32),
        # trans_matrix belongs to the CRF scoring (forward_alg/viterbi), not forward()
        "trans_matrix": jax.random.normal(ks[9], (output_dim, output_dim), jnp.float32),
    }


if __name__ == "__main__":
    token_to_idx = {START_TAG: 0, END_TAG: 1, "B": 2, "I": 3, "O": 4, "X": 5}
    vocab_size, embedding_dim, hidden_dim = 32, 16, 32
    output_dim = len(token_to_idx)
    seq_len = 8

    key = jax.random.PRNGKey(0)
    kp_key, kx = jax.random.split(key)
    params = init_params(kp_key, vocab_size, embedding_dim, hidden_dim, output_dim)
    sentence = jax.random.randint(kx, (seq_len,), 0, vocab_size, dtype=jnp.int32)

    kernel_params = prepare_kernel_params(params)   # one-time lane-padded repack

    feats = model_forward(sentence, params, kernel_params)
    feats = jax.block_until_ready(feats)

    feats_ref = model_forward_ref(sentence, params)
    assert feats.shape == (seq_len, output_dim)
    assert jnp.allclose(feats, feats_ref, rtol=1e-3, atol=1e-3)

    print("KERNEL_OK")
</pallas_src>

<mosaic_0001>
module attributes {stable_mosaic.version = 11 : i64} {
  func.func @bilstm_linear_kernel(%arg0: memref<8x16xf32, #tpu.memory_space<vmem>>, %arg1: memref<16x1024xf32, #tpu.memory_space<vmem>>, %arg2: memref<1x1024xf32, #tpu.memory_space<vmem>>, %arg3: memref<128x512xf32, #tpu.memory_space<vmem>>, %arg4: memref<128x512xf32, #tpu.memory_space<vmem>>, %arg5: memref<128x128xf32, #tpu.memory_space<vmem>>, %arg6: memref<128x128xf32, #tpu.memory_space<vmem>>, %arg7: memref<1x128xf32, #tpu.memory_space<vmem>>, %arg8: memref<8x128xf32, #tpu.memory_space<vmem>>, %arg9: memref<8x1024xf32, #tpu.memory_space<vmem>>, %arg10: memref<8x128xf32, #tpu.memory_space<vmem>>, %arg11: memref<8x128xf32, #tpu.memory_space<vmem>>) attributes {dimension_semantics = [], scalar_prefetch = 0 : i64, scratch_operands = 3 : i64, tpu.core_type = #tpu.core_type<tc>} {
    %c0 = arith.constant 0 : index
    %c0_0 = arith.constant 0 : index
    %0 = vector.load %arg0[%c0, %c0_0] : memref<8x16xf32, #tpu.memory_space<vmem>>, vector<8x16xf32>
    %c0_1 = arith.constant 0 : index
    %c0_2 = arith.constant 0 : index
    %1 = vector.load %arg1[%c0_1, %c0_2] : memref<16x1024xf32, #tpu.memory_space<vmem>>, vector<16x1024xf32>
    %cst = arith.constant dense<0.000000e+00> : vector<8x1024xf32>
    %2 = tpu.matmul %0, %1, %cst {dimension_numbers = #tpu.dot_dimension_numbers<[1], [0], [0], [1], [0, 0, 1, 1], [], []>} : vector<8x16xf32>, vector<16x1024xf32>, vector<8x1024xf32> -> vector<8x1024xf32>
    %c0_3 = arith.constant 0 : index
    %c0_4 = arith.constant 0 : index
    %3 = vector.load %arg2[%c0_3, %c0_4] : memref<1x1024xf32, #tpu.memory_space<vmem>>, vector<1x1024xf32>
    %4 = vector.broadcast %3 : vector<1x1024xf32> to vector<8x1024xf32>
    %5 = arith.addf %2, %4 : vector<8x1024xf32>
    %c0_5 = arith.constant 0 : index
    %c0_6 = arith.constant 0 : index
    %6 = vector.load %arg9[%c0_5, %c0_6] : memref<8x1024xf32, #tpu.memory_space<vmem>>, vector<8x1024xf32>
    tpu.vector_store %arg9[%c0_5, %c0_6], %5 {strides = array<i32>} : memref<8x1024xf32, #tpu.memory_space<vmem>>, vector<8x1024xf32>,
    %cst_7 = arith.constant 0.000000e+00 : f32
    %7 = vector.broadcast %cst_7 : f32 to vector<1x128xf32>
    %c0_i32 = arith.constant 0 : i32
    %c7_i32 = arith.constant 7 : i32
    %8 = arith.subi %c7_i32, %c0_i32 : i32
    %9 = arith.index_cast %c0_i32 : i32 to index
    %c0_8 = arith.constant 0 : index
    %10 = vector.load %arg9[%9, %c0_8] : memref<8x1024xf32, #tpu.memory_space<vmem>>, vector<1x512xf32>
    %c0_9 = arith.constant 0 : index
    %c0_10 = arith.constant 0 : index
    %11 = vector.load %arg3[%c0_9, %c0_10] : memref<128x512xf32, #tpu.memory_space<vmem>>, vector<128x512xf32>
    %cst_11 = arith.constant dense<0.000000e+00> : vector<1x512xf32>
    %12 = tpu.matmul %7, %11, %cst_11 {dimension_numbers = #tpu.dot_dimension_numbers<[1], [0], [0], [1], [0, 0, 1, 1], [], []>} : vector<1x128xf32>, vector<128x512xf32>, vector<1x512xf32> -> vector<1x512xf32>
    %13 = arith.addf %10, %12 : vector<1x512xf32>
    %14 = arith.index_cast %8 : i32 to index
    %c512 = arith.constant 512 : index
    %15 = vector.load %arg9[%14, %c512] : memref<8x1024xf32, #tpu.memory_space<vmem>>, vector<1x512xf32>
    %c0_12 = arith.constant 0 : index
    %c0_13 = arith.constant 0 : index
    %16 = vector.load %arg4[%c0_12, %c0_13] : memref<128x512xf32, #tpu.memory_space<vmem>>, vector<128x512xf32>
    %cst_14 = arith.constant dense<0.000000e+00> : vector<1x512xf32>
    %17 = tpu.matmul %7, %16, %cst_14 {dimension_numbers = #tpu.dot_dimension_numbers<[1], [0], [0], [1], [0, 0, 1, 1], [], []>} : vector<1x128xf32>, vector<128x512xf32>, vector<1x512xf32> -> vector<1x512xf32>
    %18 = arith.addf %15, %17 : vector<1x512xf32>
    %19 = vector.extract_strided_slice %13 {offsets = [0, 0], sizes = [1, 128], strides = [1, 1]} : vector<1x512xf32> to vector<1x128xf32>
    %20 = arith.negf %19 : vector<1x128xf32>
    %21 = math.exp %20 : vector<1x128xf32>
    %cst_15 = arith.constant 1.000000e+00 : f32
    %22 = vector.broadcast %cst_15 : f32 to vector<1x128xf32>
    %23 = arith.addf %22, %21 : vector<1x128xf32>
    %24 = arith.divf %22, %23 : vector<1x128xf32>
    %25 = vector.extract_strided_slice %13 {offsets = [0, 128], sizes = [1, 128], strides = [1, 1]} : vector<1x512xf32> to vector<1x128xf32>
    %26 = arith.negf %25 : vector<1x128xf32>
    %27 = math.exp %26 : vector<1x128xf32>
    %cst_16 = arith.constant 1.000000e+00 : f32
    %28 = vector.broadcast %cst_16 : f32 to vector<1x128xf32>
    %29 = arith.addf %28, %27 : vector<1x128xf32>
    %30 = arith.divf %28, %29 : vector<1x128xf32>
    %31 = vector.extract_strided_slice %13 {offsets = [0, 256], sizes = [1, 128], strides = [1, 1]} : vector<1x512xf32> to vector<1x128xf32>
    %32 = math.tanh %31 : vector<1x128xf32>
    %33 = vector.extract_strided_slice %13 {offsets = [0, 384], sizes = [1, 128], strides = [1, 1]} : vector<1x512xf32> to vector<1x128xf32>
    %34 = arith.negf %33 : vector<1x128xf32>
    %35 = math.exp %34 : vector<1x128xf32>
    %cst_17 = arith.constant 1.000000e+00 : f32
    %36 = vector.broadcast %cst_17 : f32 to vector<1x128xf32>
    %37 = arith.addf %36, %35 : vector<1x128xf32>
    %38 = arith.divf %36, %37 : vector<1x128xf32>
    %39 = arith.mulf %30, %7 : vector<1x128xf32>
    %40 = arith.mulf %24, %32 : vector<1x128xf32>
    %41 = arith.addf %39, %40 : vector<1x128xf32>
    %42 = math.tanh %41 : vector<1x128xf32>
    %43 = arith.mulf %38, %42 : vector<1x128xf32>
    %44 = vector.extract_strided_slice %18 {offsets = [0, 0], sizes = [1, 128], strides = [1, 1]} : vector<1x512xf32> to vector<1x128xf32>
    %45 = arith.negf %44 : vector<1x128xf32>
    %46 = math.exp %45 : vector<1x128xf32>
    %cst_18 = arith.constant 1.000000e+00 : f32
    %47 = vector.broadcast %cst_18 : f32 to vector<1x128xf32>
    %48 = arith.addf %47, %46 : vector<1x128xf32>
    %49 = arith.divf %47, %48 : vector<1x128xf32>
    %50 = vector.extract_strided_slice %18 {offsets = [0, 128], sizes = [1, 128], strides = [1, 1]} : vector<1x512xf32> to vector<1x128xf32>
    %51 = arith.negf %50 : vector<1x128xf32>
    %52 = math.exp %51 : vector<1x128xf32>
    %cst_19 = arith.constant 1.000000e+00 : f32
    %53 = vector.broadcast %cst_19 : f32 to vector<1x128xf32>
    %54 = arith.addf %53, %52 : vector<1x128xf32>
    %55 = arith.divf %53, %54 : vector<1x128xf32>
    %56 = vector.extract_strided_slice %18 {offsets = [0, 256], sizes = [1, 128], strides = [1, 1]} : vector<1x512xf32> to vector<1x128xf32>
    %57 = math.tanh %56 : vector<1x128xf32>
    %58 = vector.extract_strided_slice %18 {offsets = [0, 384], sizes = [1, 128], strides = [1, 1]} : vector<1x512xf32> to vector<1x128xf32>
    %59 = arith.negf %58 : vector<1x128xf32>
    %60 = math.exp %59 : vector<1x128xf32>
    %cst_20 = arith.constant 1.000000e+00 : f32
    %61 = vector.broadcast %cst_20 : f32 to vector<1x128xf32>
    %62 = arith.addf %61, %60 : vector<1x128xf32>
    %63 = arith.divf %61, %62 : vector<1x128xf32>
    %64 = arith.mulf %55, %7 : vector<1x128xf32>
    %65 = arith.mulf %49, %57 : vector<1x128xf32>
    %66 = arith.addf %64, %65 : vector<1x128xf32>
    %67 = math.tanh %66 : vector<1x128xf32>
    %68 = arith.mulf %63, %67 : vector<1x128xf32>
    %69 = arith.index_cast %c0_i32 : i32 to index
    %c0_21 = arith.constant 0 : index
    %70 = vector.load %arg10[%69, %c0_21] : memref<8x128xf32, #tpu.memory_space<vmem>>, vector<1x128xf32>
    tpu.vector_store %arg10[%69, %c0_21], %43 {strides = array<i32>} : memref<8x128xf32, #tpu.memory_space<vmem>>, vector<1x128xf32>,
    %71 = arith.index_cast %8 : i32 to index
    %c0_22 = arith.constant 0 : index
    %72 = vector.load %arg11[%71, %c0_22] : memref<8x128xf32, #tpu.memory_space<vmem>>, vector<1x128xf32>
    tpu.vector_store %arg11[%71, %c0_22], %68 {strides = array<i32>} : memref<8x128xf32, #tpu.memory_space<vmem>>, vector<1x128xf32>,
    %c1_i32 = arith.constant 1 : i32
    %c7_i32_23 = arith.constant 7 : i32
    %73 = arith.subi %c7_i32_23, %c1_i32 : i32
    %74 = arith.index_cast %c1_i32 : i32 to index
    %c0_24 = arith.constant 0 : index
    %75 = vector.load %arg9[%74, %c0_24] : memref<8x1024xf32, #tpu.memory_space<vmem>>, vector<1x512xf32>
    %c0_25 = arith.constant 0 : index
    %c0_26 = arith.constant 0 : index
    %76 = vector.load %arg3[%c0_25, %c0_26] : memref<128x512xf32, #tpu.memory_space<vmem>>, vector<128x512xf32>
    %cst_27 = arith.constant dense<0.000000e+00> : vector<1x512xf32>
    %77 = tpu.matmul %43, %76, %cst_27 {dimension_numbers = #tpu.dot_dimension_numbers<[1], [0], [0], [1], [0, 0, 1, 1], [], []>} : vector<1x128xf32>, vector<128x512xf32>, vector<1x512xf32> -> vector<1x512xf32>
    %78 = arith.addf %75, %77 : vector<1x512xf32>
    %79 = arith.index_cast %73 : i32 to index
    %c512_28 = arith.constant 512 : index
    %80 = vector.load %arg9[%79, %c512_28] : memref<8x1024xf32, #tpu.memory_space<vmem>>, vector<1x512xf32>
    %c0_29 = arith.constant 0 : index
    %c0_30 = arith.constant 0 : index
    %81 = vector.load %arg4[%c0_29, %c0_30] : memref<128x512xf32, #tpu.memory_space<vmem>>, vector<128x512xf32>
    %cst_31 = arith.constant dense<0.000000e+00> : vector<1x512xf32>
    %82 = tpu.matmul %68, %81, %cst_31 {dimension_numbers = #tpu.dot_dimension_numbers<[1], [0], [0], [1], [0, 0, 1, 1], [], []>} : vector<1x128xf32>, vector<128x512xf32>, vector<1x512xf32> -> vector<1x512xf32>
    %83 = arith.addf %80, %82 : vector<1x512xf32>
    %84 = vector.extract_strided_slice %78 {offsets = [0, 0], sizes = [1, 128], strides = [1, 1]} : vector<1x512xf32> to vector<1x128xf32>
    %85 = arith.negf %84 : vector<1x128xf32>
    %86 = math.exp %85 : vector<1x128xf32>
    %cst_32 = arith.constant 1.000000e+00 : f32
    %87 = vector.broadcast %cst_32 : f32 to vector<1x128xf32>
    %88 = arith.addf %87, %86 : vector<1x128xf32>
    %89 = arith.divf %87, %88 : vector<1x128xf32>
    %90 = vector.extract_strided_slice %78 {offsets = [0, 128], sizes = [1, 128], strides = [1, 1]} : vector<1x512xf32> to vector<1x128xf32>
    %91 = arith.negf %90 : vector<1x128xf32>
    %92 = math.exp %91 : vector<1x128xf32>
    %cst_33 = arith.constant 1.000000e+00 : f32
    %93 = vector.broadcast %cst_33 : f32 to vector<1x128xf32>
    %94 = arith.addf %93, %92 : vector<1x128xf32>
    %95 = arith.divf %93, %94 : vector<1x128xf32>
    %96 = vector.extract_strided_slice %78 {offsets = [0, 256], sizes = [1, 128], strides = [1, 1]} : vector<1x512xf32> to vector<1x128xf32>
    %97 = math.tanh %96 : vector<1x128xf32>
    %98 = vector.extract_strided_slice %78 {offsets = [0, 384], sizes = [1, 128], strides = [1, 1]} : vector<1x512xf32> to vector<1x128xf32>
    %99 = arith.negf %98 : vector<1x128xf32>
    %100 = math.exp %99 : vector<1x128xf32>
    %cst_34 = arith.constant 1.000000e+00 : f32
    %101 = vector.broadcast %cst_34 : f32 to vector<1x128xf32>
    %102 = arith.addf %101, %100 : vector<1x128xf32>
    %103 = arith.divf %101, %102 : vector<1x128xf32>
    %104 = arith.mulf %95, %41 : vector<1x128xf32>
    %105 = arith.mulf %89, %97 : vector<1x128xf32>
    %106 = arith.addf %104, %105 : vector<1x128xf32>
    %107 = math.tanh %106 : vector<1x128xf32>
    %108 = arith.mulf %103, %107 : vector<1x128xf32>
    %109 = vector.extract_strided_slice %83 {offsets = [0, 0], sizes = [1, 128], strides = [1, 1]} : vector<1x512xf32> to vector<1x128xf32>
    %110 = arith.negf %109 : vector<1x128xf32>
    %111 = math.exp %110 : vector<1x128xf32>
    %cst_35 = arith.constant 1.000000e+00 : f32
    %112 = vector.broadcast %cst_35 : f32 to vector<1x128xf32>
    %113 = arith.addf %112, %111 : vector<1x128xf32>
    %114 = arith.divf %112, %113 : vector<1x128xf32>
    %115 = vector.extract_strided_slice %83 {offsets = [0, 128], sizes = [1, 128], strides = [1, 1]} : vector<1x512xf32> to vector<1x128xf32>
    %116 = arith.negf %115 : vector<1x128xf32>
    %117 = math.exp %116 : vector<1x128xf32>
    %cst_36 = arith.constant 1.000000e+00 : f32
    %118 = vector.broadcast %cst_36 : f32 to vector<1x128xf32>
    %119 = arith.addf %118, %117 : vector<1x128xf32>
    %120 = arith.divf %118, %119 : vector<1x128xf32>
    %121 = vector.extract_strided_slice %83 {offsets = [0, 256], sizes = [1, 128], strides = [1, 1]} : vector<1x512xf32> to vector<1x128xf32>
    %122 = math.tanh %121 : vector<1x128xf32>
    %123 = vector.extract_strided_slice %83 {offsets = [0, 384], sizes = [1, 128], strides = [1, 1]} : vector<1x512xf32> to vector<1x128xf32>
    %124 = arith.negf %123 : vector<1x128xf32>
    %125 = math.exp %124 : vector<1x128xf32>
    %cst_37 = arith.constant 1.000000e+00 : f32
    %126 = vector.broadcast %cst_37 : f32 to vector<1x128xf32>
    %127 = arith.addf %126, %125 : vector<1x128xf32>
    %128 = arith.divf %126, %127 : vector<1x128xf32>
    %129 = arith.mulf %120, %66 : vector<1x128xf32>
    %130 = arith.mulf %114, %122 : vector<1x128xf32>
    %131 = arith.addf %129, %130 : vector<1x128xf32>
    %132 = math.tanh %131 : vector<1x128xf32>
    %133 = arith.mulf %128, %132 : vector<1x128xf32>
    %134 = arith.index_cast %c1_i32 : i32 to index
    %c0_38 = arith.constant 0 : index
    %135 = vector.load %arg10[%134, %c0_38] : memref<8x128xf32, #tpu.memory_space<vmem>>, vector<1x128xf32>
    tpu.vector_store %arg10[%134, %c0_38], %108 {strides = array<i32>} : memref<8x128xf32, #tpu.memory_space<vmem>>, vector<1x128xf32>,
    %136 = arith.index_cast %73 : i32 to index
    %c0_39 = arith.constant 0 : index
    %137 = vector.load %arg11[%136, %c0_39] : memref<8x128xf32, #tpu.memory_space<vmem>>, vector<1x128xf32>
    tpu.vector_store %arg11[%136, %c0_39], %133 {strides = array<i32>} : memref<8x128xf32, #tpu.memory_space<vmem>>, vector<1x128xf32>,
    %c2_i32 = arith.constant 2 : i32
    %c7_i32_40 = arith.constant 7 : i32
    %138 = arith.subi %c7_i32_40, %c2_i32 : i32
    %139 = arith.index_cast %c2_i32 : i32 to index
    %c0_41 = arith.constant 0 : index
    %140 = vector.load %arg9[%139, %c0_41] : memref<8x1024xf32, #tpu.memory_space<vmem>>, vector<1x512xf32>
    %c0_42 = arith.constant 0 : index
    %c0_43 = arith.constant 0 : index
    %141 = vector.load %arg3[%c0_42, %c0_43] : memref<128x512xf32, #tpu.memory_space<vmem>>, vector<128x512xf32>
    %cst_44 = arith.constant dense<0.000000e+00> : vector<1x512xf32>
    %142 = tpu.matmul %108, %141, %cst_44 {dimension_numbers = #tpu.dot_dimension_numbers<[1], [0], [0], [1], [0, 0, 1, 1], [], []>} : vector<1x128xf32>, vector<128x512xf32>, vector<1x512xf32> -> vector<1x512xf32>
    %143 = arith.addf %140, %142 : vector<1x512xf32>
    %144 = arith.index_cast %138 : i32 to index
    %c512_45 = arith.constant 512 : index
    %145 = vector.load %arg9[%144, %c512_45] : memref<8x1024xf32, #tpu.memory_space<vmem>>, vector<1x512xf32>
    %c0_46 = arith.constant 0 : index
    %c0_47 = arith.constant 0 : index
    %146 = vector.load %arg4[%c0_46, %c0_47] : memref<128x512xf32, #tpu.memory_space<vmem>>, vector<128x512xf32>
    %cst_48 = arith.constant dense<0.000000e+00> : vector<1x512xf32>
    %147 = tpu.matmul %133, %146, %cst_48 {dimension_numbers = #tpu.dot_dimension_numbers<[1], [0], [0], [1], [0, 0, 1, 1], [], []>} : vector<1x128xf32>, vector<128x512xf32>, vector<1x512xf32> -> vector<1x512xf32>
    %148 = arith.addf %145, %147 : vector<1x512xf32>
    %149 = vector.extract_strided_slice %143 {offsets = [0, 0], sizes = [1, 128], strides = [1, 1]} : vector<1x512xf32> to vector<1x128xf32>
    %150 = arith.negf %149 : vector<1x128xf32>
    %151 = math.exp %150 : vector<1x128xf32>
    %cst_49 = arith.constant 1.000000e+00 : f32
    %152 = vector.broadcast %cst_49 : f32 to vector<1x128xf32>
    %153 = arith.addf %152, %151 : vector<1x128xf32>
    %154 = arith.divf %152, %153 : vector<1x128xf32>
    %155 = vector.extract_strided_slice %143 {offsets = [0, 128], sizes = [1, 128], strides = [1, 1]} : vector<1x512xf32> to vector<1x128xf32>
    %156 = arith.negf %155 : vector<1x128xf32>
    %157 = math.exp %156 : vector<1x128xf32>
    %cst_50 = arith.constant 1.000000e+00 : f32
    %158 = vector.broadcast %cst_50 : f32 to vector<1x128xf32>
    %159 = arith.addf %158, %157 : vector<1x128xf32>
    %160 = arith.divf %158, %159 : vector<1x128xf32>
    %161 = vector.extract_strided_slice %143 {offsets = [0, 256], sizes = [1, 128], strides = [1, 1]} : vector<1x512xf32> to vector<1x128xf32>
    %162 = math.tanh %161 : vector<1x128xf32>
    %163 = vector.extract_strided_slice %143 {offsets = [0, 384], sizes = [1, 128], strides = [1, 1]} : vector<1x512xf32> to vector<1x128xf32>
    %164 = arith.negf %163 : vector<1x128xf32>
    %165 = math.exp %164 : vector<1x128xf32>
    %cst_51 = arith.constant 1.000000e+00 : f32
    %166 = vector.broadcast %cst_51 : f32 to vector<1x128xf32>
    %167 = arith.addf %166, %165 : vector<1x128xf32>
    %168 = arith.divf %166, %167 : vector<1x128xf32>
    %169 = arith.mulf %160, %106 : vector<1x128xf32>
    %170 = arith.mulf %154, %162 : vector<1x128xf32>
    %171 = arith.addf %169, %170 : vector<1x128xf32>
    %172 = math.tanh %171 : vector<1x128xf32>
    %173 = arith.mulf %168, %172 : vector<1x128xf32>
    %174 = vector.extract_strided_slice %148 {offsets = [0, 0], sizes = [1, 128], strides = [1, 1]} : vector<1x512xf32> to vector<1x128xf32>
    %175 = arith.negf %174 : vector<1x128xf32>
    %176 = math.exp %175 : vector<1x128xf32>
    %cst_52 = arith.constant 1.000000e+00 : f32
    %177 = vector.broadcast %cst_52 : f32 to vector<1x128xf32>
    %178 = arith.addf %177, %176 : vector<1x128xf32>
    %179 = arith.divf %177, %178 : vector<1x128xf32>
    %180 = vector.extract_strided_slice %148 {offsets = [0, 128], sizes = [1, 128], strides = [1, 1]} : vector<1x512xf32> to vector<1x128xf32>
    %181 = arith.negf %180 : vector<1x128xf32>
    %182 = math.exp %181 : vector<1x128xf32>
    %cst_53 = arith.constant 1.000000e+00 : f32
    %183 = vector.broadcast %cst_53 : f32 to vector<1x128xf32>
    %184 = arith.addf %183, %182 : vector<1x128xf32>
    %185 = arith.divf %183, %184 : vector<1x128xf32>
    %186 = vector.extract_strided_slice %148 {offsets = [0, 256], sizes = [1, 128], strides = [1, 1]} : vector<1x512xf32> to vector<1x128xf32>
    %187 = math.tanh %186 : vector<1x128xf32>
    %188 = vector.extract_strided_slice %148 {offsets = [0, 384], sizes = [1, 128], strides = [1, 1]} : vector<1x512xf32> to vector<1x128xf32>
    %189 = arith.negf %188 : vector<1x128xf32>
    %190 = math.exp %189 : vector<1x128xf32>
    %cst_54 = arith.constant 1.000000e+00 : f32
    %191 = vector.broadcast %cst_54 : f32 to vector<1x128xf32>
    %192 = arith.addf %191, %190 : vector<1x128xf32>
    %193 = arith.divf %191, %192 : vector<1x128xf32>
    %194 = arith.mulf %185, %131 : vector<1x128xf32>
    %195 = arith.mulf %179, %187 : vector<1x128xf32>
    %196 = arith.addf %194, %195 : vector<1x128xf32>
    %197 = math.tanh %196 : vector<1x128xf32>
    %198 = arith.mulf %193, %197 : vector<1x128xf32>
    %199 = arith.index_cast %c2_i32 : i32 to index
    %c0_55 = arith.constant 0 : index
    %200 = vector.load %arg10[%199, %c0_55] : memref<8x128xf32, #tpu.memory_space<vmem>>, vector<1x128xf32>
    tpu.vector_store %arg10[%199, %c0_55], %173 {strides = array<i32>} : memref<8x128xf32, #tpu.memory_space<vmem>>, vector<1x128xf32>,
    %201 = arith.index_cast %138 : i32 to index
    %c0_56 = arith.constant 0 : index
    %202 = vector.load %arg11[%201, %c0_56] : memref<8x128xf32, #tpu.memory_space<vmem>>, vector<1x128xf32>
    tpu.vector_store %arg11[%201, %c0_56], %198 {strides = array<i32>} : memref<8x128xf32, #tpu.memory_space<vmem>>, vector<1x128xf32>,
    %c3_i32 = arith.constant 3 : i32
    %c7_i32_57 = arith.constant 7 : i32
    %203 = arith.subi %c7_i32_57, %c3_i32 : i32
    %204 = arith.index_cast %c3_i32 : i32 to index
    %c0_58 = arith.constant 0 : index
    %205 = vector.load %arg9[%204, %c0_58] : memref<8x1024xf32, #tpu.memory_space<vmem>>, vector<1x512xf32>
    %c0_59 = arith.constant 0 : index
    %c0_60 = arith.constant 0 : index
    %206 = vector.load %arg3[%c0_59, %c0_60] : memref<128x512xf32, #tpu.memory_space<vmem>>, vector<128x512xf32>
    %cst_61 = arith.constant dense<0.000000e+00> : vector<1x512xf32>
    %207 = tpu.matmul %173, %206, %cst_61 {dimension_numbers = #tpu.dot_dimension_numbers<[1], [0], [0], [1], [0, 0, 1, 1], [], []>} : vector<1x128xf32>, vector<128x512xf32>, vector<1x512xf32> -> vector<1x512xf32>
    %208 = arith.addf %205, %207 : vector<1x512xf32>
    %209 = arith.index_cast %203 : i32 to index
    %c512_62 = arith.constant 512 : index
    %210 = vector.load %arg9[%209, %c512_62] : memref<8x1024xf32, #tpu.memory_space<vmem>>, vector<1x512xf32>
    %c0_63 = arith.constant 0 : index
    %c0_64 = arith.constant 0 : index
    %211 = vector.load %arg4[%c0_63, %c0_64] : memref<128x512xf32, #tpu.memory_space<vmem>>, vector<128x512xf32>
    %cst_65 = arith.constant dense<0.000000e+00> : vector<1x512xf32>
    %212 = tpu.matmul %198, %211, %cst_65 {dimension_numbers = #tpu.dot_dimension_numbers<[1], [0], [0], [1], [0, 0, 1, 1], [], []>} : vector<1x128xf32>, vector<128x512xf32>, vector<1x512xf32> -> vector<1x512xf32>
    %213 = arith.addf %210, %212 : vector<1x512xf32>
    %214 = vector.extract_strided_slice %208 {offsets = [0, 0], sizes = [1, 128], strides = [1, 1]} : vector<1x512xf32> to vector<1x128xf32>
    %215 = arith.negf %214 : vector<1x128xf32>
    %216 = math.exp %215 : vector<1x128xf32>
    %cst_66 = arith.constant 1.000000e+00 : f32
    %217 = vector.broadcast %cst_66 : f32 to vector<1x128xf32>
    %218 = arith.addf %217, %216 : vector<1x128xf32>
    %219 = arith.divf %217, %218 : vector<1x128xf32>
    %220 = vector.extract_strided_slice %208 {offsets = [0, 128], sizes = [1, 128], strides = [1, 1]} : vector<1x512xf32> to vector<1x128xf32>
    %221 = arith.negf %220 : vector<1x128xf32>
    %222 = math.exp %221 : vector<1x128xf32>
    %cst_67 = arith.constant 1.000000e+00 : f32
    %223 = vector.broadcast %cst_67 : f32 to vector<1x128xf32>
    %224 = arith.addf %223, %222 : vector<1x128xf32>
    %225 = arith.divf %223, %224 : vector<1x128xf32>
    %226 = vector.extract_strided_slice %208 {offsets = [0, 256], sizes = [1, 128], strides = [1, 1]} : vector<1x512xf32> to vector<1x128xf32>
    %227 = math.tanh %226 : vector<1x128xf32>
    %228 = vector.extract_strided_slice %208 {offsets = [0, 384], sizes = [1, 128], strides = [1, 1]} : vector<1x512xf32> to vector<1x128xf32>
    %229 = arith.negf %228 : vector<1x128xf32>
    %230 = math.exp %229 : vector<1x128xf32>
    %cst_68 = arith.constant 1.000000e+00 : f32
    %231 = vector.broadcast %cst_68 : f32 to vector<1x128xf32>
    %232 = arith.addf %231, %230 : vector<1x128xf32>
    %233 = arith.divf %231, %232 : vector<1x128xf32>
    %234 = arith.mulf %225, %171 : vector<1x128xf32>
    %235 = arith.mulf %219, %227 : vector<1x128xf32>
    %236 = arith.addf %234, %235 : vector<1x128xf32>
    %237 = math.tanh %236 : vector<1x128xf32>
    %238 = arith.mulf %233, %237 : vector<1x128xf32>
    %239 = vector.extract_strided_slice %213 {offsets = [0, 0], sizes = [1, 128], strides = [1, 1]} : vector<1x512xf32> to vector<1x128xf32>
    %240 = arith.negf %239 : vector<1x128xf32>
    %241 = math.exp %240 : vector<1x128xf32>
    %cst_69 = arith.constant 1.000000e+00 : f32
    %242 = vector.broadcast %cst_69 : f32 to vector<1x128xf32>
    %243 = arith.addf %242, %241 : vector<1x128xf32>
    %244 = arith.divf %242, %243 : vector<1x128xf32>
    %245 = vector.extract_strided_slice %213 {offsets = [0, 128], sizes = [1, 128], strides = [1, 1]} : vector<1x512xf32> to vector<1x128xf32>
    %246 = arith.negf %245 : vector<1x128xf32>
    %247 = math.exp %246 : vector<1x128xf32>
    %cst_70 = arith.constant 1.000000e+00 : f32
    %248 = vector.broadcast %cst_70 : f32 to vector<1x128xf32>
    %249 = arith.addf %248, %247 : vector<1x128xf32>
    %250 = arith.divf %248, %249 : vector<1x128xf32>
    %251 = vector.extract_strided_slice %213 {offsets = [0, 256], sizes = [1, 128], strides = [1, 1]} : vector<1x512xf32> to vector<1x128xf32>
    %252 = math.tanh %251 : vector<1x128xf32>
    %253 = vector.extract_strided_slice %213 {offsets = [0, 384], sizes = [1, 128], strides = [1, 1]} : vector<1x512xf32> to vector<1x128xf32>
    %254 = arith.negf %253 : vector<1x128xf32>
    %255 = math.exp %254 : vector<1x128xf32>
    %cst_71 = arith.constant 1.000000e+00 : f32
    %256 = vector.broadcast %cst_71 : f32 to vector<1x128xf32>
    %257 = arith.addf %256, %255 : vector<1x128xf32>
    %258 = arith.divf %256, %257 : vector<1x128xf32>
    %259 = arith.mulf %250, %196 : vector<1x128xf32>
    %260 = arith.mulf %244, %252 : vector<1x128xf32>
    %261 = arith.addf %259, %260 : vector<1x128xf32>
    %262 = math.tanh %261 : vector<1x128xf32>
    %263 = arith.mulf %258, %262 : vector<1x128xf32>
    %264 = arith.index_cast %c3_i32 : i32 to index
    %c0_72 = arith.constant 0 : index
    %265 = vector.load %arg10[%264, %c0_72] : memref<8x128xf32, #tpu.memory_space<vmem>>, vector<1x128xf32>
    tpu.vector_store %arg10[%264, %c0_72], %238 {strides = array<i32>} : memref<8x128xf32, #tpu.memory_space<vmem>>, vector<1x128xf32>,
    %266 = arith.index_cast %203 : i32 to index
    %c0_73 = arith.constant 0 : index
    %267 = vector.load %arg11[%266, %c0_73] : memref<8x128xf32, #tpu.memory_space<vmem>>, vector<1x128xf32>
    tpu.vector_store %arg11[%266, %c0_73], %263 {strides = array<i32>} : memref<8x128xf32, #tpu.memory_space<vmem>>, vector<1x128xf32>,
    %c4_i32 = arith.constant 4 : i32
    %c7_i32_74 = arith.constant 7 : i32
    %268 = arith.subi %c7_i32_74, %c4_i32 : i32
    %269 = arith.index_cast %c4_i32 : i32 to index
    %c0_75 = arith.constant 0 : index
    %270 = vector.load %arg9[%269, %c0_75] : memref<8x1024xf32, #tpu.memory_space<vmem>>, vector<1x512xf32>
    %c0_76 = arith.constant 0 : index
    %c0_77 = arith.constant 0 : index
    %271 = vector.load %arg3[%c0_76, %c0_77] : memref<128x512xf32, #tpu.memory_space<vmem>>, vector<128x512xf32>
    %cst_78 = arith.constant dense<0.000000e+00> : vector<1x512xf32>
    %272 = tpu.matmul %238, %271, %cst_78 {dimension_numbers = #tpu.dot_dimension_numbers<[1], [0], [0], [1], [0, 0, 1, 1], [], []>} : vector<1x128xf32>, vector<128x512xf32>, vector<1x512xf32> -> vector<1x512xf32>
    %273 = arith.addf %270, %272 : vector<1x512xf32>
    %274 = arith.index_cast %268 : i32 to index
    %c512_79 = arith.constant 512 : index
    %275 = vector.load %arg9[%274, %c512_79] : memref<8x1024xf32, #tpu.memory_space<vmem>>, vector<1x512xf32>
    %c0_80 = arith.constant 0 : index
    %c0_81 = arith.constant 0 : index
    %276 = vector.load %arg4[%c0_80, %c0_81] : memref<128x512xf32, #tpu.memory_space<vmem>>, vector<128x512xf32>
    %cst_82 = arith.constant dense<0.000000e+00> : vector<1x512xf32>
    %277 = tpu.matmul %263, %276, %cst_82 {dimension_numbers = #tpu.dot_dimension_numbers<[1], [0], [0], [1], [0, 0, 1, 1], [], []>} : vector<1x128xf32>, vector<128x512xf32>, vector<1x512xf32> -> vector<1x512xf32>
    %278 = arith.addf %275, %277 : vector<1x512xf32>
    %279 = vector.extract_strided_slice %273 {offsets = [0, 0], sizes = [1, 128], strides = [1, 1]} : vector<1x512xf32> to vector<1x128xf32>
    %280 = arith.negf %279 : vector<1x128xf32>
    %281 = math.exp %280 : vector<1x128xf32>
    %cst_83 = arith.constant 1.000000e+00 : f32
    %282 = vector.broadcast %cst_83 : f32 to vector<1x128xf32>
    %283 = arith.addf %282, %281 : vector<1x128xf32>
    %284 = arith.divf %282, %283 : vector<1x128xf32>
    %285 = vector.extract_strided_slice %273 {offsets = [0, 128], sizes = [1, 128], strides = [1, 1]} : vector<1x512xf32> to vector<1x128xf32>
    %286 = arith.negf %285 : vector<1x128xf32>
    %287 = math.exp %286 : vector<1x128xf32>
    %cst_84 = arith.constant 1.000000e+00 : f32
    %288 = vector.broadcast %cst_84 : f32 to vector<1x128xf32>
    %289 = arith.addf %288, %287 : vector<1x128xf32>
    %290 = arith.divf %288, %289 : vector<1x128xf32>
    %291 = vector.extract_strided_slice %273 {offsets = [0, 256], sizes = [1, 128], strides = [1, 1]} : vector<1x512xf32> to vector<1x128xf32>
    %292 = math.tanh %291 : vector<1x128xf32>
    %293 = vector.extract_strided_slice %273 {offsets = [0, 384], sizes = [1, 128], strides = [1, 1]} : vector<1x512xf32> to vector<1x128xf32>
    %294 = arith.negf %293 : vector<1x128xf32>
    %295 = math.exp %294 : vector<1x128xf32>
    %cst_85 = arith.constant 1.000000e+00 : f32
    %296 = vector.broadcast %cst_85 : f32 to vector<1x128xf32>
    %297 = arith.addf %296, %295 : vector<1x128xf32>
    %298 = arith.divf %296, %297 : vector<1x128xf32>
    %299 = arith.mulf %290, %236 : vector<1x128xf32>
    %300 = arith.mulf %284, %292 : vector<1x128xf32>
    %301 = arith.addf %299, %300 : vector<1x128xf32>
    %302 = math.tanh %301 : vector<1x128xf32>
    %303 = arith.mulf %298, %302 : vector<1x128xf32>
    %304 = vector.extract_strided_slice %278 {offsets = [0, 0], sizes = [1, 128], strides = [1, 1]} : vector<1x512xf32> to vector<1x128xf32>
    %305 = arith.negf %304 : vector<1x128xf32>
    %306 = math.exp %305 : vector<1x128xf32>
    %cst_86 = arith.constant 1.000000e+00 : f32
    %307 = vector.broadcast %cst_86 : f32 to vector<1x128xf32>
    %308 = arith.addf %307, %306 : vector<1x128xf32>
    %309 = arith.divf %307, %308 : vector<1x128xf32>
    %310 = vector.extract_strided_slice %278 {offsets = [0, 128], sizes = [1, 128], strides = [1, 1]} : vector<1x512xf32> to vector<1x128xf32>
    %311 = arith.negf %310 : vector<1x128xf32>
    %312 = math.exp %311 : vector<1x128xf32>
    %cst_87 = arith.constant 1.000000e+00 : f32
    %313 = vector.broadcast %cst_87 : f32 to vector<1x128xf32>
    %314 = arith.addf %313, %312 : vector<1x128xf32>
    %315 = arith.divf %313, %314 : vector<1x128xf32>
    %316 = vector.extract_strided_slice %278 {offsets = [0, 256], sizes = [1, 128], strides = [1, 1]} : vector<1x512xf32> to vector<1x128xf32>
    %317 = math.tanh %316 : vector<1x128xf32>
    %318 = vector.extract_strided_slice %278 {offsets = [0, 384], sizes = [1, 128], strides = [1, 1]} : vector<1x512xf32> to vector<1x128xf32>
    %319 = arith.negf %318 : vector<1x128xf32>
    %320 = math.exp %319 : vector<1x128xf32>
    %cst_88 = arith.constant 1.000000e+00 : f32
    %321 = vector.broadcast %cst_88 : f32 to vector<1x128xf32>
    %322 = arith.addf %321, %320 : vector<1x128xf32>
    %323 = arith.divf %321, %322 : vector<1x128xf32>
    %324 = arith.mulf %315, %261 : vector<1x128xf32>
    %325 = arith.mulf %309, %317 : vector<1x128xf32>
    %326 = arith.addf %324, %325 : vector<1x128xf32>
    %327 = math.tanh %326 : vector<1x128xf32>
    %328 = arith.mulf %323, %327 : vector<1x128xf32>
    %329 = arith.index_cast %c4_i32 : i32 to index
    %c0_89 = arith.constant 0 : index
    %330 = vector.load %arg10[%329, %c0_89] : memref<8x128xf32, #tpu.memory_space<vmem>>, vector<1x128xf32>
    tpu.vector_store %arg10[%329, %c0_89], %303 {strides = array<i32>} : memref<8x128xf32, #tpu.memory_space<vmem>>, vector<1x128xf32>,
    %331 = arith.index_cast %268 : i32 to index
    %c0_90 = arith.constant 0 : index
    %332 = vector.load %arg11[%331, %c0_90] : memref<8x128xf32, #tpu.memory_space<vmem>>, vector<1x128xf32>
    tpu.vector_store %arg11[%331, %c0_90], %328 {strides = array<i32>} : memref<8x128xf32, #tpu.memory_space<vmem>>, vector<1x128xf32>,
    %c5_i32 = arith.constant 5 : i32
    %c7_i32_91 = arith.constant 7 : i32
    %333 = arith.subi %c7_i32_91, %c5_i32 : i32
    %334 = arith.index_cast %c5_i32 : i32 to index
    %c0_92 = arith.constant 0 : index
    %335 = vector.load %arg9[%334, %c0_92] : memref<8x1024xf32, #tpu.memory_space<vmem>>, vector<1x512xf32>
    %c0_93 = arith.constant 0 : index
    %c0_94 = arith.constant 0 : index
    %336 = vector.load %arg3[%c0_93, %c0_94] : memref<128x512xf32, #tpu.memory_space<vmem>>, vector<128x512xf32>
    %cst_95 = arith.constant dense<0.000000e+00> : vector<1x512xf32>
    %337 = tpu.matmul %303, %336, %cst_95 {dimension_numbers = #tpu.dot_dimension_numbers<[1], [0], [0], [1], [0, 0, 1, 1], [], []>} : vector<1x128xf32>, vector<128x512xf32>, vector<1x512xf32> -> vector<1x512xf32>
    %338 = arith.addf %335, %337 : vector<1x512xf32>
    %339 = arith.index_cast %333 : i32 to index
    %c512_96 = arith.constant 512 : index
    %340 = vector.load %arg9[%339, %c512_96] : memref<8x1024xf32, #tpu.memory_space<vmem>>, vector<1x512xf32>
    %c0_97 = arith.constant 0 : index
    %c0_98 = arith.constant 0 : index
    %341 = vector.load %arg4[%c0_97, %c0_98] : memref<128x512xf32, #tpu.memory_space<vmem>>, vector<128x512xf32>
    %cst_99 = arith.constant dense<0.000000e+00> : vector<1x512xf32>
    %342 = tpu.matmul %328, %341, %cst_99 {dimension_numbers = #tpu.dot_dimension_numbers<[1], [0], [0], [1], [0, 0, 1, 1], [], []>} : vector<1x128xf32>, vector<128x512xf32>, vector<1x512xf32> -> vector<1x512xf32>
    %343 = arith.addf %340, %342 : vector<1x512xf32>
    %344 = vector.extract_strided_slice %338 {offsets = [0, 0], sizes = [1, 128], strides = [1, 1]} : vector<1x512xf32> to vector<1x128xf32>
    %345 = arith.negf %344 : vector<1x128xf32>
    %346 = math.exp %345 : vector<1x128xf32>
    %cst_100 = arith.constant 1.000000e+00 : f32
    %347 = vector.broadcast %cst_100 : f32 to vector<1x128xf32>
    %348 = arith.addf %347, %346 : vector<1x128xf32>
    %349 = arith.divf %347, %348 : vector<1x128xf32>
    %350 = vector.extract_strided_slice %338 {offsets = [0, 128], sizes = [1, 128], strides = [1, 1]} : vector<1x512xf32> to vector<1x128xf32>
    %351 = arith.negf %350 : vector<1x128xf32>
    %352 = math.exp %351 : vector<1x128xf32>
    %cst_101 = arith.constant 1.000000e+00 : f32
    %353 = vector.broadcast %cst_101 : f32 to vector<1x128xf32>
    %354 = arith.addf %353, %352 : vector<1x128xf32>
    %355 = arith.divf %353, %354 : vector<1x128xf32>
    %356 = vector.extract_strided_slice %338 {offsets = [0, 256], sizes = [1, 128], strides = [1, 1]} : vector<1x512xf32> to vector<1x128xf32>
    %357 = math.tanh %356 : vector<1x128xf32>
    %358 = vector.extract_strided_slice %338 {offsets = [0, 384], sizes = [1, 128], strides = [1, 1]} : vector<1x512xf32> to vector<1x128xf32>
    %359 = arith.negf %358 : vector<1x128xf32>
    %360 = math.exp %359 : vector<1x128xf32>
    %cst_102 = arith.constant 1.000000e+00 : f32
    %361 = vector.broadcast %cst_102 : f32 to vector<1x128xf32>
    %362 = arith.addf %361, %360 : vector<1x128xf32>
    %363 = arith.divf %361, %362 : vector<1x128xf32>
    %364 = arith.mulf %355, %301 : vector<1x128xf32>
    %365 = arith.mulf %349, %357 : vector<1x128xf32>
    %366 = arith.addf %364, %365 : vector<1x128xf32>
    %367 = math.tanh %366 : vector<1x128xf32>
    %368 = arith.mulf %363, %367 : vector<1x128xf32>
    %369 = vector.extract_strided_slice %343 {offsets = [0, 0], sizes = [1, 128], strides = [1, 1]} : vector<1x512xf32> to vector<1x128xf32>
    %370 = arith.negf %369 : vector<1x128xf32>
    %371 = math.exp %370 : vector<1x128xf32>
    %cst_103 = arith.constant 1.000000e+00 : f32
    %372 = vector.broadcast %cst_103 : f32 to vector<1x128xf32>
    %373 = arith.addf %372, %371 : vector<1x128xf32>
    %374 = arith.divf %372, %373 : vector<1x128xf32>
    %375 = vector.extract_strided_slice %343 {offsets = [0, 128], sizes = [1, 128], strides = [1, 1]} : vector<1x512xf32> to vector<1x128xf32>
    %376 = arith.negf %375 : vector<1x128xf32>
    %377 = math.exp %376 : vector<1x128xf32>
    %cst_104 = arith.constant 1.000000e+00 : f32
    %378 = vector.broadcast %cst_104 : f32 to vector<1x128xf32>
    %379 = arith.addf %378, %377 : vector<1x128xf32>
    %380 = arith.divf %378, %379 : vector<1x128xf32>
    %381 = vector.extract_strided_slice %343 {offsets = [0, 256], sizes = [1, 128], strides = [1, 1]} : vector<1x512xf32> to vector<1x128xf32>
    %382 = math.tanh %381 : vector<1x128xf32>
    %383 = vector.extract_strided_slice %343 {offsets = [0, 384], sizes = [1, 128], strides = [1, 1]} : vector<1x512xf32> to vector<1x128xf32>
    %384 = arith.negf %383 : vector<1x128xf32>
    %385 = math.exp %384 : vector<1x128xf32>
    %cst_105 = arith.constant 1.000000e+00 : f32
    %386 = vector.broadcast %cst_105 : f32 to vector<1x128xf32>
    %387 = arith.addf %386, %385 : vector<1x128xf32>
    %388 = arith.divf %386, %387 : vector<1x128xf32>
    %389 = arith.mulf %380, %326 : vector<1x128xf32>
    %390 = arith.mulf %374, %382 : vector<1x128xf32>
    %391 = arith.addf %389, %390 : vector<1x128xf32>
    %392 = math.tanh %391 : vector<1x128xf32>
    %393 = arith.mulf %388, %392 : vector<1x128xf32>
    %394 = arith.index_cast %c5_i32 : i32 to index
    %c0_106 = arith.constant 0 : index
    %395 = vector.load %arg10[%394, %c0_106] : memref<8x128xf32, #tpu.memory_space<vmem>>, vector<1x128xf32>
    tpu.vector_store %arg10[%394, %c0_106], %368 {strides = array<i32>} : memref<8x128xf32, #tpu.memory_space<vmem>>, vector<1x128xf32>,
    %396 = arith.index_cast %333 : i32 to index
    %c0_107 = arith.constant 0 : index
    %397 = vector.load %arg11[%396, %c0_107] : memref<8x128xf32, #tpu.memory_space<vmem>>, vector<1x128xf32>
    tpu.vector_store %arg11[%396, %c0_107], %393 {strides = array<i32>} : memref<8x128xf32, #tpu.memory_space<vmem>>, vector<1x128xf32>,
    %c6_i32 = arith.constant 6 : i32
    %c7_i32_108 = arith.constant 7 : i32
    %398 = arith.subi %c7_i32_108, %c6_i32 : i32
    %399 = arith.index_cast %c6_i32 : i32 to index
    %c0_109 = arith.constant 0 : index
    %400 = vector.load %arg9[%399, %c0_109] : memref<8x1024xf32, #tpu.memory_space<vmem>>, vector<1x512xf32>
    %c0_110 = arith.constant 0 : index
    %c0_111 = arith.constant 0 : index
    %401 = vector.load %arg3[%c0_110, %c0_111] : memref<128x512xf32, #tpu.memory_space<vmem>>, vector<128x512xf32>
    %cst_112 = arith.constant dense<0.000000e+00> : vector<1x512xf32>
    %402 = tpu.matmul %368, %401, %cst_112 {dimension_numbers = #tpu.dot_dimension_numbers<[1], [0], [0], [1], [0, 0, 1, 1], [], []>} : vector<1x128xf32>, vector<128x512xf32>, vector<1x512xf32> -> vector<1x512xf32>
    %403 = arith.addf %400, %402 : vector<1x512xf32>
    %404 = arith.index_cast %398 : i32 to index
    %c512_113 = arith.constant 512 : index
    %405 = vector.load %arg9[%404, %c512_113] : memref<8x1024xf32, #tpu.memory_space<vmem>>, vector<1x512xf32>
    %c0_114 = arith.constant 0 : index
    %c0_115 = arith.constant 0 : index
    %406 = vector.load %arg4[%c0_114, %c0_115] : memref<128x512xf32, #tpu.memory_space<vmem>>, vector<128x512xf32>
    %cst_116 = arith.constant dense<0.000000e+00> : vector<1x512xf32>
    %407 = tpu.matmul %393, %406, %cst_116 {dimension_numbers = #tpu.dot_dimension_numbers<[1], [0], [0], [1], [0, 0, 1, 1], [], []>} : vector<1x128xf32>, vector<128x512xf32>, vector<1x512xf32> -> vector<1x512xf32>
    %408 = arith.addf %405, %407 : vector<1x512xf32>
    %409 = vector.extract_strided_slice %403 {offsets = [0, 0], sizes = [1, 128], strides = [1, 1]} : vector<1x512xf32> to vector<1x128xf32>
    %410 = arith.negf %409 : vector<1x128xf32>
    %411 = math.exp %410 : vector<1x128xf32>
    %cst_117 = arith.constant 1.000000e+00 : f32
    %412 = vector.broadcast %cst_117 : f32 to vector<1x128xf32>
    %413 = arith.addf %412, %411 : vector<1x128xf32>
    %414 = arith.divf %412, %413 : vector<1x128xf32>
    %415 = vector.extract_strided_slice %403 {offsets = [0, 128], sizes = [1, 128], strides = [1, 1]} : vector<1x512xf32> to vector<1x128xf32>
    %416 = arith.negf %415 : vector<1x128xf32>
    %417 = math.exp %416 : vector<1x128xf32>
    %cst_118 = arith.constant 1.000000e+00 : f32
    %418 = vector.broadcast %cst_118 : f32 to vector<1x128xf32>
    %419 = arith.addf %418, %417 : vector<1x128xf32>
    %420 = arith.divf %418, %419 : vector<1x128xf32>
    %421 = vector.extract_strided_slice %403 {offsets = [0, 256], sizes = [1, 128], strides = [1, 1]} : vector<1x512xf32> to vector<1x128xf32>
    %422 = math.tanh %421 : vector<1x128xf32>
    %423 = vector.extract_strided_slice %403 {offsets = [0, 384], sizes = [1, 128], strides = [1, 1]} : vector<1x512xf32> to vector<1x128xf32>
    %424 = arith.negf %423 : vector<1x128xf32>
    %425 = math.exp %424 : vector<1x128xf32>
    %cst_119 = arith.constant 1.000000e+00 : f32
    %426 = vector.broadcast %cst_119 : f32 to vector<1x128xf32>
    %427 = arith.addf %426, %425 : vector<1x128xf32>
    %428 = arith.divf %426, %427 : vector<1x128xf32>
    %429 = arith.mulf %420, %366 : vector<1x128xf32>
    %430 = arith.mulf %414, %422 : vector<1x128xf32>
    %431 = arith.addf %429, %430 : vector<1x128xf32>
    %432 = math.tanh %431 : vector<1x128xf32>
    %433 = arith.mulf %428, %432 : vector<1x128xf32>
    %434 = vector.extract_strided_slice %408 {offsets = [0, 0], sizes = [1, 128], strides = [1, 1]} : vector<1x512xf32> to vector<1x128xf32>
    %435 = arith.negf %434 : vector<1x128xf32>
    %436 = math.exp %435 : vector<1x128xf32>
    %cst_120 = arith.constant 1.000000e+00 : f32
    %437 = vector.broadcast %cst_120 : f32 to vector<1x128xf32>
    %438 = arith.addf %437, %436 : vector<1x128xf32>
    %439 = arith.divf %437, %438 : vector<1x128xf32>
    %440 = vector.extract_strided_slice %408 {offsets = [0, 128], sizes = [1, 128], strides = [1, 1]} : vector<1x512xf32> to vector<1x128xf32>
    %441 = arith.negf %440 : vector<1x128xf32>
    %442 = math.exp %441 : vector<1x128xf32>
    %cst_121 = arith.constant 1.000000e+00 : f32
    %443 = vector.broadcast %cst_121 : f32 to vector<1x128xf32>
    %444 = arith.addf %443, %442 : vector<1x128xf32>
    %445 = arith.divf %443, %444 : vector<1x128xf32>
    %446 = vector.extract_strided_slice %408 {offsets = [0, 256], sizes = [1, 128], strides = [1, 1]} : vector<1x512xf32> to vector<1x128xf32>
    %447 = math.tanh %446 : vector<1x128xf32>
    %448 = vector.extract_strided_slice %408 {offsets = [0, 384], sizes = [1, 128], strides = [1, 1]} : vector<1x512xf32> to vector<1x128xf32>
    %449 = arith.negf %448 : vector<1x128xf32>
    %450 = math.exp %449 : vector<1x128xf32>
    %cst_122 = arith.constant 1.000000e+00 : f32
    %451 = vector.broadcast %cst_122 : f32 to vector<1x128xf32>
    %452 = arith.addf %451, %450 : vector<1x128xf32>
    %453 = arith.divf %451, %452 : vector<1x128xf32>
    %454 = arith.mulf %445, %391 : vector<1x128xf32>
    %455 = arith.mulf %439, %447 : vector<1x128xf32>
    %456 = arith.addf %454, %455 : vector<1x128xf32>
    %457 = math.tanh %456 : vector<1x128xf32>
    %458 = arith.mulf %453, %457 : vector<1x128xf32>
    %459 = arith.index_cast %c6_i32 : i32 to index
    %c0_123 = arith.constant 0 : index
    %460 = vector.load %arg10[%459, %c0_123] : memref<8x128xf32, #tpu.memory_space<vmem>>, vector<1x128xf32>
    tpu.vector_store %arg10[%459, %c0_123], %433 {strides = array<i32>} : memref<8x128xf32, #tpu.memory_space<vmem>>, vector<1x128xf32>,
    %461 = arith.index_cast %398 : i32 to index
    %c0_124 = arith.constant 0 : index
    %462 = vector.load %arg11[%461, %c0_124] : memref<8x128xf32, #tpu.memory_space<vmem>>, vector<1x128xf32>
    tpu.vector_store %arg11[%461, %c0_124], %458 {strides = array<i32>} : memref<8x128xf32, #tpu.memory_space<vmem>>, vector<1x128xf32>,
    %c7_i32_125 = arith.constant 7 : i32
    %c7_i32_126 = arith.constant 7 : i32
    %463 = arith.subi %c7_i32_126, %c7_i32_125 : i32
    %464 = arith.index_cast %c7_i32_125 : i32 to index
    %c0_127 = arith.constant 0 : index
    %465 = vector.load %arg9[%464, %c0_127] : memref<8x1024xf32, #tpu.memory_space<vmem>>, vector<1x512xf32>
    %c0_128 = arith.constant 0 : index
    %c0_129 = arith.constant 0 : index
    %466 = vector.load %arg3[%c0_128, %c0_129] : memref<128x512xf32, #tpu.memory_space<vmem>>, vector<128x512xf32>
    %cst_130 = arith.constant dense<0.000000e+00> : vector<1x512xf32>
    %467 = tpu.matmul %433, %466, %cst_130 {dimension_numbers = #tpu.dot_dimension_numbers<[1], [0], [0], [1], [0, 0, 1, 1], [], []>} : vector<1x128xf32>, vector<128x512xf32>, vector<1x512xf32> -> vector<1x512xf32>
    %468 = arith.addf %465, %467 : vector<1x512xf32>
    %469 = arith.index_cast %463 : i32 to index
    %c512_131 = arith.constant 512 : index
    %470 = vector.load %arg9[%469, %c512_131] : memref<8x1024xf32, #tpu.memory_space<vmem>>, vector<1x512xf32>
    %c0_132 = arith.constant 0 : index
    %c0_133 = arith.constant 0 : index
    %471 = vector.load %arg4[%c0_132, %c0_133] : memref<128x512xf32, #tpu.memory_space<vmem>>, vector<128x512xf32>
    %cst_134 = arith.constant dense<0.000000e+00> : vector<1x512xf32>
    %472 = tpu.matmul %458, %471, %cst_134 {dimension_numbers = #tpu.dot_dimension_numbers<[1], [0], [0], [1], [0, 0, 1, 1], [], []>} : vector<1x128xf32>, vector<128x512xf32>, vector<1x512xf32> -> vector<1x512xf32>
    %473 = arith.addf %470, %472 : vector<1x512xf32>
    %474 = vector.extract_strided_slice %468 {offsets = [0, 0], sizes = [1, 128], strides = [1, 1]} : vector<1x512xf32> to vector<1x128xf32>
    %475 = arith.negf %474 : vector<1x128xf32>
    %476 = math.exp %475 : vector<1x128xf32>
    %cst_135 = arith.constant 1.000000e+00 : f32
    %477 = vector.broadcast %cst_135 : f32 to vector<1x128xf32>
    %478 = arith.addf %477, %476 : vector<1x128xf32>
    %479 = arith.divf %477, %478 : vector<1x128xf32>
    %480 = vector.extract_strided_slice %468 {offsets = [0, 128], sizes = [1, 128], strides = [1, 1]} : vector<1x512xf32> to vector<1x128xf32>
    %481 = arith.negf %480 : vector<1x128xf32>
    %482 = math.exp %481 : vector<1x128xf32>
    %cst_136 = arith.constant 1.000000e+00 : f32
    %483 = vector.broadcast %cst_136 : f32 to vector<1x128xf32>
    %484 = arith.addf %483, %482 : vector<1x128xf32>
    %485 = arith.divf %483, %484 : vector<1x128xf32>
    %486 = vector.extract_strided_slice %468 {offsets = [0, 256], sizes = [1, 128], strides = [1, 1]} : vector<1x512xf32> to vector<1x128xf32>
    %487 = math.tanh %486 : vector<1x128xf32>
    %488 = vector.extract_strided_slice %468 {offsets = [0, 384], sizes = [1, 128], strides = [1, 1]} : vector<1x512xf32> to vector<1x128xf32>
    %489 = arith.negf %488 : vector<1x128xf32>
    %490 = math.exp %489 : vector<1x128xf32>
    %cst_137 = arith.constant 1.000000e+00 : f32
    %491 = vector.broadcast %cst_137 : f32 to vector<1x128xf32>
    %492 = arith.addf %491, %490 : vector<1x128xf32>
    %493 = arith.divf %491, %492 : vector<1x128xf32>
    %494 = arith.mulf %485, %431 : vector<1x128xf32>
    %495 = arith.mulf %479, %487 : vector<1x128xf32>
    %496 = arith.addf %494, %495 : vector<1x128xf32>
    %497 = math.tanh %496 : vector<1x128xf32>
    %498 = arith.mulf %493, %497 : vector<1x128xf32>
    %499 = vector.extract_strided_slice %473 {offsets = [0, 0], sizes = [1, 128], strides = [1, 1]} : vector<1x512xf32> to vector<1x128xf32>
    %500 = arith.negf %499 : vector<1x128xf32>
    %501 = math.exp %500 : vector<1x128xf32>
    %cst_138 = arith.constant 1.000000e+00 : f32
    %502 = vector.broadcast %cst_138 : f32 to vector<1x128xf32>
    %503 = arith.addf %502, %501 : vector<1x128xf32>
    %504 = arith.divf %502, %503 : vector<1x128xf32>
    %505 = vector.extract_strided_slice %473 {offsets = [0, 128], sizes = [1, 128], strides = [1, 1]} : vector<1x512xf32> to vector<1x128xf32>
    %506 = arith.negf %505 : vector<1x128xf32>
    %507 = math.exp %506 : vector<1x128xf32>
    %cst_139 = arith.constant 1.000000e+00 : f32
    %508 = vector.broadcast %cst_139 : f32 to vector<1x128xf32>
    %509 = arith.addf %508, %507 : vector<1x128xf32>
    %510 = arith.divf %508, %509 : vector<1x128xf32>
    %511 = vector.extract_strided_slice %473 {offsets = [0, 256], sizes = [1, 128], strides = [1, 1]} : vector<1x512xf32> to vector<1x128xf32>
    %512 = math.tanh %511 : vector<1x128xf32>
    %513 = vector.extract_strided_slice %473 {offsets = [0, 384], sizes = [1, 128], strides = [1, 1]} : vector<1x512xf32> to vector<1x128xf32>
    %514 = arith.negf %513 : vector<1x128xf32>
    %515 = math.exp %514 : vector<1x128xf32>
    %cst_140 = arith.constant 1.000000e+00 : f32
    %516 = vector.broadcast %cst_140 : f32 to vector<1x128xf32>
    %517 = arith.addf %516, %515 : vector<1x128xf32>
    %518 = arith.divf %516, %517 : vector<1x128xf32>
    %519 = arith.mulf %510, %456 : vector<1x128xf32>
    %520 = arith.mulf %504, %512 : vector<1x128xf32>
    %521 = arith.addf %519, %520 : vector<1x128xf32>
    %522 = math.tanh %521 : vector<1x128xf32>
    %523 = arith.mulf %518, %522 : vector<1x128xf32>
    %524 = arith.index_cast %c7_i32_125 : i32 to index
    %c0_141 = arith.constant 0 : index
    %525 = vector.load %arg10[%524, %c0_141] : memref<8x128xf32, #tpu.memory_space<vmem>>, vector<1x128xf32>
    tpu.vector_store %arg10[%524, %c0_141], %498 {strides = array<i32>} : memref<8x128xf32, #tpu.memory_space<vmem>>, vector<1x128xf32>,
    %526 = arith.index_cast %463 : i32 to index
    %c0_142 = arith.constant 0 : index
    %527 = vector.load %arg11[%526, %c0_142] : memref<8x128xf32, #tpu.memory_space<vmem>>, vector<1x128xf32>
    tpu.vector_store %arg11[%526, %c0_142], %523 {strides = array<i32>} : memref<8x128xf32, #tpu.memory_space<vmem>>, vector<1x128xf32>,
    %c8_i32 = arith.constant 8 : i32
    %c0_143 = arith.constant 0 : index
    %c0_144 = arith.constant 0 : index
    %528 = vector.load %arg10[%c0_143, %c0_144] : memref<8x128xf32, #tpu.memory_space<vmem>>, vector<8x128xf32>
    %c0_145 = arith.constant 0 : index
    %c0_146 = arith.constant 0 : index
    %529 = vector.load %arg5[%c0_145, %c0_146] : memref<128x128xf32, #tpu.memory_space<vmem>>, vector<128x128xf32>
    %cst_147 = arith.constant dense<0.000000e+00> : vector<8x128xf32>
    %530 = tpu.matmul %528, %529, %cst_147 {dimension_numbers = #tpu.dot_dimension_numbers<[1], [0], [0], [1], [0, 0, 1, 1], [], []>} : vector<8x128xf32>, vector<128x128xf32>, vector<8x128xf32> -> vector<8x128xf32>
    %c0_148 = arith.constant 0 : index
    %c0_149 = arith.constant 0 : index
    %531 = vector.load %arg11[%c0_148, %c0_149] : memref<8x128xf32, #tpu.memory_space<vmem>>, vector<8x128xf32>
    %c0_150 = arith.constant 0 : index
    %c0_151 = arith.constant 0 : index
    %532 = vector.load %arg6[%c0_150, %c0_151] : memref<128x128xf32, #tpu.memory_space<vmem>>, vector<128x128xf32>
    %cst_152 = arith.constant dense<0.000000e+00> : vector<8x128xf32>
    %533 = tpu.matmul %531, %532, %cst_152 {dimension_numbers = #tpu.dot_dimension_numbers<[1], [0], [0], [1], [0, 0, 1, 1], [], []>} : vector<8x128xf32>, vector<128x128xf32>, vector<8x128xf32> -> vector<8x128xf32>
    %534 = arith.addf %530, %533 : vector<8x128xf32>
    %c0_153 = arith.constant 0 : index
    %c0_154 = arith.constant 0 : index
    %535 = vector.load %arg7[%c0_153, %c0_154] : memref<1x128xf32, #tpu.memory_space<vmem>>, vector<1x128xf32>
    %536 = vector.broadcast %535 : vector<1x128xf32> to vector<8x128xf32>
    %537 = arith.addf %534, %536 : vector<8x128xf32>
    %c0_155 = arith.constant 0 : index
    %c0_156 = arith.constant 0 : index
    %538 = vector.load %arg8[%c0_155, %c0_156] : memref<8x128xf32, #tpu.memory_space<vmem>>, vector<8x128xf32>
    tpu.vector_store %arg8[%c0_155, %c0_156], %537 {strides = array<i32>} : memref<8x128xf32, #tpu.memory_space<vmem>>, vector<8x128xf32>,
    return
  }
}

</mosaic_0001>

<llo_original>
// kernel: tpu_custom_call.1
$region0: #{tpu_custom_call.1}
  #allocation0 [shape = 'u32[]', space=smem, size = 0x4, offset = 0x4, fixed_abs, tag = 'smem constant byte address 0x4 - core index']
  #allocation1 [shape = 'u32[144,128]{1,0:T(1,128)}', space=vmem, size = 0x12000, scoped, tag = 'internal scratch']
  #allocation2 [shape = 'f32[8,1024]{1,0:T(8,128)}', space=vmem, size = 0x8000, scoped, tag = 'scratch operand']
  #allocation3 [shape = 'f32[8,128]{1,0:T(8,128)}', space=vmem, size = 0x1000, scoped, tag = 'scratch operand']
  #allocation4 [shape = 'f32[8,128]{1,0:T(8,128)}', space=vmem, size = 0x1000, scoped, tag = 'scratch operand']
  %s0 = inlined_call_operand.hbm [shape: f32[8,16], index: 0, kind: input, shape index: {}]
  %s1 = inlined_call_operand.hbm [shape: f32[16,1024], index: 1, kind: input, shape index: {}]
  %s2 = inlined_call_operand.hbm [shape: f32[1,1024], index: 2, kind: input, shape index: {}]
  %s3 = inlined_call_operand.hbm [shape: f32[128,512], index: 3, kind: input, shape index: {}]
  %s4 = inlined_call_operand.hbm [shape: f32[128,512], index: 4, kind: input, shape index: {}]
  %s5 = inlined_call_operand.hbm [shape: f32[128,128], index: 5, kind: input, shape index: {}]
  %s6 = inlined_call_operand.hbm [shape: f32[128,128], index: 6, kind: input, shape index: {}]
  %s7 = inlined_call_operand.vmem [shape: f32[1,128], index: 7, kind: input, shape index: {}]
  %s8 = inlined_call_operand.hbm [shape: f32[8,128], index: 8, kind: output, shape index: {}]
  %s9 = sld [smem:[#allocation0]]
  $region70: #{tpu_custom_call.1} parent=0
    _
  %s11 = ssub.s32 1, %s9
  %s12 = scalar_select 0, %s11, %s9
  $region1: #{tpu_custom_call.1} parent=0
    #allocation5 [shape = 'u8[4096]{0}', space=vmem, size = 0x1000, scoped, tag = 'input window, operand 0, single buffered']
    #allocation6 [shape = 's32[1]{0}', space=sflag, size = 0x4, scoped, tag = 'scoped memory for tpu_custom_call.1']
    #allocation7 [shape = 's32[1]{0}', space=sflag, size = 0x4, scoped, tag = 'scoped memory for tpu_custom_call.1']
    #allocation8 [shape = 'u8[65536]{0}', space=vmem, size = 0x10000, scoped, tag = 'input window, operand 1, single buffered']
    #allocation9 [shape = 's32[1]{0}', space=sflag, size = 0x4, scoped, tag = 'scoped memory for tpu_custom_call.1']
    #allocation10 [shape = 'u8[4096]{0}', space=vmem, size = 0x1000, scoped, tag = 'input window, operand 2, single buffered']
    #allocation11 [shape = 'u8[262144]{0}', space=vmem, size = 0x40000, scoped, tag = 'input window, operand 3, single buffered']
    #allocation12 [shape = 's32[1]{0}', space=sflag, size = 0x4, scoped, tag = 'scoped memory for tpu_custom_call.1']
    #allocation13 [shape = 'u8[262144]{0}', space=vmem, size = 0x40000, scoped, tag = 'input window, operand 4, single buffered']
    #allocation14 [shape = 'u8[65536]{0}', space=vmem, size = 0x10000, scoped, tag = 'input window, operand 5, single buffered']
    #allocation15 [shape = 's32[1]{0}', space=sflag, size = 0x4, scoped, tag = 'scoped memory for tpu_custom_call.1']
    #allocation16 [shape = 'u8[65536]{0}', space=vmem, size = 0x10000, scoped, tag = 'input window, operand 6, single buffered']
    #allocation17 [shape = 'u8[4096]{0}', space=vmem, size = 0x1000, scoped, tag = 'output window, operand 0, single buffered']
    %13 = vsyncpa [#allocation6], 0
    %14 = vsyncpa [#allocation9], 0
    %15 = vsyncpa [#allocation12], 0
    %16 = vsyncpa [#allocation15], 0
    %17 = vsyncpa [#allocation7], 0
    // Predicated region
    $region2: #{tpu_custom_call.1} parent=1 // pred_check
      _
    $region3: #{tpu_custom_call.1} parent=1 // pred_check_branch
      %19 = sbr.rel (0) target = $region5
    $region4: #{tpu_custom_call.1} parent=1 // pred_region
      %s21 = ssub.s32 128, 128
      %22 = vsyncadd [#allocation6], %s21
      %s24 = sshll.u32 [#allocation5], 4
      %s25 = int_to_ptr.vmem [resolvable:$true] %s24
      %27 = dma.hbm_to_vmem [thread:$0]  %s0, 128, %s25, [#allocation6]
    $region5: #{tpu_custom_call.1} parent=1 // pred_fallthru
      _
    // Predicated region
    $region6: #{tpu_custom_call.1} parent=1 // pred_check
      _
    $region7: #{tpu_custom_call.1} parent=1 // pred_check_branch
      %29 = sbr.rel (0) target = $region9
    $region8: #{tpu_custom_call.1} parent=1 // pred_region
      %s31 = ssub.s32 2048, 2048
      %32 = vsyncadd [#allocation9], %s31
      %s33 = sshll.u32 [#allocation8], 4
      %s34 = int_to_ptr.vmem [resolvable:$true] %s33
      %39 = dma.hbm_to_vmem [thread:$0]  %s1, 2048, %s34, [#allocation9], 1024, 1024, 64
    $region9: #{tpu_custom_call.1} parent=1 // pred_fallthru
      _
    // Predicated region
    $region10: #{tpu_custom_call.1} parent=1 // pred_check
      _
    $region11: #{tpu_custom_call.1} parent=1 // pred_check_branch
      %41 = sbr.rel (0) target = $region13
    $region12: #{tpu_custom_call.1} parent=1 // pred_region
      %s43 = ssub.s32 128, 128
      %44 = vsyncadd [#allocation9], %s43
      %s46 = sshll.u32 [#allocation10], 4
      %s47 = int_to_ptr.vmem [resolvable:$true] %s46
      %49 = dma.hbm_to_vmem [thread:$0]  %s2, 128, %s47, [#allocation9]
    $region13: #{tpu_custom_call.1} parent=1 // pred_fallthru
      _
    // Predicated region
    $region14: #{tpu_custom_call.1} parent=1 // pred_check
      _
    $region15: #{tpu_custom_call.1} parent=1 // pred_check_branch
      %51 = sbr.rel (0) target = $region17
    $region16: #{tpu_custom_call.1} parent=1 // pred_region
      %s53 = ssub.s32 8192, 8192
      %54 = vsyncadd [#allocation12], %s53
      %s55 = sshll.u32 [#allocation11], 4
      %s56 = int_to_ptr.vmem [resolvable:$true] %s55
      %61 = dma.hbm_to_vmem [thread:$0]  %s3, 8192, %s56, [#allocation12], 512, 512, 32
    $region17: #{tpu_custom_call.1} parent=1 // pred_fallthru
      _
    // Predicated region
    $region18: #{tpu_custom_call.1} parent=1 // pred_check
      _
    $region19: #{tpu_custom_call.1} parent=1 // pred_check_branch
      %63 = sbr.rel (0) target = $region21
    $region20: #{tpu_custom_call.1} parent=1 // pred_region
      %s65 = ssub.s32 8192, 8192
      %66 = vsyncadd [#allocation12], %s65
      %s67 = sshll.u32 [#allocation13], 4
      %s68 = int_to_ptr.vmem [resolvable:$true] %s67
      %73 = dma.hbm_to_vmem [thread:$0]  %s4, 8192, %s68, [#allocation12], 512, 512, 32
    $region21: #{tpu_custom_call.1} parent=1 // pred_fallthru
      _
    // Predicated region
    $region22: #{tpu_custom_call.1} parent=1 // pred_check
      _
    $region23: #{tpu_custom_call.1} parent=1 // pred_check_branch
      %75 = sbr.rel (0) target = $region25
    $region24: #{tpu_custom_call.1} parent=1 // pred_region
      %s77 = ssub.s32 2048, 2048
      %78 = vsyncadd [#allocation15], %s77
      %s79 = sshll.u32 [#allocation14], 4
      %s80 = int_to_ptr.vmem [resolvable:$true] %s79
      %85 = dma.hbm_to_vmem [thread:$0]  %s5, 2048, %s80, [#allocation15], 128, 128, 8
    $region25: #{tpu_custom_call.1} parent=1 // pred_fallthru
      _
    // Predicated region
    $region26: #{tpu_custom_call.1} parent=1 // pred_check
      _
    $region27: #{tpu_custom_call.1} parent=1 // pred_check_branch
      %87 = sbr.rel (0) target = $region29
    $region28: #{tpu_custom_call.1} parent=1 // pred_region
      %s89 = ssub.s32 2048, 2048
      %90 = vsyncadd [#allocation15], %s89
      %s91 = sshll.u32 [#allocation16], 4
      %s92 = int_to_ptr.vmem [resolvable:$true] %s91
      %97 = dma.hbm_to_vmem [thread:$0]  %s6, 2048, %s92, [#allocation15], 128, 128, 8
    $region29: #{tpu_custom_call.1} parent=1 // pred_fallthru
      _
    // Predicated region
    $region30: #{tpu_custom_call.1} parent=1 // pred_check
      _
    $region31: #{tpu_custom_call.1} parent=1 // pred_check_branch
      %99 = sbr.rel (0) target = $region33
    $region32: #{tpu_custom_call.1} parent=1 // pred_region
      _
    $region33: #{tpu_custom_call.1} parent=1 // pred_fallthru
      _
    // Predicated region
    $region34: #{tpu_custom_call.1} parent=1 // pred_check
      _
    $region35: #{tpu_custom_call.1} parent=1 // pred_check_branch
      %101 = sbr.rel (0) target = $region37
    $region36: #{tpu_custom_call.1} parent=1 // pred_region
      %102 = dma.done [#allocation6], 128
    $region37: #{tpu_custom_call.1} parent=1 // pred_fallthru
      _
    // Predicated region
    $region38: #{tpu_custom_call.1} parent=1 // pred_check
      _
    $region39: #{tpu_custom_call.1} parent=1 // pred_check_branch
      %104 = sbr.rel (0) target = $region41
    $region40: #{tpu_custom_call.1} parent=1 // pred_region
      %105 = dma.done [#allocation9], 2048
    $region41: #{tpu_custom_call.1} parent=1 // pred_fallthru
      _
    // Predicated region
    $region42: #{tpu_custom_call.1} parent=1 // pred_check
      _
    $region43: #{tpu_custom_call.1} parent=1 // pred_check_branch
      %107 = sbr.rel (0) target = $region45
    $region44: #{tpu_custom_call.1} parent=1 // pred_region
      %108 = dma.done [#allocation9], 128
    $region45: #{tpu_custom_call.1} parent=1 // pred_fallthru
      _
    // Predicated region
    $region46: #{tpu_custom_call.1} parent=1 // pred_check
      _
    $region47: #{tpu_custom_call.1} parent=1 // pred_check_branch
      %110 = sbr.rel (0) target = $region49
    $region48: #{tpu_custom_call.1} parent=1 // pred_region
      %111 = dma.done [#allocation12], 8192
    $region49: #{tpu_custom_call.1} parent=1 // pred_fallthru
      _
    // Predicated region
    $region50: #{tpu_custom_call.1} parent=1 // pred_check
      _
    $region51: #{tpu_custom_call.1} parent=1 // pred_check_branch
      %113 = sbr.rel (0) target = $region53
    $region52: #{tpu_custom_call.1} parent=1 // pred_region
      %114 = dma.done [#allocation12], 8192
    $region53: #{tpu_custom_call.1} parent=1 // pred_fallthru
      _
    // Predicated region
    $region54: #{tpu_custom_call.1} parent=1 // pred_check
      _
    $region55: #{tpu_custom_call.1} parent=1 // pred_check_branch
      %116 = sbr.rel (0) target = $region57
    $region56: #{tpu_custom_call.1} parent=1 // pred_region
      %117 = dma.done [#allocation15], 2048
    $region57: #{tpu_custom_call.1} parent=1 // pred_fallthru
      _
    // Predicated region
    $region58: #{tpu_custom_call.1} parent=1 // pred_check
      _
    $region59: #{tpu_custom_call.1} parent=1 // pred_check_branch
      %119 = sbr.rel (0) target = $region61
    $region60: #{tpu_custom_call.1} parent=1 // pred_region
      %120 = dma.done [#allocation15], 2048
    $region61: #{tpu_custom_call.1} parent=1 // pred_fallthru
      _
    %v121 = vld [vmem:[#allocation5] sm:$0xff]
    %v122 = vld [vmem:[#allocation8] sm:$0xff]
    %v123 = vld [vmem:[#allocation8 + $0x8] sm:$0xff]
    %v124 = vld [vmem:[#allocation8 + $0x10] sm:$0xff]
    %v125 = vld [vmem:[#allocation8 + $0x18] sm:$0xff]
    %v126 = vld [vmem:[#allocation8 + $0x20] sm:$0xff]
    %v127 = vld [vmem:[#allocation8 + $0x28] sm:$0xff]
    %v128 = vld [vmem:[#allocation8 + $0x30] sm:$0xff]
    %v129 = vld [vmem:[#allocation8 + $0x38] sm:$0xff]
    %v130 = vld [vmem:[#allocation8 + $0x40] sm:$0xff]
    %v131 = vld [vmem:[#allocation8 + $0x48] sm:$0xff]
    %v132 = vld [vmem:[#allocation8 + $0x50] sm:$0xff]
    %v133 = vld [vmem:[#allocation8 + $0x58] sm:$0xff]
    %v134 = vld [vmem:[#allocation8 + $0x60] sm:$0xff]
    %v135 = vld [vmem:[#allocation8 + $0x68] sm:$0xff]
    %v136 = vld [vmem:[#allocation8 + $0x70] sm:$0xff]
    %v137 = vld [vmem:[#allocation8 + $0x78] sm:$0xff]
    %v138 = vld [vmem:[#allocation10] sm:$0xff]
    %v140 = vlaneseq
    %v141 = vshrl.u32 %v140, 7
    %v142 = vsub.s32 0, %v141
    %v143 = vrot.slane %v138, %v142
    %v144 = vlaneseq
    %v145 = vshrl.u32 %v144, 7
    %v146 = vsub.s32 1, %v145
    %v147 = vrot.slane %v138, %v146
    %v148 = vlaneseq
    %v149 = vshrl.u32 %v148, 7
    %v150 = vsub.s32 2, %v149
    %v151 = vrot.slane %v138, %v150
    %v152 = vlaneseq
    %v153 = vshrl.u32 %v152, 7
    %v154 = vsub.s32 3, %v153
    %v155 = vrot.slane %v138, %v154
    %v156 = vlaneseq
    %v157 = vshrl.u32 %v156, 7
    %v158 = vsub.s32 4, %v157
    %v159 = vrot.slane %v138, %v158
    %v160 = vlaneseq
    %v161 = vshrl.u32 %v160, 7
    %v162 = vsub.s32 5, %v161
    %v163 = vrot.slane %v138, %v162
    %v164 = vlaneseq
    %v165 = vshrl.u32 %v164, 7
    %v166 = vsub.s32 6, %v165
    %v167 = vrot.slane %v138, %v166
    %v168 = vlaneseq
    %v169 = vshrl.u32 %v168, 7
    %v170 = vsub.s32 7, %v169
    %v171 = vrot.slane %v138, %v170
    %vm180 = vcmask 130048
    %v182 = vsel %vm180, %v121, 0
    %184 = vmatprep.subr.mxu0 %v123
    %185 = vmatpush1.msra.mxu0 %v122
    %186 = vmatprep.subr.mxu0 %v131
    %187 = vmatpush1.msra.mxu0 %v130
    %188 = vmatprep.subr.mxu0 0.0
    %189 = vmatpush1.msra.mxu0 0.0
    %190 = vmatprep.subr.mxu0 0.0
    %191 = vmatpush1.msra.mxu0 0.0
    %192 = vmatprep.subr.mxu0 0.0
    %193 = vmatpush1.msra.mxu0 0.0
    %194 = vmatprep.subr.mxu0 0.0
    %195 = vmatpush1.msra.mxu0 0.0
    %196 = vmatprep.subr.mxu0 0.0
    %197 = vmatpush1.msra.mxu0 0.0
    %198 = vmatprep.subr.mxu0 0.0
    %199 = vmatpush1.msra.mxu0 0.0
    %200 = vmatprep.subr.mxu0 0.0
    %201 = vmatpush1.msra.mxu0 0.0
    %202 = vmatprep.subr.mxu0 0.0
    %203 = vmatpush1.msra.mxu0 0.0
    %204 = vmatprep.subr.mxu0 0.0
    %205 = vmatpush1.msra.mxu0 0.0
    %206 = vmatprep.subr.mxu0 0.0
    %207 = vmatpush1.msra.mxu0 0.0
    %208 = vmatprep.subr.mxu0 0.0
    %209 = vmatpush1.msra.mxu0 0.0
    %210 = vmatprep.subr.mxu0 0.0
    %211 = vmatpush1.msra.mxu0 0.0
    %212 = vmatprep.subr.mxu0 0.0
    %213 = vmatpush1.msra.mxu0 0.0
    %214 = vmatprep.subr.mxu0 0.0
    %215 = vmatpush1.msra.mxu0 0.0
    %216 = vmatprep.subr.mxu0 0.0
    %217 = vmatpush1.msra.mxu0 0.0
    %218 = vmatprep.subr.mxu0 0.0
    %219 = vmatpush1.msra.mxu0 0.0
    %220 = vmatprep.subr.mxu0 0.0
    %221 = vmatpush1.msra.mxu0 0.0
    %222 = vmatprep.subr.mxu0 0.0
    %223 = vmatpush1.msra.mxu0 0.0
    %224 = vmatprep.subr.mxu0 0.0
    %225 = vmatpush1.msra.mxu0 0.0
    %226 = vmatprep.subr.mxu0 0.0
    %227 = vmatpush1.msra.mxu0 0.0
    %228 = vmatprep.subr.mxu0 0.0
    %229 = vmatpush1.msra.mxu0 0.0
    %230 = vmatprep.subr.mxu0 0.0
    %231 = vmatpush1.msra.mxu0 0.0
    %232 = vmatprep.subr.mxu0 0.0
    %233 = vmatpush1.msra.mxu0 0.0
    %234 = vmatprep.subr.mxu0 0.0
    %235 = vmatpush1.msra.mxu0 0.0
    %236 = vmatprep.subr.mxu0 0.0
    %237 = vmatpush1.msra.mxu0 0.0
    %238 = vmatprep.subr.mxu0 0.0
    %239 = vmatpush1.msra.mxu0 0.0
    %240 = vmatprep.subr.mxu0 0.0
    %241 = vmatpush1.msra.mxu0 0.0
    %242 = vmatprep.subr.mxu0 0.0
    %243 = vmatpush1.msra.mxu0 0.0
    %244 = vmatprep.subr.mxu0 0.0
    %245 = vmatpush1.msra.mxu0 0.0
    %246 = vmatprep.subr.mxu0 0.0
    %247 = vmatpush1.msra.mxu0 0.0
    %248 = vmatprep.mubr.f32.mxu0 0.0
    %249 = vmatmul.mubr.f32.gmra.mrb[0].mxu0 %v182
    %v250 = vpop.f32.mrb[0].mxu0
    %v251 = vadd.f32 %v143, %v250
    %v252 = vpop.f32.mrb[0].mxu0
    %v253 = vadd.f32 %v147, %v252
    %254 = vdwg.mxu0
    %255 = vmatprep.subr.mxu0 %v125
    %256 = vmatpush1.msra.mxu0 %v124
    %257 = vmatprep.subr.mxu0 %v133
    %258 = vmatpush1.msra.mxu0 %v132
    %259 = vmatprep.subr.mxu0 0.0
    %260 = vmatpush1.msra.mxu0 0.0
    %261 = vmatprep.subr.mxu0 0.0
    %262 = vmatpush1.msra.mxu0 0.0
    %263 = vmatprep.subr.mxu0 0.0
    %264 = vmatpush1.msra.mxu0 0.0
    %265 = vmatprep.subr.mxu0 0.0
    %266 = vmatpush1.msra.mxu0 0.0
    %267 = vmatprep.subr.mxu0 0.0
    %268 = vmatpush1.msra.mxu0 0.0
    %269 = vmatprep.subr.mxu0 0.0
    %270 = vmatpush1.msra.mxu0 0.0
    %271 = vmatprep.subr.mxu0 0.0
    %272 = vmatpush1.msra.mxu0 0.0
    %273 = vmatprep.subr.mxu0 0.0
    %274 = vmatpush1.msra.mxu0 0.0
    %275 = vmatprep.subr.mxu0 0.0
    %276 = vmatpush1.msra.mxu0 0.0
    %277 = vmatprep.subr.mxu0 0.0
    %278 = vmatpush1.msra.mxu0 0.0
    %279 = vmatprep.subr.mxu0 0.0
    %280 = vmatpush1.msra.mxu0 0.0
    %281 = vmatprep.subr.mxu0 0.0
    %282 = vmatpush1.msra.mxu0 0.0
    %283 = vmatprep.subr.mxu0 0.0
    %284 = vmatpush1.msra.mxu0 0.0
    %285 = vmatprep.subr.mxu0 0.0
    %286 = vmatpush1.msra.mxu0 0.0
    %287 = vmatprep.subr.mxu0 0.0
    %288 = vmatpush1.msra.mxu0 0.0
    %289 = vmatprep.subr.mxu0 0.0
    %290 = vmatpush1.msra.mxu0 0.0
    %291 = vmatprep.subr.mxu0 0.0
    %292 = vmatpush1.msra.mxu0 0.0
    %293 = vmatprep.subr.mxu0 0.0
    %294 = vmatpush1.msra.mxu0 0.0
    %295 = vmatprep.subr.mxu0 0.0
    %296 = vmatpush1.msra.mxu0 0.0
    %297 = vmatprep.subr.mxu0 0.0
    %298 = vmatpush1.msra.mxu0 0.0
    %299 = vmatprep.subr.mxu0 0.0
    %300 = vmatpush1.msra.mxu0 0.0
    %301 = vmatprep.subr.mxu0 0.0
    %302 = vmatpush1.msra.mxu0 0.0
    %303 = vmatprep.subr.mxu0 0.0
    %304 = vmatpush1.msra.mxu0 0.0
    %305 = vmatprep.subr.mxu0 0.0
    %306 = vmatpush1.msra.mxu0 0.0
    %307 = vmatprep.subr.mxu0 0.0
    %308 = vmatpush1.msra.mxu0 0.0
    %309 = vmatprep.subr.mxu0 0.0
    %310 = vmatpush1.msra.mxu0 0.0
    %311 = vmatprep.subr.mxu0 0.0
    %312 = vmatpush1.msra.mxu0 0.0
    %313 = vmatprep.subr.mxu0 0.0
    %314 = vmatpush1.msra.mxu0 0.0
    %315 = vmatprep.subr.mxu0 0.0
    %316 = vmatpush1.msra.mxu0 0.0
    %317 = vmatprep.subr.mxu0 0.0
    %318 = vmatpush1.msra.mxu0 0.0
    %319 = vmatprep.mubr.f32.mxu0 0.0
    %320 = vmatmul.mubr.f32.gmra.mrb[0].mxu0 %v182
    %v321 = vpop.f32.mrb[0].mxu0
    %v322 = vadd.f32 %v151, %v321
    %v323 = vpop.f32.mrb[0].mxu0
    %v324 = vadd.f32 %v155, %v323
    %325 = vdwg.mxu0
    %326 = vmatprep.subr.mxu0 %v127
    %327 = vmatpush1.msra.mxu0 %v126
    %328 = vmatprep.subr.mxu0 %v135
    %329 = vmatpush1.msra.mxu0 %v134
    %330 = vmatprep.subr.mxu0 0.0
    %331 = vmatpush1.msra.mxu0 0.0
    %332 = vmatprep.subr.mxu0 0.0
    %333 = vmatpush1.msra.mxu0 0.0
    %334 = vmatprep.subr.mxu0 0.0
    %335 = vmatpush1.msra.mxu0 0.0
    %336 = vmatprep.subr.mxu0 0.0
    %337 = vmatpush1.msra.mxu0 0.0
    %338 = vmatprep.subr.mxu0 0.0
    %339 = vmatpush1.msra.mxu0 0.0
    %340 = vmatprep.subr.mxu0 0.0
    %341 = vmatpush1.msra.mxu0 0.0
    %342 = vmatprep.subr.mxu0 0.0
    %343 = vmatpush1.msra.mxu0 0.0
    %344 = vmatprep.subr.mxu0 0.0
    %345 = vmatpush1.msra.mxu0 0.0
    %346 = vmatprep.subr.mxu0 0.0
    %347 = vmatpush1.msra.mxu0 0.0
    %348 = vmatprep.subr.mxu0 0.0
    %349 = vmatpush1.msra.mxu0 0.0
    %350 = vmatprep.subr.mxu0 0.0
    %351 = vmatpush1.msra.mxu0 0.0
    %352 = vmatprep.subr.mxu0 0.0
    %353 = vmatpush1.msra.mxu0 0.0
    %354 = vmatprep.subr.mxu0 0.0
    %355 = vmatpush1.msra.mxu0 0.0
    %356 = vmatprep.subr.mxu0 0.0
    %357 = vmatpush1.msra.mxu0 0.0
    %358 = vmatprep.subr.mxu0 0.0
    %359 = vmatpush1.msra.mxu0 0.0
    %360 = vmatprep.subr.mxu0 0.0
    %361 = vmatpush1.msra.mxu0 0.0
    %362 = vmatprep.subr.mxu0 0.0
    %363 = vmatpush1.msra.mxu0 0.0
    %364 = vmatprep.subr.mxu0 0.0
    %365 = vmatpush1.msra.mxu0 0.0
    %366 = vmatprep.subr.mxu0 0.0
    %367 = vmatpush1.msra.mxu0 0.0
    %368 = vmatprep.subr.mxu0 0.0
    %369 = vmatpush1.msra.mxu0 0.0
    %370 = vmatprep.subr.mxu0 0.0
    %371 = vmatpush1.msra.mxu0 0.0
    %372 = vmatprep.subr.mxu0 0.0
    %373 = vmatpush1.msra.mxu0 0.0
    %374 = vmatprep.subr.mxu0 0.0
    %375 = vmatpush1.msra.mxu0 0.0
    %376 = vmatprep.subr.mxu0 0.0
    %377 = vmatpush1.msra.mxu0 0.0
    %378 = vmatprep.subr.mxu0 0.0
    %379 = vmatpush1.msra.mxu0 0.0
    %380 = vmatprep.subr.mxu0 0.0
    %381 = vmatpush1.msra.mxu0 0.0
    %382 = vmatprep.subr.mxu0 0.0
    %383 = vmatpush1.msra.mxu0 0.0
    %384 = vmatprep.subr.mxu0 0.0
    %385 = vmatpush1.msra.mxu0 0.0
    %386 = vmatprep.subr.mxu0 0.0
    %387 = vmatpush1.msra.mxu0 0.0
    %388 = vmatprep.subr.mxu0 0.0
    %389 = vmatpush1.msra.mxu0 0.0
    %390 = vmatprep.mubr.f32.mxu0 0.0
    %391 = vmatmul.mubr.f32.gmra.mrb[0].mxu0 %v182
    %v392 = vpop.f32.mrb[0].mxu0
    %v393 = vadd.f32 %v159, %v392
    %v394 = vpop.f32.mrb[0].mxu0
    %v395 = vadd.f32 %v163, %v394
    %396 = vdwg.mxu0
    %397 = vmatprep.subr.mxu0 %v129
    %398 = vmatpush1.msra.mxu0 %v128
    %399 = vmatprep.subr.mxu0 %v137
    %400 = vmatpush1.msra.mxu0 %v136
    %401 = vmatprep.subr.mxu0 0.0
    %402 = vmatpush1.msra.mxu0 0.0
    %403 = vmatprep.subr.mxu0 0.0
    %404 = vmatpush1.msra.mxu0 0.0
    %405 = vmatprep.subr.mxu0 0.0
    %406 = vmatpush1.msra.mxu0 0.0
    %407 = vmatprep.subr.mxu0 0.0
    %408 = vmatpush1.msra.mxu0 0.0
    %409 = vmatprep.subr.mxu0 0.0
    %410 = vmatpush1.msra.mxu0 0.0
    %411 = vmatprep.subr.mxu0 0.0
    %412 = vmatpush1.msra.mxu0 0.0
    %413 = vmatprep.subr.mxu0 0.0
    %414 = vmatpush1.msra.mxu0 0.0
    %415 = vmatprep.subr.mxu0 0.0
    %416 = vmatpush1.msra.mxu0 0.0
    %417 = vmatprep.subr.mxu0 0.0
    %418 = vmatpush1.msra.mxu0 0.0
    %419 = vmatprep.subr.mxu0 0.0
    %420 = vmatpush1.msra.mxu0 0.0
    %421 = vmatprep.subr.mxu0 0.0
    %422 = vmatpush1.msra.mxu0 0.0
    %423 = vmatprep.subr.mxu0 0.0
    %424 = vmatpush1.msra.mxu0 0.0
    %425 = vmatprep.subr.mxu0 0.0
    %426 = vmatpush1.msra.mxu0 0.0
    %427 = vmatprep.subr.mxu0 0.0
    %428 = vmatpush1.msra.mxu0 0.0
    %429 = vmatprep.subr.mxu0 0.0
    %430 = vmatpush1.msra.mxu0 0.0
    %431 = vmatprep.subr.mxu0 0.0
    %432 = vmatpush1.msra.mxu0 0.0
    %433 = vmatprep.subr.mxu0 0.0
    %434 = vmatpush1.msra.mxu0 0.0
    %435 = vmatprep.subr.mxu0 0.0
    %436 = vmatpush1.msra.mxu0 0.0
    %437 = vmatprep.subr.mxu0 0.0
    %438 = vmatpush1.msra.mxu0 0.0
    %439 = vmatprep.subr.mxu0 0.0
    %440 = vmatpush1.msra.mxu0 0.0
    %441 = vmatprep.subr.mxu0 0.0
    %442 = vmatpush1.msra.mxu0 0.0
    %443 = vmatprep.subr.mxu0 0.0
    %444 = vmatpush1.msra.mxu0 0.0
    %445 = vmatprep.subr.mxu0 0.0
    %446 = vmatpush1.msra.mxu0 0.0
    %447 = vmatprep.subr.mxu0 0.0
    %448 = vmatpush1.msra.mxu0 0.0
    %449 = vmatprep.subr.mxu0 0.0
    %450 = vmatpush1.msra.mxu0 0.0
    %451 = vmatprep.subr.mxu0 0.0
    %452 = vmatpush1.msra.mxu0 0.0
    %453 = vmatprep.subr.mxu0 0.0
    %454 = vmatpush1.msra.mxu0 0.0
    %455 = vmatprep.subr.mxu0 0.0
    %456 = vmatpush1.msra.mxu0 0.0
    %457 = vmatprep.subr.mxu0 0.0
    %458 = vmatpush1.msra.mxu0 0.0
    %459 = vmatprep.subr.mxu0 0.0
    %460 = vmatpush1.msra.mxu0 0.0
    %461 = vmatprep.mubr.f32.mxu0 0.0
    %462 = vmatmul.mubr.f32.gmra.mrb[0].mxu0 %v182
    %v463 = vpop.f32.mrb[0].mxu0
    %v464 = vadd.f32 %v167, %v463
    %v465 = vpop.f32.mrb[0].mxu0
    %v466 = vadd.f32 %v171, %v465
    %467 = vdwg.mxu0
    %468 = vst [vmem:[#allocation2] sm:$0xff] %v251
    %469 = vst [vmem:[#allocation2 + $0x8] sm:$0xff] %v253
    %470 = vst [vmem:[#allocation2 + $0x10] sm:$0xff] %v322
    %471 = vst [vmem:[#allocation2 + $0x18] sm:$0xff] %v324
    %472 = vst [vmem:[#allocation2 + $0x20] sm:$0xff] %v393
    %473 = vst [vmem:[#allocation2 + $0x28] sm:$0xff] %v395
    %474 = vst [vmem:[#allocation2 + $0x30] sm:$0xff] %v464
    %475 = vst [vmem:[#allocation2 + $0x38] sm:$0xff] %v466
    %v476 = vld [vmem:[#allocation2] ss:$8 sm:$0xf]
    %v477 = vld [vmem:[#allocation11] sm:$0xff]
    %v478 = vld [vmem:[#allocation11 + $0x8] sm:$0xff]
    %v479 = vld [vmem:[#allocation11 + $0x10] sm:$0xff]
    %v480 = vld [vmem:[#allocation11 + $0x18] sm:$0xff]
    %v481 = vld [vmem:[#allocation11 + $0x20] sm:$0xff]
    %v482 = vld [vmem:[#allocation11 + $0x28] sm:$0xff]
    %v483 = vld [vmem:[#allocation11 + $0x30] sm:$0xff]
    %v484 = vld [vmem:[#allocation11 + $0x38] sm:$0xff]
    %v485 = vld [vmem:[#allocation11 + $0x40] sm:$0xff]
    %v486 = vld [vmem:[#allocation11 + $0x48] sm:$0xff]
    %v487 = vld [vmem:[#allocation11 + $0x50] sm:$0xff]
    %v488 = vld [vmem:[#allocation11 + $0x58] sm:$0xff]
    %v489 = vld [vmem:[#allocation11 + $0x60] sm:$0xff]
    %v490 = vld [vmem:[#allocation11 + $0x68] sm:$0xff]
    %v491 = vld [vmem:[#allocation11 + $0x70] sm:$0xff]
    %v492 = vld [vmem:[#allocation11 + $0x78] sm:$0xff]
    %v493 = vld [vmem:[#allocation11 + $0x80] sm:$0xff]
    %v494 = vld [vmem:[#allocation11 + $0x88] sm:$0xff]
    %v495 = vld [vmem:[#allocation11 + $0x90] sm:$0xff]
    %v496 = vld [vmem:[#allocation11 + $0x98] sm:$0xff]
    %v497 = vld [vmem:[#allocation11 + $0xa0] sm:$0xff]
    %v498 = vld [vmem:[#allocation11 + $0xa8] sm:$0xff]
    %v499 = vld [vmem:[#allocation11 + $0xb0] sm:$0xff]
    %v500 = vld [vmem:[#allocation11 + $0xb8] sm:$0xff]
    %v501 = vld [vmem:[#allocation11 + $0xc0] sm:$0xff]
    %v502 = vld [vmem:[#allocation11 + $0xc8] sm:$0xff]
    %v503 = vld [vmem:[#allocation11 + $0xd0] sm:$0xff]
    %v504 = vld [vmem:[#allocation11 + $0xd8] sm:$0xff]
    %v505 = vld [vmem:[#allocation11 + $0xe0] sm:$0xff]
    %v506 = vld [vmem:[#allocation11 + $0xe8] sm:$0xff]
    %v507 = vld [vmem:[#allocation11 + $0xf0] sm:$0xff]
    %v508 = vld [vmem:[#allocation11 + $0xf8] sm:$0xff]
    %v509 = vld [vmem:[#allocation11 + $0x100] sm:$0xff]
    %v510 = vld [vmem:[#allocation11 + $0x108] sm:$0xff]
    %v511 = vld [vmem:[#allocation11 + $0x110] sm:$0xff]
    %v512 = vld [vmem:[#allocation11 + $0x118] sm:$0xff]
    %v513 = vld [vmem:[#allocation11 + $0x120] sm:$0xff]
    %v514 = vld [vmem:[#allocation11 + $0x128] sm:$0xff]
    %v515 = vld [vmem:[#allocation11 + $0x130] sm:$0xff]
    %v516 = vld [vmem:[#allocation11 + $0x138] sm:$0xff]
    %v517 = vld [vmem:[#allocation11 + $0x140] sm:$0xff]
    %v518 = vld [vmem:[#allocation11 + $0x148] sm:$0xff]
    %v519 = vld [vmem:[#allocation11 + $0x150] sm:$0xff]
    %v520 = vld [vmem:[#allocation11 + $0x158] sm:$0xff]
    %v521 = vld [vmem:[#allocation11 + $0x160] sm:$0xff]
    %v522 = vld [vmem:[#allocation11 + $0x168] sm:$0xff]
    %v523 = vld [vmem:[#allocation11 + $0x170] sm:$0xff]
    %v524 = vld [vmem:[#allocation11 + $0x178] sm:$0xff]
    %v525 = vld [vmem:[#allocation11 + $0x180] sm:$0xff]
    %v526 = vld [vmem:[#allocation11 + $0x188] sm:$0xff]
    %v527 = vld [vmem:[#allocation11 + $0x190] sm:$0xff]
    %v528 = vld [vmem:[#allocation11 + $0x198] sm:$0xff]
    %v529 = vld [vmem:[#allocation11 + $0x1a0] sm:$0xff]
    %v530 = vld [vmem:[#allocation11 + $0x1a8] sm:$0xff]
    %v531 = vld [vmem:[#allocation11 + $0x1b0] sm:$0xff]
    %v532 = vld [vmem:[#allocation11 + $0x1b8] sm:$0xff]
    %v533 = vld [vmem:[#allocation11 + $0x1c0] sm:$0xff]
    %v534 = vld [vmem:[#allocation11 + $0x1c8] sm:$0xff]
    %v535 = vld [vmem:[#allocation11 + $0x1d0] sm:$0xff]
    %v536 = vld [vmem:[#allocation11 + $0x1d8] sm:$0xff]
    %v537 = vld [vmem:[#allocation11 + $0x1e0] sm:$0xff]
    %v538 = vld [vmem:[#allocation11 + $0x1e8] sm:$0xff]
    %v539 = vld [vmem:[#allocation11 + $0x1f0] sm:$0xff]
    %v540 = vld [vmem:[#allocation11 + $0x1f8] sm:$0xff]
    %541 = vmatprep.subr.mxu0 %v478
    %542 = vmatpush1.msra.mxu0 %v477
    %543 = vmatprep.subr.mxu0 %v482
    %544 = vmatpush1.msra.mxu0 %v481
    %545 = vmatprep.subr.mxu0 %v486
    %546 = vmatpush1.msra.mxu0 %v485
    %547 = vmatprep.subr.mxu0 %v490
    %548 = vmatpush1.msra.mxu0 %v489
    %549 = vmatprep.subr.mxu0 %v494
    %550 = vmatpush1.msra.mxu0 %v493
    %551 = vmatprep.subr.mxu0 %v498
    %552 = vmatpush1.msra.mxu0 %v497
    %553 = vmatprep.subr.mxu0 %v502
    %554 = vmatpush1.msra.mxu0 %v501
    %555 = vmatprep.subr.mxu0 %v506
    %556 = vmatpush1.msra.mxu0 %v505
    %557 = vmatprep.subr.mxu0 %v510
    %558 = vmatpush1.msra.mxu0 %v509
    %559 = vmatprep.subr.mxu0 %v514
    %560 = vmatpush1.msra.mxu0 %v513
    %561 = vmatprep.subr.mxu0 %v518
    %562 = vmatpush1.msra.mxu0 %v517
    %563 = vmatprep.subr.mxu0 %v522
    %564 = vmatpush1.msra.mxu0 %v521
    %565 = vmatprep.subr.mxu0 %v526
    %566 = vmatpush1.msra.mxu0 %v525
    %567 = vmatprep.subr.mxu0 %v530
    %568 = vmatpush1.msra.mxu0 %v529
    %569 = vmatprep.subr.mxu0 %v534
    %570 = vmatpush1.msra.mxu0 %v533
    %571 = vmatprep.subr.mxu0 %v538
    %572 = vmatpush1.msra.mxu0 %v537
    %573 = vmatprep.subr.mxu0 0.0
    %574 = vmatpush1.msra.mxu0 0.0
    %575 = vmatprep.subr.mxu0 0.0
    %576 = vmatpush1.msra.mxu0 0.0
    %577 = vmatprep.subr.mxu0 0.0
    %578 = vmatpush1.msra.mxu0 0.0
    %579 = vmatprep.subr.mxu0 0.0
    %580 = vmatpush1.msra.mxu0 0.0
    %581 = vmatprep.subr.mxu0 0.0
    %582 = vmatpush1.msra.mxu0 0.0
    %583 = vmatprep.subr.mxu0 0.0
    %584 = vmatpush1.msra.mxu0 0.0
    %585 = vmatprep.subr.mxu0 0.0
    %586 = vmatpush1.msra.mxu0 0.0
    %587 = vmatprep.subr.mxu0 0.0
    %588 = vmatpush1.msra.mxu0 0.0
    %589 = vmatprep.subr.mxu0 0.0
    %590 = vmatpush1.msra.mxu0 0.0
    %591 = vmatprep.subr.mxu0 0.0
    %592 = vmatpush1.msra.mxu0 0.0
    %593 = vmatprep.subr.mxu0 0.0
    %594 = vmatpush1.msra.mxu0 0.0
    %595 = vmatprep.subr.mxu0 0.0
    %596 = vmatpush1.msra.mxu0 0.0
    %597 = vmatprep.subr.mxu0 0.0
    %598 = vmatpush1.msra.mxu0 0.0
    %599 = vmatprep.subr.mxu0 0.0
    %600 = vmatpush1.msra.mxu0 0.0
    %601 = vmatprep.subr.mxu0 0.0
    %602 = vmatpush1.msra.mxu0 0.0
    %603 = vmatprep.subr.mxu0 0.0
    %604 = vmatpush1.msra.mxu0 0.0
    %605 = vmatprep.mubr.f32.mxu0 0.0
    %606 = vmatmul.mubr.f32.gmra.mrb[0].mxu0 0.0
    %v607 = vpop.f32.mrb[0].mxu0
    %v608 = vadd.f32 0.0, %v607
    %v609 = vpop.f32.mrb[0].mxu0
    %v610 = vadd.f32 0.0, %v609
    %611 = vdwg.mxu0
    %612 = vmatprep.subr.mxu0 %v480
    %613 = vmatpush1.msra.mxu0 %v479
    %614 = vmatprep.subr.mxu0 %v484
    %615 = vmatpush1.msra.mxu0 %v483
    %616 = vmatprep.subr.mxu0 %v488
    %617 = vmatpush1.msra.mxu0 %v487
    %618 = vmatprep.subr.mxu0 %v492
    %619 = vmatpush1.msra.mxu0 %v491
    %620 = vmatprep.subr.mxu0 %v496
    %621 = vmatpush1.msra.mxu0 %v495
    %622 = vmatprep.subr.mxu0 %v500
    %623 = vmatpush1.msra.mxu0 %v499
    %624 = vmatprep.subr.mxu0 %v504
    %625 = vmatpush1.msra.mxu0 %v503
    %626 = vmatprep.subr.mxu0 %v508
    %627 = vmatpush1.msra.mxu0 %v507
    %628 = vmatprep.subr.mxu0 %v512
    %629 = vmatpush1.msra.mxu0 %v511
    %630 = vmatprep.subr.mxu0 %v516
    %631 = vmatpush1.msra.mxu0 %v515
    %632 = vmatprep.subr.mxu0 %v520
    %633 = vmatpush1.msra.mxu0 %v519
    %634 = vmatprep.subr.mxu0 %v524
    %635 = vmatpush1.msra.mxu0 %v523
    %636 = vmatprep.subr.mxu0 %v528
    %637 = vmatpush1.msra.mxu0 %v527
    %638 = vmatprep.subr.mxu0 %v532
    %639 = vmatpush1.msra.mxu0 %v531
    %640 = vmatprep.subr.mxu0 %v536
    %641 = vmatpush1.msra.mxu0 %v535
    %642 = vmatprep.subr.mxu0 %v540
    %643 = vmatpush1.msra.mxu0 %v539
    %644 = vmatprep.subr.mxu0 0.0
    %645 = vmatpush1.msra.mxu0 0.0
    %646 = vmatprep.subr.mxu0 0.0
    %647 = vmatpush1.msra.mxu0 0.0
    %648 = vmatprep.subr.mxu0 0.0
    %649 = vmatpush1.msra.mxu0 0.0
    %650 = vmatprep.subr.mxu0 0.0
    %651 = vmatpush1.msra.mxu0 0.0
    %652 = vmatprep.subr.mxu0 0.0
    %653 = vmatpush1.msra.mxu0 0.0
    %654 = vmatprep.subr.mxu0 0.0
    %655 = vmatpush1.msra.mxu0 0.0
    %656 = vmatprep.subr.mxu0 0.0
    %657 = vmatpush1.msra.mxu0 0.0
    %658 = vmatprep.subr.mxu0 0.0
    %659 = vmatpush1.msra.mxu0 0.0
    %660 = vmatprep.subr.mxu0 0.0
    %661 = vmatpush1.msra.mxu0 0.0
    %662 = vmatprep.subr.mxu0 0.0
    %663 = vmatpush1.msra.mxu0 0.0
    %664 = vmatprep.subr.mxu0 0.0
    %665 = vmatpush1.msra.mxu0 0.0
    %666 = vmatprep.subr.mxu0 0.0
    %667 = vmatpush1.msra.mxu0 0.0
    %668 = vmatprep.subr.mxu0 0.0
    %669 = vmatpush1.msra.mxu0 0.0
    %670 = vmatprep.subr.mxu0 0.0
    %671 = vmatpush1.msra.mxu0 0.0
    %672 = vmatprep.subr.mxu0 0.0
    %673 = vmatpush1.msra.mxu0 0.0
    %674 = vmatprep.subr.mxu0 0.0
    %675 = vmatpush1.msra.mxu0 0.0
    %676 = vmatprep.mubr.f32.mxu0 0.0
    %677 = vmatmul.mubr.f32.gmra.mrb[0].mxu0 0.0
    %v678 = vpop.f32.mrb[0].mxu0
    %v679 = vadd.f32 0.0, %v678
    %v680 = vpop.f32.mrb[0].mxu0
    %v681 = vadd.f32 0.0, %v680
    %682 = vdwg.mxu0
    %v687 = vcombine.low %v608, %v610
    %v688 = vcombine.low %v679, %v681
    %v690 = vunpack.c.l.s4 1966171168
    %v691 = vunpack.c.0.s8 %v690
    %v692 = vlaneseq
    %v693 = vshrl.u32 %v692, 7
    %v694 = vsub.s32 %v691, %v693
    %v695 = vrot.slane %v687, %v694
    %v697 = vunpack.c.l.s4 1966171168
    %v698 = vunpack.c.0.s8 %v697
    %v699 = vlaneseq
    %v700 = vshrl.u32 %v699, 7
    %v701 = vsub.s32 %v698, %v700
    %v702 = vrot.slane %v688, %v701
    %v703 = vcombine.low %v695, %v702
    %v705 = vunpack.c.l.s4 1966171168
    %v706 = vunpack.c.0.s8 %v705
    %v707 = vlaneseq
    %v708 = vshrl.u32 %v707, 7
    %v709 = vsub.s32 %v706, %v708
    %v710 = vrot.slane %v703, %v709
    %v712 = vadd.f32 %v476, %v710
    %s713 = scalar_lea.vmem [#allocation2], 39
    %v714 = vld [vmem:[%s713] ss:$8 sm:$0xf]
    %v715 = vld [vmem:[#allocation13] sm:$0xff]
    %v716 = vld [vmem:[#allocation13 + $0x8] sm:$0xff]
    %v717 = vld [vmem:[#allocation13 + $0x10] sm:$0xff]
    %v718 = vld [vmem:[#allocation13 + $0x18] sm:$0xff]
    %v719 = vld [vmem:[#allocation13 + $0x20] sm:$0xff]
    %v720 = vld [vmem:[#allocation13 + $0x28] sm:$0xff]
    %v721 = vld [vmem:[#allocation13 + $0x30] sm:$0xff]
    %v722 = vld [vmem:[#allocation13 + $0x38] sm:$0xff]
    %v723 = vld [vmem:[#allocation13 + $0x40] sm:$0xff]
    %v724 = vld [vmem:[#allocation13 + $0x48] sm:$0xff]
    %v725 = vld [vmem:[#allocation13 + $0x50] sm:$0xff]
    %v726 = vld [vmem:[#allocation13 + $0x58] sm:$0xff]
    %v727 = vld [vmem:[#allocation13 + $0x60] sm:$0xff]
    %v728 = vld [vmem:[#allocation13 + $0x68] sm:$0xff]
    %v729 = vld [vmem:[#allocation13 + $0x70] sm:$0xff]
    %v730 = vld [vmem:[#allocation13 + $0x78] sm:$0xff]
    %v731 = vld [vmem:[#allocation13 + $0x80] sm:$0xff]
    %v732 = vld [vmem:[#allocation13 + $0x88] sm:$0xff]
    %v733 = vld [vmem:[#allocation13 + $0x90] sm:$0xff]
    %v734 = vld [vmem:[#allocation13 + $0x98] sm:$0xff]
    %v735 = vld [vmem:[#allocation13 + $0xa0] sm:$0xff]
    %v736 = vld [vmem:[#allocation13 + $0xa8] sm:$0xff]
    %v737 = vld [vmem:[#allocation13 + $0xb0] sm:$0xff]
    %v738 = vld [vmem:[#allocation13 + $0xb8] sm:$0xff]
    %v739 = vld [vmem:[#allocation13 + $0xc0] sm:$0xff]
    %v740 = vld [vmem:[#allocation13 + $0xc8] sm:$0xff]
    %v741 = vld [vmem:[#allocation13 + $0xd0] sm:$0xff]
    %v742 = vld [vmem:[#allocation13 + $0xd8] sm:$0xff]
    %v743 = vld [vmem:[#allocation13 + $0xe0] sm:$0xff]
    %v744 = vld [vmem:[#allocation13 + $0xe8] sm:$0xff]
    %v745 = vld [vmem:[#allocation13 + $0xf0] sm:$0xff]
    %v746 = vld [vmem:[#allocation13 + $0xf8] sm:$0xff]
    %v747 = vld [vmem:[#allocation13 + $0x100] sm:$0xff]
    %v748 = vld [vmem:[#allocation13 + $0x108] sm:$0xff]
    %v749 = vld [vmem:[#allocation13 + $0x110] sm:$0xff]
    %v750 = vld [vmem:[#allocation13 + $0x118] sm:$0xff]
    %v751 = vld [vmem:[#allocation13 + $0x120] sm:$0xff]
    %v752 = vld [vmem:[#allocation13 + $0x128] sm:$0xff]
    %v753 = vld [vmem:[#allocation13 + $0x130] sm:$0xff]
    %v754 = vld [vmem:[#allocation13 + $0x138] sm:$0xff]
    %v755 = vld [vmem:[#allocation13 + $0x140] sm:$0xff]
    %v756 = vld [vmem:[#allocation13 + $0x148] sm:$0xff]
    %v757 = vld [vmem:[#allocation13 + $0x150] sm:$0xff]
    %v758 = vld [vmem:[#allocation13 + $0x158] sm:$0xff]
    %v759 = vld [vmem:[#allocation13 + $0x160] sm:$0xff]
    %v760 = vld [vmem:[#allocation13 + $0x168] sm:$0xff]
    %v761 = vld [vmem:[#allocation13 + $0x170] sm:$0xff]
    %v762 = vld [vmem:[#allocation13 + $0x178] sm:$0xff]
    %v763 = vld [vmem:[#allocation13 + $0x180] sm:$0xff]
    %v764 = vld [vmem:[#allocation13 + $0x188] sm:$0xff]
    %v765 = vld [vmem:[#allocation13 + $0x190] sm:$0xff]
    %v766 = vld [vmem:[#allocation13 + $0x198] sm:$0xff]
    %v767 = vld [vmem:[#allocation13 + $0x1a0] sm:$0xff]
    %v768 = vld [vmem:[#allocation13 + $0x1a8] sm:$0xff]
    %v769 = vld [vmem:[#allocation13 + $0x1b0] sm:$0xff]
    %v770 = vld [vmem:[#allocation13 + $0x1b8] sm:$0xff]
    %v771 = vld [vmem:[#allocation13 + $0x1c0] sm:$0xff]
    %v772 = vld [vmem:[#allocation13 + $0x1c8] sm:$0xff]
    %v773 = vld [vmem:[#allocation13 + $0x1d0] sm:$0xff]
    %v774 = vld [vmem:[#allocation13 + $0x1d8] sm:$0xff]
    %v775 = vld [vmem:[#allocation13 + $0x1e0] sm:$0xff]
    %v776 = vld [vmem:[#allocation13 + $0x1e8] sm:$0xff]
    %v777 = vld [vmem:[#allocation13 + $0x1f0] sm:$0xff]
    %v778 = vld [vmem:[#allocation13 + $0x1f8] sm:$0xff]
    %779 = vmatprep.subr.mxu0 %v716
    %780 = vmatpush1.msra.mxu0 %v715
    %781 = vmatprep.subr.mxu0 %v720
    %782 = vmatpush1.msra.mxu0 %v719
    %783 = vmatprep.subr.mxu0 %v724
    %784 = vmatpush1.msra.mxu0 %v723
    %785 = vmatprep.subr.mxu0 %v728
    %786 = vmatpush1.msra.mxu0 %v727
    %787 = vmatprep.subr.mxu0 %v732
    %788 = vmatpush1.msra.mxu0 %v731
    %789 = vmatprep.subr.mxu0 %v736
    %790 = vmatpush1.msra.mxu0 %v735
    %791 = vmatprep.subr.mxu0 %v740
    %792 = vmatpush1.msra.mxu0 %v739
    %793 = vmatprep.subr.mxu0 %v744
    %794 = vmatpush1.msra.mxu0 %v743
    %795 = vmatprep.subr.mxu0 %v748
    %796 = vmatpush1.msra.mxu0 %v747
    %797 = vmatprep.subr.mxu0 %v752
    %798 = vmatpush1.msra.mxu0 %v751
    %799 = vmatprep.subr.mxu0 %v756
    %800 = vmatpush1.msra.mxu0 %v755
    %801 = vmatprep.subr.mxu0 %v760
    %802 = vmatpush1.msra.mxu0 %v759
    %803 = vmatprep.subr.mxu0 %v764
    %804 = vmatpush1.msra.mxu0 %v763
    %805 = vmatprep.subr.mxu0 %v768
    %806 = vmatpush1.msra.mxu0 %v767
    %807 = vmatprep.subr.mxu0 %v772
    %808 = vmatpush1.msra.mxu0 %v771
    %809 = vmatprep.subr.mxu0 %v776
    %810 = vmatpush1.msra.mxu0 %v775
    %811 = vmatprep.subr.mxu0 0.0
    %812 = vmatpush1.msra.mxu0 0.0
    %813 = vmatprep.subr.mxu0 0.0
    %814 = vmatpush1.msra.mxu0 0.0
    %815 = vmatprep.subr.mxu0 0.0
    %816 = vmatpush1.msra.mxu0 0.0
    %817 = vmatprep.subr.mxu0 0.0
    %818 = vmatpush1.msra.mxu0 0.0
    %819 = vmatprep.subr.mxu0 0.0
    %820 = vmatpush1.msra.mxu0 0.0
    %821 = vmatprep.subr.mxu0 0.0
    %822 = vmatpush1.msra.mxu0 0.0
    %823 = vmatprep.subr.mxu0 0.0
    %824 = vmatpush1.msra.mxu0 0.0
    %825 = vmatprep.subr.mxu0 0.0
    %826 = vmatpush1.msra.mxu0 0.0
    %827 = vmatprep.subr.mxu0 0.0
    %828 = vmatpush1.msra.mxu0 0.0
    %829 = vmatprep.subr.mxu0 0.0
    %830 = vmatpush1.msra.mxu0 0.0
    %831 = vmatprep.subr.mxu0 0.0
    %832 = vmatpush1.msra.mxu0 0.0
    %833 = vmatprep.subr.mxu0 0.0
    %834 = vmatpush1.msra.mxu0 0.0
    %835 = vmatprep.subr.mxu0 0.0
    %836 = vmatpush1.msra.mxu0 0.0
    %837 = vmatprep.subr.mxu0 0.0
    %838 = vmatpush1.msra.mxu0 0.0
    %839 = vmatprep.subr.mxu0 0.0
    %840 = vmatpush1.msra.mxu0 0.0
    %841 = vmatprep.subr.mxu0 0.0
    %842 = vmatpush1.msra.mxu0 0.0
    %843 = vmatprep.mubr.f32.mxu0 0.0
    %844 = vmatmul.mubr.f32.gmra.mrb[0].mxu0 0.0
    %v845 = vpop.f32.mrb[0].mxu0
    %v846 = vadd.f32 0.0, %v845
    %v847 = vpop.f32.mrb[0].mxu0
    %v848 = vadd.f32 0.0, %v847
    %849 = vdwg.mxu0
    %850 = vmatprep.subr.mxu0 %v718
    %851 = vmatpush1.msra.mxu0 %v717
    %852 = vmatprep.subr.mxu0 %v722
    %853 = vmatpush1.msra.mxu0 %v721
    %854 = vmatprep.subr.mxu0 %v726
    %855 = vmatpush1.msra.mxu0 %v725
    %856 = vmatprep.subr.mxu0 %v730
    %857 = vmatpush1.msra.mxu0 %v729
    %858 = vmatprep.subr.mxu0 %v734
    %859 = vmatpush1.msra.mxu0 %v733
    %860 = vmatprep.subr.mxu0 %v738
    %861 = vmatpush1.msra.mxu0 %v737
    %862 = vmatprep.subr.mxu0 %v742
    %863 = vmatpush1.msra.mxu0 %v741
    %864 = vmatprep.subr.mxu0 %v746
    %865 = vmatpush1.msra.mxu0 %v745
    %866 = vmatprep.subr.mxu0 %v750
    %867 = vmatpush1.msra.mxu0 %v749
    %868 = vmatprep.subr.mxu0 %v754
    %869 = vmatpush1.msra.mxu0 %v753
    %870 = vmatprep.subr.mxu0 %v758
    %871 = vmatpush1.msra.mxu0 %v757
    %872 = vmatprep.subr.mxu0 %v762
    %873 = vmatpush1.msra.mxu0 %v761
    %874 = vmatprep.subr.mxu0 %v766
    %875 = vmatpush1.msra.mxu0 %v765
    %876 = vmatprep.subr.mxu0 %v770
    %877 = vmatpush1.msra.mxu0 %v769
    %878 = vmatprep.subr.mxu0 %v774
    %879 = vmatpush1.msra.mxu0 %v773
    %880 = vmatprep.subr.mxu0 %v778
    %881 = vmatpush1.msra.mxu0 %v777
    %882 = vmatprep.subr.mxu0 0.0
    %883 = vmatpush1.msra.mxu0 0.0
    %884 = vmatprep.subr.mxu0 0.0
    %885 = vmatpush1.msra.mxu0 0.0
    %886 = vmatprep.subr.mxu0 0.0
    %887 = vmatpush1.msra.mxu0 0.0
    %888 = vmatprep.subr.mxu0 0.0
    %889 = vmatpush1.msra.mxu0 0.0
    %890 = vmatprep.subr.mxu0 0.0
    %891 = vmatpush1.msra.mxu0 0.0
    %892 = vmatprep.subr.mxu0 0.0
    %893 = vmatpush1.msra.mxu0 0.0
    %894 = vmatprep.subr.mxu0 0.0
    %895 = vmatpush1.msra.mxu0 0.0
    %896 = vmatprep.subr.mxu0 0.0
    %897 = vmatpush1.msra.mxu0 0.0
    %898 = vmatprep.subr.mxu0 0.0
    %899 = vmatpush1.msra.mxu0 0.0
    %900 = vmatprep.subr.mxu0 0.0
    %901 = vmatpush1.msra.mxu0 0.0
    %902 = vmatprep.subr.mxu0 0.0
    %903 = vmatpush1.msra.mxu0 0.0
    %904 = vmatprep.subr.mxu0 0.0
    %905 = vmatpush1.msra.mxu0 0.0
    %906 = vmatprep.subr.mxu0 0.0
    %907 = vmatpush1.msra.mxu0 0.0
    %908 = vmatprep.subr.mxu0 0.0
    %909 = vmatpush1.msra.mxu0 0.0
    %910 = vmatprep.subr.mxu0 0.0
    %911 = vmatpush1.msra.mxu0 0.0
    %912 = vmatprep.subr.mxu0 0.0
    %913 = vmatpush1.msra.mxu0 0.0
    %914 = vmatprep.mubr.f32.mxu0 0.0
    %915 = vmatmul.mubr.f32.gmra.mrb[0].mxu0 0.0
    %v916 = vpop.f32.mrb[0].mxu0
    %v917 = vadd.f32 0.0, %v916
    %v918 = vpop.f32.mrb[0].mxu0
    %v919 = vadd.f32 0.0, %v918
    %920 = vdwg.mxu0
    %v925 = vcombine.low %v846, %v848
    %v926 = vcombine.low %v917, %v919
    %v928 = vunpack.c.l.s4 1966171168
    %v929 = vunpack.c.0.s8 %v928
    %v930 = vlaneseq
    %v931 = vshrl.u32 %v930, 7
    %v932 = vsub.s32 %v929, %v931
    %v933 = vrot.slane %v925, %v932
    %v935 = vunpack.c.l.s4 1966171168
    %v936 = vunpack.c.0.s8 %v935
    %v937 = vlaneseq
    %v938 = vshrl.u32 %v937, 7
    %v939 = vsub.s32 %v936, %v938
    %v940 = vrot.slane %v926, %v939
    %v941 = vcombine.low %v933, %v940
    %v943 = vunpack.c.l.s4 1966171168
    %v944 = vunpack.c.0.s8 %v943
    %v945 = vlaneseq
    %v946 = vshrl.u32 %v945, 7
    %v947 = vsub.s32 %v944, %v946
    %v948 = vrot.slane %v941, %v947
    %v950 = vadd.f32 %v714, %v948
    %v951 = vxor.u32 %v712, 2147483648
    %v952 = vmul.f32 %v951, 1.442695
    %v953 = vpow.pop %v952
    %v954 = vadd.f32 %v953, 1.0
    %v955 = vrcp.pop %v954
    %v956 = vmul.f32 1.0, %v955
    %v958 = vrot.slane %v712, 1
    %v960 = vxor.u32 %v958, 2147483648
    %v961 = vmul.f32 %v960, 1.442695
    %v962 = vpow.pop %v961
    %v963 = vadd.f32 %v962, 1.0
    %v964 = vrcp.pop %v963
    %v965 = vmul.f32 1.0, %v964
    %v966 = vrot.slane %v712, 2
    %v968 = vtanh.pop %v966
    %v969 = vrot.slane %v712, 3
    %v971 = vxor.u32 %v969, 2147483648
    %v972 = vmul.f32 %v971, 1.442695
    %v973 = vpow.pop %v972
    %v974 = vadd.f32 %v973, 1.0
    %v975 = vrcp.pop %v974
    %v976 = vmul.f32 1.0, %v975
    %v977 = vmul.f32 %v965, 0.0
    %v978 = vmul.f32 %v956, %v968
    %v979 = vadd.f32 %v977, %v978
    %v980 = vtanh.pop %v979
    %v981 = vmul.f32 %v976, %v980
    %v982 = vxor.u32 %v950, 2147483648
    %v983 = vmul.f32 %v982, 1.442695
    %v984 = vpow.pop %v983
    %v985 = vadd.f32 %v984, 1.0
    %v986 = vrcp.pop %v985
    %v987 = vmul.f32 1.0, %v986
    %v989 = vrot.slane %v950, 1
    %v991 = vxor.u32 %v989, 2147483648
    %v992 = vmul.f32 %v991, 1.442695
    %v993 = vpow.pop %v992
    %v994 = vadd.f32 %v993, 1.0
    %v995 = vrcp.pop %v994
    %v996 = vmul.f32 1.0, %v995
    %v997 = vrot.slane %v950, 2
    %v999 = vtanh.pop %v997
    %v1000 = vrot.slane %v950, 3
    %v1002 = vxor.u32 %v1000, 2147483648
    %v1003 = vmul.f32 %v1002, 1.442695
    %v1004 = vpow.pop %v1003
    %v1005 = vadd.f32 %v1004, 1.0
    %v1006 = vrcp.pop %v1005
    %v1007 = vmul.f32 1.0, %v1006
    %v1008 = vmul.f32 %v996, 0.0
    %v1009 = vmul.f32 %v987, %v999
    %v1010 = vadd.f32 %v1008, %v1009
    %v1011 = vtanh.pop %v1010
    %v1012 = vmul.f32 %v1007, %v1011
    %1013 = vst [vmem:[#allocation3] sm:$0x1] %v981
    %1014 = vst [vmem:[#allocation4 + $0x7] sm:$0x1] %v1012
    %s1015 = scalar_lea.vmem [#allocation2], 1
    %v1016 = vld [vmem:[%s1015] ss:$8 sm:$0xf]
    %v1017 = vld [vmem:[#allocation11] sm:$0xff]
    %v1018 = vld [vmem:[#allocation11 + $0x8] sm:$0xff]
    %v1019 = vld [vmem:[#allocation11 + $0x10] sm:$0xff]
    %v1020 = vld [vmem:[#allocation11 + $0x18] sm:$0xff]
    %v1021 = vld [vmem:[#allocation11 + $0x20] sm:$0xff]
    %v1022 = vld [vmem:[#allocation11 + $0x28] sm:$0xff]
    %v1023 = vld [vmem:[#allocation11 + $0x30] sm:$0xff]
    %v1024 = vld [vmem:[#allocation11 + $0x38] sm:$0xff]
    %v1025 = vld [vmem:[#allocation11 + $0x40] sm:$0xff]
    %v1026 = vld [vmem:[#allocation11 + $0x48] sm:$0xff]
    %v1027 = vld [vmem:[#allocation11 + $0x50] sm:$0xff]
    %v1028 = vld [vmem:[#allocation11 + $0x58] sm:$0xff]
    %v1029 = vld [vmem:[#allocation11 + $0x60] sm:$0xff]
    %v1030 = vld [vmem:[#allocation11 + $0x68] sm:$0xff]
    %v1031 = vld [vmem:[#allocation11 + $0x70] sm:$0xff]
    %v1032 = vld [vmem:[#allocation11 + $0x78] sm:$0xff]
    %v1033 = vld [vmem:[#allocation11 + $0x80] sm:$0xff]
    %v1034 = vld [vmem:[#allocation11 + $0x88] sm:$0xff]
    %v1035 = vld [vmem:[#allocation11 + $0x90] sm:$0xff]
    %v1036 = vld [vmem:[#allocation11 + $0x98] sm:$0xff]
    %v1037 = vld [vmem:[#allocation11 + $0xa0] sm:$0xff]
    %v1038 = vld [vmem:[#allocation11 + $0xa8] sm:$0xff]
    %v1039 = vld [vmem:[#allocation11 + $0xb0] sm:$0xff]
    %v1040 = vld [vmem:[#allocation11 + $0xb8] sm:$0xff]
    %v1041 = vld [vmem:[#allocation11 + $0xc0] sm:$0xff]
    %v1042 = vld [vmem:[#allocation11 + $0xc8] sm:$0xff]
    %v1043 = vld [vmem:[#allocation11 + $0xd0] sm:$0xff]
    %v1044 = vld [vmem:[#allocation11 + $0xd8] sm:$0xff]
    %v1045 = vld [vmem:[#allocation11 + $0xe0] sm:$0xff]
    %v1046 = vld [vmem:[#allocation11 + $0xe8] sm:$0xff]
    %v1047 = vld [vmem:[#allocation11 + $0xf0] sm:$0xff]
    %v1048 = vld [vmem:[#allocation11 + $0xf8] sm:$0xff]
    %v1049 = vld [vmem:[#allocation11 + $0x100] sm:$0xff]
    %v1050 = vld [vmem:[#allocation11 + $0x108] sm:$0xff]
    %v1051 = vld [vmem:[#allocation11 + $0x110] sm:$0xff]
    %v1052 = vld [vmem:[#allocation11 + $0x118] sm:$0xff]
    %v1053 = vld [vmem:[#allocation11 + $0x120] sm:$0xff]
    %v1054 = vld [vmem:[#allocation11 + $0x128] sm:$0xff]
    %v1055 = vld [vmem:[#allocation11 + $0x130] sm:$0xff]
    %v1056 = vld [vmem:[#allocation11 + $0x138] sm:$0xff]
    %v1057 = vld [vmem:[#allocation11 + $0x140] sm:$0xff]
    %v1058 = vld [vmem:[#allocation11 + $0x148] sm:$0xff]
    %v1059 = vld [vmem:[#allocation11 + $0x150] sm:$0xff]
    %v1060 = vld [vmem:[#allocation11 + $0x158] sm:$0xff]
    %v1061 = vld [vmem:[#allocation11 + $0x160] sm:$0xff]
    %v1062 = vld [vmem:[#allocation11 + $0x168] sm:$0xff]
    %v1063 = vld [vmem:[#allocation11 + $0x170] sm:$0xff]
    %v1064 = vld [vmem:[#allocation11 + $0x178] sm:$0xff]
    %v1065 = vld [vmem:[#allocation11 + $0x180] sm:$0xff]
    %v1066 = vld [vmem:[#allocation11 + $0x188] sm:$0xff]
    %v1067 = vld [vmem:[#allocation11 + $0x190] sm:$0xff]
    %v1068 = vld [vmem:[#allocation11 + $0x198] sm:$0xff]
    %v1069 = vld [vmem:[#allocation11 + $0x1a0] sm:$0xff]
    %v1070 = vld [vmem:[#allocation11 + $0x1a8] sm:$0xff]
    %v1071 = vld [vmem:[#allocation11 + $0x1b0] sm:$0xff]
    %v1072 = vld [vmem:[#allocation11 + $0x1b8] sm:$0xff]
    %v1073 = vld [vmem:[#allocation11 + $0x1c0] sm:$0xff]
    %v1074 = vld [vmem:[#allocation11 + $0x1c8] sm:$0xff]
    %v1075 = vld [vmem:[#allocation11 + $0x1d0] sm:$0xff]
    %v1076 = vld [vmem:[#allocation11 + $0x1d8] sm:$0xff]
    %v1077 = vld [vmem:[#allocation11 + $0x1e0] sm:$0xff]
    %v1078 = vld [vmem:[#allocation11 + $0x1e8] sm:$0xff]
    %v1079 = vld [vmem:[#allocation11 + $0x1f0] sm:$0xff]
    %v1080 = vld [vmem:[#allocation11 + $0x1f8] sm:$0xff]
    %1081 = vmatprep.subr.mxu0 %v1018
    %1082 = vmatpush1.msra.mxu0 %v1017
    %1083 = vmatprep.subr.mxu0 %v1022
    %1084 = vmatpush1.msra.mxu0 %v1021
    %1085 = vmatprep.subr.mxu0 %v1026
    %1086 = vmatpush1.msra.mxu0 %v1025
    %1087 = vmatprep.subr.mxu0 %v1030
    %1088 = vmatpush1.msra.mxu0 %v1029
    %1089 = vmatprep.subr.mxu0 %v1034
    %1090 = vmatpush1.msra.mxu0 %v1033
    %1091 = vmatprep.subr.mxu0 %v1038
    %1092 = vmatpush1.msra.mxu0 %v1037
    %1093 = vmatprep.subr.mxu0 %v1042
    %1094 = vmatpush1.msra.mxu0 %v1041
    %1095 = vmatprep.subr.mxu0 %v1046
    %1096 = vmatpush1.msra.mxu0 %v1045
    %1097 = vmatprep.subr.mxu0 %v1050
    %1098 = vmatpush1.msra.mxu0 %v1049
    %1099 = vmatprep.subr.mxu0 %v1054
    %1100 = vmatpush1.msra.mxu0 %v1053
    %1101 = vmatprep.subr.mxu0 %v1058
    %1102 = vmatpush1.msra.mxu0 %v1057
    %1103 = vmatprep.subr.mxu0 %v1062
    %1104 = vmatpush1.msra.mxu0 %v1061
    %1105 = vmatprep.subr.mxu0 %v1066
    %1106 = vmatpush1.msra.mxu0 %v1065
    %1107 = vmatprep.subr.mxu0 %v1070
    %1108 = vmatpush1.msra.mxu0 %v1069
    %1109 = vmatprep.subr.mxu0 %v1074
    %1110 = vmatpush1.msra.mxu0 %v1073
    %1111 = vmatprep.subr.mxu0 %v1078
    %1112 = vmatpush1.msra.mxu0 %v1077
    %1113 = vmatprep.subr.mxu0 0.0
    %1114 = vmatpush1.msra.mxu0 0.0
    %1115 = vmatprep.subr.mxu0 0.0
    %1116 = vmatpush1.msra.mxu0 0.0
    %1117 = vmatprep.subr.mxu0 0.0
    %1118 = vmatpush1.msra.mxu0 0.0
    %1119 = vmatprep.subr.mxu0 0.0
    %1120 = vmatpush1.msra.mxu0 0.0
    %1121 = vmatprep.subr.mxu0 0.0
    %1122 = vmatpush1.msra.mxu0 0.0
    %1123 = vmatprep.subr.mxu0 0.0
    %1124 = vmatpush1.msra.mxu0 0.0
    %1125 = vmatprep.subr.mxu0 0.0
    %1126 = vmatpush1.msra.mxu0 0.0
    %1127 = vmatprep.subr.mxu0 0.0
    %1128 = vmatpush1.msra.mxu0 0.0
    %1129 = vmatprep.subr.mxu0 0.0
    %1130 = vmatpush1.msra.mxu0 0.0
    %1131 = vmatprep.subr.mxu0 0.0
    %1132 = vmatpush1.msra.mxu0 0.0
    %1133 = vmatprep.subr.mxu0 0.0
    %1134 = vmatpush1.msra.mxu0 0.0
    %1135 = vmatprep.subr.mxu0 0.0
    %1136 = vmatpush1.msra.mxu0 0.0
    %1137 = vmatprep.subr.mxu0 0.0
    %1138 = vmatpush1.msra.mxu0 0.0
    %1139 = vmatprep.subr.mxu0 0.0
    %1140 = vmatpush1.msra.mxu0 0.0
    %1141 = vmatprep.subr.mxu0 0.0
    %1142 = vmatpush1.msra.mxu0 0.0
    %1143 = vmatprep.subr.mxu0 0.0
    %1144 = vmatpush1.msra.mxu0 0.0
    %1145 = vmatprep.mubr.f32.mxu0 0.0
    %1146 = vmatmul.mubr.f32.gmra.mrb[0].mxu0 %v981
    %v1147 = vpop.f32.mrb[0].mxu0
    %v1148 = vadd.f32 0.0, %v1147
    %v1149 = vpop.f32.mrb[0].mxu0
    %v1150 = vadd.f32 0.0, %v1149
    %1151 = vdwg.mxu0
    %1152 = vmatprep.subr.mxu0 %v1020
    %1153 = vmatpush1.msra.mxu0 %v1019
    %1154 = vmatprep.subr.mxu0 %v1024
    %1155 = vmatpush1.msra.mxu0 %v1023
    %1156 = vmatprep.subr.mxu0 %v1028
    %1157 = vmatpush1.msra.mxu0 %v1027
    %1158 = vmatprep.subr.mxu0 %v1032
    %1159 = vmatpush1.msra.mxu0 %v1031
    %1160 = vmatprep.subr.mxu0 %v1036
    %1161 = vmatpush1.msra.mxu0 %v1035
    %1162 = vmatprep.subr.mxu0 %v1040
    %1163 = vmatpush1.msra.mxu0 %v1039
    %1164 = vmatprep.subr.mxu0 %v1044
    %1165 = vmatpush1.msra.mxu0 %v1043
    %1166 = vmatprep.subr.mxu0 %v1048
    %1167 = vmatpush1.msra.mxu0 %v1047
    %1168 = vmatprep.subr.mxu0 %v1052
    %1169 = vmatpush1.msra.mxu0 %v1051
    %1170 = vmatprep.subr.mxu0 %v1056
    %1171 = vmatpush1.msra.mxu0 %v1055
    %1172 = vmatprep.subr.mxu0 %v1060
    %1173 = vmatpush1.msra.mxu0 %v1059
    %1174 = vmatprep.subr.mxu0 %v1064
    %1175 = vmatpush1.msra.mxu0 %v1063
    %1176 = vmatprep.subr.mxu0 %v1068
    %1177 = vmatpush1.msra.mxu0 %v1067
    %1178 = vmatprep.subr.mxu0 %v1072
    %1179 = vmatpush1.msra.mxu0 %v1071
    %1180 = vmatprep.subr.mxu0 %v1076
    %1181 = vmatpush1.msra.mxu0 %v1075
    %1182 = vmatprep.subr.mxu0 %v1080
    %1183 = vmatpush1.msra.mxu0 %v1079
    %1184 = vmatprep.subr.mxu0 0.0
    %1185 = vmatpush1.msra.mxu0 0.0
    %1186 = vmatprep.subr.mxu0 0.0
    %1187 = vmatpush1.msra.mxu0 0.0
    %1188 = vmatprep.subr.mxu0 0.0
    %1189 = vmatpush1.msra.mxu0 0.0
    %1190 = vmatprep.subr.mxu0 0.0
    %1191 = vmatpush1.msra.mxu0 0.0
    %1192 = vmatprep.subr.mxu0 0.0
    %1193 = vmatpush1.msra.mxu0 0.0
    %1194 = vmatprep.subr.mxu0 0.0
    %1195 = vmatpush1.msra.mxu0 0.0
    %1196 = vmatprep.subr.mxu0 0.0
    %1197 = vmatpush1.msra.mxu0 0.0
    %1198 = vmatprep.subr.mxu0 0.0
    %1199 = vmatpush1.msra.mxu0 0.0
    %1200 = vmatprep.subr.mxu0 0.0
    %1201 = vmatpush1.msra.mxu0 0.0
    %1202 = vmatprep.subr.mxu0 0.0
    %1203 = vmatpush1.msra.mxu0 0.0
    %1204 = vmatprep.subr.mxu0 0.0
    %1205 = vmatpush1.msra.mxu0 0.0
    %1206 = vmatprep.subr.mxu0 0.0
    %1207 = vmatpush1.msra.mxu0 0.0
    %1208 = vmatprep.subr.mxu0 0.0
    %1209 = vmatpush1.msra.mxu0 0.0
    %1210 = vmatprep.subr.mxu0 0.0
    %1211 = vmatpush1.msra.mxu0 0.0
    %1212 = vmatprep.subr.mxu0 0.0
    %1213 = vmatpush1.msra.mxu0 0.0
    %1214 = vmatprep.subr.mxu0 0.0
    %1215 = vmatpush1.msra.mxu0 0.0
    %1216 = vmatprep.mubr.f32.mxu0 0.0
    %1217 = vmatmul.mubr.f32.gmra.mrb[0].mxu0 %v981
    %v1218 = vpop.f32.mrb[0].mxu0
    %v1219 = vadd.f32 0.0, %v1218
    %v1220 = vpop.f32.mrb[0].mxu0
    %v1221 = vadd.f32 0.0, %v1220
    %1222 = vdwg.mxu0
    %v1227 = vcombine.low %v1148, %v1150
    %v1228 = vcombine.low %v1219, %v1221
    %v1230 = vunpack.c.l.s4 1966171168
    %v1231 = vunpack.c.0.s8 %v1230
    %v1232 = vlaneseq
    %v1233 = vshrl.u32 %v1232, 7
    %v1234 = vsub.s32 %v1231, %v1233
    %v1235 = vrot.slane %v1227, %v1234
    %v1237 = vunpack.c.l.s4 1966171168
    %v1238 = vunpack.c.0.s8 %v1237
    %v1239 = vlaneseq
    %v1240 = vshrl.u32 %v1239, 7
    %v1241 = vsub.s32 %v1238, %v1240
    %v1242 = vrot.slane %v1228, %v1241
    %v1243 = vcombine.low %v1235, %v1242
    %v1245 = vunpack.c.l.s4 1966171168
    %v1246 = vunpack.c.0.s8 %v1245
    %v1247 = vlaneseq
    %v1248 = vshrl.u32 %v1247, 7
    %v1249 = vsub.s32 %v1246, %v1248
    %v1250 = vrot.slane %v1243, %v1249
    %v1252 = vadd.f32 %v1016, %v1250
    %s1253 = scalar_lea.vmem [#allocation2], 38
    %v1254 = vld [vmem:[%s1253] ss:$8 sm:$0xf]
    %v1255 = vld [vmem:[#allocation13] sm:$0xff]
    %v1256 = vld [vmem:[#allocation13 + $0x8] sm:$0xff]
    %v1257 = vld [vmem:[#allocation13 + $0x10] sm:$0xff]
    %v1258 = vld [vmem:[#allocation13 + $0x18] sm:$0xff]
    %v1259 = vld [vmem:[#allocation13 + $0x20] sm:$0xff]
    %v1260 = vld [vmem:[#allocation13 + $0x28] sm:$0xff]
    %v1261 = vld [vmem:[#allocation13 + $0x30] sm:$0xff]
    %v1262 = vld [vmem:[#allocation13 + $0x38] sm:$0xff]
    %v1263 = vld [vmem:[#allocation13 + $0x40] sm:$0xff]
    %v1264 = vld [vmem:[#allocation13 + $0x48] sm:$0xff]
    %v1265 = vld [vmem:[#allocation13 + $0x50] sm:$0xff]
    %v1266 = vld [vmem:[#allocation13 + $0x58] sm:$0xff]
    %v1267 = vld [vmem:[#allocation13 + $0x60] sm:$0xff]
    %v1268 = vld [vmem:[#allocation13 + $0x68] sm:$0xff]
    %v1269 = vld [vmem:[#allocation13 + $0x70] sm:$0xff]
    %v1270 = vld [vmem:[#allocation13 + $0x78] sm:$0xff]
    %v1271 = vld [vmem:[#allocation13 + $0x80] sm:$0xff]
    %v1272 = vld [vmem:[#allocation13 + $0x88] sm:$0xff]
    %v1273 = vld [vmem:[#allocation13 + $0x90] sm:$0xff]
    %v1274 = vld [vmem:[#allocation13 + $0x98] sm:$0xff]
    %v1275 = vld [vmem:[#allocation13 + $0xa0] sm:$0xff]
    %v1276 = vld [vmem:[#allocation13 + $0xa8] sm:$0xff]
    %v1277 = vld [vmem:[#allocation13 + $0xb0] sm:$0xff]
    %v1278 = vld [vmem:[#allocation13 + $0xb8] sm:$0xff]
    %v1279 = vld [vmem:[#allocation13 + $0xc0] sm:$0xff]
    %v1280 = vld [vmem:[#allocation13 + $0xc8] sm:$0xff]
    %v1281 = vld [vmem:[#allocation13 + $0xd0] sm:$0xff]
    %v1282 = vld [vmem:[#allocation13 + $0xd8] sm:$0xff]
    %v1283 = vld [vmem:[#allocation13 + $0xe0] sm:$0xff]
    %v1284 = vld [vmem:[#allocation13 + $0xe8] sm:$0xff]
    %v1285 = vld [vmem:[#allocation13 + $0xf0] sm:$0xff]
    %v1286 = vld [vmem:[#allocation13 + $0xf8] sm:$0xff]
    %v1287 = vld [vmem:[#allocation13 + $0x100] sm:$0xff]
    %v1288 = vld [vmem:[#allocation13 + $0x108] sm:$0xff]
    %v1289 = vld [vmem:[#allocation13 + $0x110] sm:$0xff]
    %v1290 = vld [vmem:[#allocation13 + $0x118] sm:$0xff]
    %v1291 = vld [vmem:[#allocation13 + $0x120] sm:$0xff]
    %v1292 = vld [vmem:[#allocation13 + $0x128] sm:$0xff]
    %v1293 = vld [vmem:[#allocation13 + $0x130] sm:$0xff]
    %v1294 = vld [vmem:[#allocation13 + $0x138] sm:$0xff]
    %v1295 = vld [vmem:[#allocation13 + $0x140] sm:$0xff]
    %v1296 = vld [vmem:[#allocation13 + $0x148] sm:$0xff]
    %v1297 = vld [vmem:[#allocation13 + $0x150] sm:$0xff]
    %v1298 = vld [vmem:[#allocation13 + $0x158] sm:$0xff]
    %v1299 = vld [vmem:[#allocation13 + $0x160] sm:$0xff]
    %v1300 = vld [vmem:[#allocation13 + $0x168] sm:$0xff]
    %v1301 = vld [vmem:[#allocation13 + $0x170] sm:$0xff]
    %v1302 = vld [vmem:[#allocation13 + $0x178] sm:$0xff]
    %v1303 = vld [vmem:[#allocation13 + $0x180] sm:$0xff]
    %v1304 = vld [vmem:[#allocation13 + $0x188] sm:$0xff]
    %v1305 = vld [vmem:[#allocation13 + $0x190] sm:$0xff]
    %v1306 = vld [vmem:[#allocation13 + $0x198] sm:$0xff]
    %v1307 = vld [vmem:[#allocation13 + $0x1a0] sm:$0xff]
    %v1308 = vld [vmem:[#allocation13 + $0x1a8] sm:$0xff]
    %v1309 = vld [vmem:[#allocation13 + $0x1b0] sm:$0xff]
    %v1310 = vld [vmem:[#allocation13 + $0x1b8] sm:$0xff]
    %v1311 = vld [vmem:[#allocation13 + $0x1c0] sm:$0xff]
    %v1312 = vld [vmem:[#allocation13 + $0x1c8] sm:$0xff]
    %v1313 = vld [vmem:[#allocation13 + $0x1d0] sm:$0xff]
    %v1314 = vld [vmem:[#allocation13 + $0x1d8] sm:$0xff]
    %v1315 = vld [vmem:[#allocation13 + $0x1e0] sm:$0xff]
    %v1316 = vld [vmem:[#allocation13 + $0x1e8] sm:$0xff]
    %v1317 = vld [vmem:[#allocation13 + $0x1f0] sm:$0xff]
    %v1318 = vld [vmem:[#allocation13 + $0x1f8] sm:$0xff]
    %1319 = vmatprep.subr.mxu0 %v1256
    %1320 = vmatpush1.msra.mxu0 %v1255
    %1321 = vmatprep.subr.mxu0 %v1260
    %1322 = vmatpush1.msra.mxu0 %v1259
    %1323 = vmatprep.subr.mxu0 %v1264
    %1324 = vmatpush1.msra.mxu0 %v1263
    %1325 = vmatprep.subr.mxu0 %v1268
    %1326 = vmatpush1.msra.mxu0 %v1267
    %1327 = vmatprep.subr.mxu0 %v1272
    %1328 = vmatpush1.msra.mxu0 %v1271
    %1329 = vmatprep.subr.mxu0 %v1276
    %1330 = vmatpush1.msra.mxu0 %v1275
    %1331 = vmatprep.subr.mxu0 %v1280
    %1332 = vmatpush1.msra.mxu0 %v1279
    %1333 = vmatprep.subr.mxu0 %v1284
    %1334 = vmatpush1.msra.mxu0 %v1283
    %1335 = vmatprep.subr.mxu0 %v1288
    %1336 = vmatpush1.msra.mxu0 %v1287
    %1337 = vmatprep.subr.mxu0 %v1292
    %1338 = vmatpush1.msra.mxu0 %v1291
    %1339 = vmatprep.subr.mxu0 %v1296
    %1340 = vmatpush1.msra.mxu0 %v1295
    %1341 = vmatprep.subr.mxu0 %v1300
    %1342 = vmatpush1.msra.mxu0 %v1299
    %1343 = vmatprep.subr.mxu0 %v1304
    %1344 = vmatpush1.msra.mxu0 %v1303
    %1345 = vmatprep.subr.mxu0 %v1308
    %1346 = vmatpush1.msra.mxu0 %v1307
    %1347 = vmatprep.subr.mxu0 %v1312
    %1348 = vmatpush1.msra.mxu0 %v1311
    %1349 = vmatprep.subr.mxu0 %v1316
    %1350 = vmatpush1.msra.mxu0 %v1315
    %1351 = vmatprep.subr.mxu0 0.0
    %1352 = vmatpush1.msra.mxu0 0.0
    %1353 = vmatprep.subr.mxu0 0.0
    %1354 = vmatpush1.msra.mxu0 0.0
    %1355 = vmatprep.subr.mxu0 0.0
    %1356 = vmatpush1.msra.mxu0 0.0
    %1357 = vmatprep.subr.mxu0 0.0
    %1358 = vmatpush1.msra.mxu0 0.0
    %1359 = vmatprep.subr.mxu0 0.0
    %1360 = vmatpush1.msra.mxu0 0.0
    %1361 = vmatprep.subr.mxu0 0.0
    %1362 = vmatpush1.msra.mxu0 0.0
    %1363 = vmatprep.subr.mxu0 0.0
    %1364 = vmatpush1.msra.mxu0 0.0
    %1365 = vmatprep.subr.mxu0 0.0
    %1366 = vmatpush1.msra.mxu0 0.0
    %1367 = vmatprep.subr.mxu0 0.0
    %1368 = vmatpush1.msra.mxu0 0.0
    %1369 = vmatprep.subr.mxu0 0.0
    %1370 = vmatpush1.msra.mxu0 0.0
    %1371 = vmatprep.subr.mxu0 0.0
    %1372 = vmatpush1.msra.mxu0 0.0
    %1373 = vmatprep.subr.mxu0 0.0
    %1374 = vmatpush1.msra.mxu0 0.0
    %1375 = vmatprep.subr.mxu0 0.0
    %1376 = vmatpush1.msra.mxu0 0.0
    %1377 = vmatprep.subr.mxu0 0.0
    %1378 = vmatpush1.msra.mxu0 0.0
    %1379 = vmatprep.subr.mxu0 0.0
    %1380 = vmatpush1.msra.mxu0 0.0
    %1381 = vmatprep.subr.mxu0 0.0
    %1382 = vmatpush1.msra.mxu0 0.0
    %1383 = vmatprep.mubr.f32.mxu0 0.0
    %1384 = vmatmul.mubr.f32.gmra.mrb[0].mxu0 %v1012
    %v1385 = vpop.f32.mrb[0].mxu0
    %v1386 = vadd.f32 0.0, %v1385
    %v1387 = vpop.f32.mrb[0].mxu0
    %v1388 = vadd.f32 0.0, %v1387
    %1389 = vdwg.mxu0
    %1390 = vmatprep.subr.mxu0 %v1258
    %1391 = vmatpush1.msra.mxu0 %v1257
    %1392 = vmatprep.subr.mxu0 %v1262
    %1393 = vmatpush1.msra.mxu0 %v1261
    %1394 = vmatprep.subr.mxu0 %v1266
    %1395 = vmatpush1.msra.mxu0 %v1265
    %1396 = vmatprep.subr.mxu0 %v1270
    %1397 = vmatpush1.msra.mxu0 %v1269
    %1398 = vmatprep.subr.mxu0 %v1274
    %1399 = vmatpush1.msra.mxu0 %v1273
    %1400 = vmatprep.subr.mxu0 %v1278
    %1401 = vmatpush1.msra.mxu0 %v1277
    %1402 = vmatprep.subr.mxu0 %v1282
    %1403 = vmatpush1.msra.mxu0 %v1281
    %1404 = vmatprep.subr.mxu0 %v1286
    %1405 = vmatpush1.msra.mxu0 %v1285
    %1406 = vmatprep.subr.mxu0 %v1290
    %1407 = vmatpush1.msra.mxu0 %v1289
    %1408 = vmatprep.subr.mxu0 %v1294
    %1409 = vmatpush1.msra.mxu0 %v1293
    %1410 = vmatprep.subr.mxu0 %v1298
    %1411 = vmatpush1.msra.mxu0 %v1297
    %1412 = vmatprep.subr.mxu0 %v1302
    %1413 = vmatpush1.msra.mxu0 %v1301
    %1414 = vmatprep.subr.mxu0 %v1306
    %1415 = vmatpush1.msra.mxu0 %v1305
    %1416 = vmatprep.subr.mxu0 %v1310
    %1417 = vmatpush1.msra.mxu0 %v1309
    %1418 = vmatprep.subr.mxu0 %v1314
    %1419 = vmatpush1.msra.mxu0 %v1313
    %1420 = vmatprep.subr.mxu0 %v1318
    %1421 = vmatpush1.msra.mxu0 %v1317
    %1422 = vmatprep.subr.mxu0 0.0
    %1423 = vmatpush1.msra.mxu0 0.0
    %1424 = vmatprep.subr.mxu0 0.0
    %1425 = vmatpush1.msra.mxu0 0.0
    %1426 = vmatprep.subr.mxu0 0.0
    %1427 = vmatpush1.msra.mxu0 0.0
    %1428 = vmatprep.subr.mxu0 0.0
    %1429 = vmatpush1.msra.mxu0 0.0
    %1430 = vmatprep.subr.mxu0 0.0
    %1431 = vmatpush1.msra.mxu0 0.0
    %1432 = vmatprep.subr.mxu0 0.0
    %1433 = vmatpush1.msra.mxu0 0.0
    %1434 = vmatprep.subr.mxu0 0.0
    %1435 = vmatpush1.msra.mxu0 0.0
    %1436 = vmatprep.subr.mxu0 0.0
    %1437 = vmatpush1.msra.mxu0 0.0
    %1438 = vmatprep.subr.mxu0 0.0
    %1439 = vmatpush1.msra.mxu0 0.0
    %1440 = vmatprep.subr.mxu0 0.0
    %1441 = vmatpush1.msra.mxu0 0.0
    %1442 = vmatprep.subr.mxu0 0.0
    %1443 = vmatpush1.msra.mxu0 0.0
    %1444 = vmatprep.subr.mxu0 0.0
    %1445 = vmatpush1.msra.mxu0 0.0
    %1446 = vmatprep.subr.mxu0 0.0
    %1447 = vmatpush1.msra.mxu0 0.0
    %1448 = vmatprep.subr.mxu0 0.0
    %1449 = vmatpush1.msra.mxu0 0.0
    %1450 = vmatprep.subr.mxu0 0.0
    %1451 = vmatpush1.msra.mxu0 0.0
    %1452 = vmatprep.subr.mxu0 0.0
    %1453 = vmatpush1.msra.mxu0 0.0
    %1454 = vmatprep.mubr.f32.mxu0 0.0
    %1455 = vmatmul.mubr.f32.gmra.mrb[0].mxu0 %v1012
    %v1456 = vpop.f32.mrb[0].mxu0
    %v1457 = vadd.f32 0.0, %v1456
    %v1458 = vpop.f32.mrb[0].mxu0
    %v1459 = vadd.f32 0.0, %v1458
    %1460 = vdwg.mxu0
    %v1465 = vcombine.low %v1386, %v1388
    %v1466 = vcombine.low %v1457, %v1459
    %v1468 = vunpack.c.l.s4 1966171168
    %v1469 = vunpack.c.0.s8 %v1468
    %v1470 = vlaneseq
    %v1471 = vshrl.u32 %v1470, 7
    %v1472 = vsub.s32 %v1469, %v1471
    %v1473 = vrot.slane %v1465, %v1472
    %v1475 = vunpack.c.l.s4 1966171168
    %v1476 = vunpack.c.0.s8 %v1475
    %v1477 = vlaneseq
    %v1478 = vshrl.u32 %v1477, 7
    %v1479 = vsub.s32 %v1476, %v1478
    %v1480 = vrot.slane %v1466, %v1479
    %v1481 = vcombine.low %v1473, %v1480
    %v1483 = vunpack.c.l.s4 1966171168
    %v1484 = vunpack.c.0.s8 %v1483
    %v1485 = vlaneseq
    %v1486 = vshrl.u32 %v1485, 7
    %v1487 = vsub.s32 %v1484, %v1486
    %v1488 = vrot.slane %v1481, %v1487
    %v1490 = vadd.f32 %v1254, %v1488
    %v1491 = vxor.u32 %v1252, 2147483648
    %v1492 = vmul.f32 %v1491, 1.442695
    %v1493 = vpow.pop %v1492
    %v1494 = vadd.f32 %v1493, 1.0
    %v1495 = vrcp.pop %v1494
    %v1496 = vmul.f32 1.0, %v1495
    %v1498 = vrot.slane %v1252, 1
    %v1500 = vxor.u32 %v1498, 2147483648
    %v1501 = vmul.f32 %v1500, 1.442695
    %v1502 = vpow.pop %v1501
    %v1503 = vadd.f32 %v1502, 1.0
    %v1504 = vrcp.pop %v1503
    %v1505 = vmul.f32 1.0, %v1504
    %v1506 = vrot.slane %v1252, 2
    %v1508 = vtanh.pop %v1506
    %v1509 = vrot.slane %v1252, 3
    %v1511 = vxor.u32 %v1509, 2147483648
    %v1512 = vmul.f32 %v1511, 1.442695
    %v1513 = vpow.pop %v1512
    %v1514 = vadd.f32 %v1513, 1.0
    %v1515 = vrcp.pop %v1514
    %v1516 = vmul.f32 1.0, %v1515
    %v1517 = vmul.f32 %v1505, %v979
    %v1518 = vmul.f32 %v1496, %v1508
    %v1519 = vadd.f32 %v1517, %v1518
    %v1520 = vtanh.pop %v1519
    %v1521 = vmul.f32 %v1516, %v1520
    %v1522 = vxor.u32 %v1490, 2147483648
    %v1523 = vmul.f32 %v1522, 1.442695
    %v1524 = vpow.pop %v1523
    %v1525 = vadd.f32 %v1524, 1.0
    %v1526 = vrcp.pop %v1525
    %v1527 = vmul.f32 1.0, %v1526
    %v1529 = vrot.slane %v1490, 1
    %v1531 = vxor.u32 %v1529, 2147483648
    %v1532 = vmul.f32 %v1531, 1.442695
    %v1533 = vpow.pop %v1532
    %v1534 = vadd.f32 %v1533, 1.0
    %v1535 = vrcp.pop %v1534
    %v1536 = vmul.f32 1.0, %v1535
    %v1537 = vrot.slane %v1490, 2
    %v1539 = vtanh.pop %v1537
    %v1540 = vrot.slane %v1490, 3
    %v1542 = vxor.u32 %v1540, 2147483648
    %v1543 = vmul.f32 %v1542, 1.442695
    %v1544 = vpow.pop %v1543
    %v1545 = vadd.f32 %v1544, 1.0
    %v1546 = vrcp.pop %v1545
    %v1547 = vmul.f32 1.0, %v1546
    %v1548 = vmul.f32 %v1536, %v1010
    %v1549 = vmul.f32 %v1527, %v1539
    %v1550 = vadd.f32 %v1548, %v1549
    %v1551 = vtanh.pop %v1550
    %v1552 = vmul.f32 %v1547, %v1551
    %1553 = vst [vmem:[#allocation3 + $0x1] sm:$0x1] %v1521
    %1554 = vst [vmem:[#allocation4 + $0x6] sm:$0x1] %v1552
    %s1555 = scalar_lea.vmem [#allocation2], 2
    %v1556 = vld [vmem:[%s1555] ss:$8 sm:$0xf]
    %v1557 = vld [vmem:[#allocation11] sm:$0xff]
    %v1558 = vld [vmem:[#allocation11 + $0x8] sm:$0xff]
    %v1559 = vld [vmem:[#allocation11 + $0x10] sm:$0xff]
    %v1560 = vld [vmem:[#allocation11 + $0x18] sm:$0xff]
    %v1561 = vld [vmem:[#allocation11 + $0x20] sm:$0xff]
    %v1562 = vld [vmem:[#allocation11 + $0x28] sm:$0xff]
    %v1563 = vld [vmem:[#allocation11 + $0x30] sm:$0xff]
    %v1564 = vld [vmem:[#allocation11 + $0x38] sm:$0xff]
    %v1565 = vld [vmem:[#allocation11 + $0x40] sm:$0xff]
    %v1566 = vld [vmem:[#allocation11 + $0x48] sm:$0xff]
    %v1567 = vld [vmem:[#allocation11 + $0x50] sm:$0xff]
    %v1568 = vld [vmem:[#allocation11 + $0x58] sm:$0xff]
    %v1569 = vld [vmem:[#allocation11 + $0x60] sm:$0xff]
    %v1570 = vld [vmem:[#allocation11 + $0x68] sm:$0xff]
    %v1571 = vld [vmem:[#allocation11 + $0x70] sm:$0xff]
    %v1572 = vld [vmem:[#allocation11 + $0x78] sm:$0xff]
    %v1573 = vld [vmem:[#allocation11 + $0x80] sm:$0xff]
    %v1574 = vld [vmem:[#allocation11 + $0x88] sm:$0xff]
    %v1575 = vld [vmem:[#allocation11 + $0x90] sm:$0xff]
    %v1576 = vld [vmem:[#allocation11 + $0x98] sm:$0xff]
    %v1577 = vld [vmem:[#allocation11 + $0xa0] sm:$0xff]
    %v1578 = vld [vmem:[#allocation11 + $0xa8] sm:$0xff]
    %v1579 = vld [vmem:[#allocation11 + $0xb0] sm:$0xff]
    %v1580 = vld [vmem:[#allocation11 + $0xb8] sm:$0xff]
    %v1581 = vld [vmem:[#allocation11 + $0xc0] sm:$0xff]
    %v1582 = vld [vmem:[#allocation11 + $0xc8] sm:$0xff]
    %v1583 = vld [vmem:[#allocation11 + $0xd0] sm:$0xff]
    %v1584 = vld [vmem:[#allocation11 + $0xd8] sm:$0xff]
    %v1585 = vld [vmem:[#allocation11 + $0xe0] sm:$0xff]
    %v1586 = vld [vmem:[#allocation11 + $0xe8] sm:$0xff]
    %v1587 = vld [vmem:[#allocation11 + $0xf0] sm:$0xff]
    %v1588 = vld [vmem:[#allocation11 + $0xf8] sm:$0xff]
    %v1589 = vld [vmem:[#allocation11 + $0x100] sm:$0xff]
    %v1590 = vld [vmem:[#allocation11 + $0x108] sm:$0xff]
    %v1591 = vld [vmem:[#allocation11 + $0x110] sm:$0xff]
    %v1592 = vld [vmem:[#allocation11 + $0x118] sm:$0xff]
    %v1593 = vld [vmem:[#allocation11 + $0x120] sm:$0xff]
    %v1594 = vld [vmem:[#allocation11 + $0x128] sm:$0xff]
    %v1595 = vld [vmem:[#allocation11 + $0x130] sm:$0xff]
    %v1596 = vld [vmem:[#allocation11 + $0x138] sm:$0xff]
    %v1597 = vld [vmem:[#allocation11 + $0x140] sm:$0xff]
    %v1598 = vld [vmem:[#allocation11 + $0x148] sm:$0xff]
    %v1599 = vld [vmem:[#allocation11 + $0x150] sm:$0xff]
    %v1600 = vld [vmem:[#allocation11 + $0x158] sm:$0xff]
    %v1601 = vld [vmem:[#allocation11 + $0x160] sm:$0xff]
    %v1602 = vld [vmem:[#allocation11 + $0x168] sm:$0xff]
    %v1603 = vld [vmem:[#allocation11 + $0x170] sm:$0xff]
    %v1604 = vld [vmem:[#allocation11 + $0x178] sm:$0xff]
    %v1605 = vld [vmem:[#allocation11 + $0x180] sm:$0xff]
    %v1606 = vld [vmem:[#allocation11 + $0x188] sm:$0xff]
    %v1607 = vld [vmem:[#allocation11 + $0x190] sm:$0xff]
    %v1608 = vld [vmem:[#allocation11 + $0x198] sm:$0xff]
    %v1609 = vld [vmem:[#allocation11 + $0x1a0] sm:$0xff]
    %v1610 = vld [vmem:[#allocation11 + $0x1a8] sm:$0xff]
    %v1611 = vld [vmem:[#allocation11 + $0x1b0] sm:$0xff]
    %v1612 = vld [vmem:[#allocation11 + $0x1b8] sm:$0xff]
    %v1613 = vld [vmem:[#allocation11 + $0x1c0] sm:$0xff]
    %v1614 = vld [vmem:[#allocation11 + $0x1c8] sm:$0xff]
    %v1615 = vld [vmem:[#allocation11 + $0x1d0] sm:$0xff]
    %v1616 = vld [vmem:[#allocation11 + $0x1d8] sm:$0xff]
    %v1617 = vld [vmem:[#allocation11 + $0x1e0] sm:$0xff]
    %v1618 = vld [vmem:[#allocation11 + $0x1e8] sm:$0xff]
    %v1619 = vld [vmem:[#allocation11 + $0x1f0] sm:$0xff]
    %v1620 = vld [vmem:[#allocation11 + $0x1f8] sm:$0xff]
    %1621 = vmatprep.subr.mxu0 %v1558
    %1622 = vmatpush1.msra.mxu0 %v1557
    %1623 = vmatprep.subr.mxu0 %v1562
    %1624 = vmatpush1.msra.mxu0 %v1561
    %1625 = vmatprep.subr.mxu0 %v1566
    %1626 = vmatpush1.msra.mxu0 %v1565
    %1627 = vmatprep.subr.mxu0 %v1570
    %1628 = vmatpush1.msra.mxu0 %v1569
    %1629 = vmatprep.subr.mxu0 %v1574
    %1630 = vmatpush1.msra.mxu0 %v1573
    %1631 = vmatprep.subr.mxu0 %v1578
    %1632 = vmatpush1.msra.mxu0 %v1577
    %1633 = vmatprep.subr.mxu0 %v1582
    %1634 = vmatpush1.msra.mxu0 %v1581
    %1635 = vmatprep.subr.mxu0 %v1586
    %1636 = vmatpush1.msra.mxu0 %v1585
    %1637 = vmatprep.subr.mxu0 %v1590
    %1638 = vmatpush1.msra.mxu0 %v1589
    %1639 = vmatprep.subr.mxu0 %v1594
    %1640 = vmatpush1.msra.mxu0 %v1593
    %1641 = vmatprep.subr.mxu0 %v1598
    %1642 = vmatpush1.msra.mxu0 %v1597
    %1643 = vmatprep.subr.mxu0 %v1602
    %1644 = vmatpush1.msra.mxu0 %v1601
    %1645 = vmatprep.subr.mxu0 %v1606
    %1646 = vmatpush1.msra.mxu0 %v1605
    %1647 = vmatprep.subr.mxu0 %v1610
    %1648 = vmatpush1.msra.mxu0 %v1609
    %1649 = vmatprep.subr.mxu0 %v1614
    %1650 = vmatpush1.msra.mxu0 %v1613
    %1651 = vmatprep.subr.mxu0 %v1618
    %1652 = vmatpush1.msra.mxu0 %v1617
    %1653 = vmatprep.subr.mxu0 0.0
    %1654 = vmatpush1.msra.mxu0 0.0
    %1655 = vmatprep.subr.mxu0 0.0
    %1656 = vmatpush1.msra.mxu0 0.0
    %1657 = vmatprep.subr.mxu0 0.0
    %1658 = vmatpush1.msra.mxu0 0.0
    %1659 = vmatprep.subr.mxu0 0.0
    %1660 = vmatpush1.msra.mxu0 0.0
    %1661 = vmatprep.subr.mxu0 0.0
    %1662 = vmatpush1.msra.mxu0 0.0
    %1663 = vmatprep.subr.mxu0 0.0
    %1664 = vmatpush1.msra.mxu0 0.0
    %1665 = vmatprep.subr.mxu0 0.0
    %1666 = vmatpush1.msra.mxu0 0.0
    %1667 = vmatprep.subr.mxu0 0.0
    %1668 = vmatpush1.msra.mxu0 0.0
    %1669 = vmatprep.subr.mxu0 0.0
    %1670 = vmatpush1.msra.mxu0 0.0
    %1671 = vmatprep.subr.mxu0 0.0
    %1672 = vmatpush1.msra.mxu0 0.0
    %1673 = vmatprep.subr.mxu0 0.0
    %1674 = vmatpush1.msra.mxu0 0.0
    %1675 = vmatprep.subr.mxu0 0.0
    %1676 = vmatpush1.msra.mxu0 0.0
    %1677 = vmatprep.subr.mxu0 0.0
    %1678 = vmatpush1.msra.mxu0 0.0
    %1679 = vmatprep.subr.mxu0 0.0
    %1680 = vmatpush1.msra.mxu0 0.0
    %1681 = vmatprep.subr.mxu0 0.0
    %1682 = vmatpush1.msra.mxu0 0.0
    %1683 = vmatprep.subr.mxu0 0.0
    %1684 = vmatpush1.msra.mxu0 0.0
    %1685 = vmatprep.mubr.f32.mxu0 0.0
    %1686 = vmatmul.mubr.f32.gmra.mrb[0].mxu0 %v1521
    %v1687 = vpop.f32.mrb[0].mxu0
    %v1688 = vadd.f32 0.0, %v1687
    %v1689 = vpop.f32.mrb[0].mxu0
    %v1690 = vadd.f32 0.0, %v1689
    %1691 = vdwg.mxu0
    %1692 = vmatprep.subr.mxu0 %v1560
    %1693 = vmatpush1.msra.mxu0 %v1559
    %1694 = vmatprep.subr.mxu0 %v1564
    %1695 = vmatpush1.msra.mxu0 %v1563
    %1696 = vmatprep.subr.mxu0 %v1568
    %1697 = vmatpush1.msra.mxu0 %v1567
    %1698 = vmatprep.subr.mxu0 %v1572
    %1699 = vmatpush1.msra.mxu0 %v1571
    %1700 = vmatprep.subr.mxu0 %v1576
    %1701 = vmatpush1.msra.mxu0 %v1575
    %1702 = vmatprep.subr.mxu0 %v1580
    %1703 = vmatpush1.msra.mxu0 %v1579
    %1704 = vmatprep.subr.mxu0 %v1584
    %1705 = vmatpush1.msra.mxu0 %v1583
    %1706 = vmatprep.subr.mxu0 %v1588
    %1707 = vmatpush1.msra.mxu0 %v1587
    %1708 = vmatprep.subr.mxu0 %v1592
    %1709 = vmatpush1.msra.mxu0 %v1591
    %1710 = vmatprep.subr.mxu0 %v1596
    %1711 = vmatpush1.msra.mxu0 %v1595
    %1712 = vmatprep.subr.mxu0 %v1600
    %1713 = vmatpush1.msra.mxu0 %v1599
    %1714 = vmatprep.subr.mxu0 %v1604
    %1715 = vmatpush1.msra.mxu0 %v1603
    %1716 = vmatprep.subr.mxu0 %v1608
    %1717 = vmatpush1.msra.mxu0 %v1607
    %1718 = vmatprep.subr.mxu0 %v1612
    %1719 = vmatpush1.msra.mxu0 %v1611
    %1720 = vmatprep.subr.mxu0 %v1616
    %1721 = vmatpush1.msra.mxu0 %v1615
    %1722 = vmatprep.subr.mxu0 %v1620
    %1723 = vmatpush1.msra.mxu0 %v1619
    %1724 = vmatprep.subr.mxu0 0.0
    %1725 = vmatpush1.msra.mxu0 0.0
    %1726 = vmatprep.subr.mxu0 0.0
    %1727 = vmatpush1.msra.mxu0 0.0
    %1728 = vmatprep.subr.mxu0 0.0
    %1729 = vmatpush1.msra.mxu0 0.0
    %1730 = vmatprep.subr.mxu0 0.0
    %1731 = vmatpush1.msra.mxu0 0.0
    %1732 = vmatprep.subr.mxu0 0.0
    %1733 = vmatpush1.msra.mxu0 0.0
    %1734 = vmatprep.subr.mxu0 0.0
    %1735 = vmatpush1.msra.mxu0 0.0
    %1736 = vmatprep.subr.mxu0 0.0
    %1737 = vmatpush1.msra.mxu0 0.0
    %1738 = vmatprep.subr.mxu0 0.0
    %1739 = vmatpush1.msra.mxu0 0.0
    %1740 = vmatprep.subr.mxu0 0.0
    %1741 = vmatpush1.msra.mxu0 0.0
    %1742 = vmatprep.subr.mxu0 0.0
    %1743 = vmatpush1.msra.mxu0 0.0
    %1744 = vmatprep.subr.mxu0 0.0
    %1745 = vmatpush1.msra.mxu0 0.0
    %1746 = vmatprep.subr.mxu0 0.0
    %1747 = vmatpush1.msra.mxu0 0.0
    %1748 = vmatprep.subr.mxu0 0.0
    %1749 = vmatpush1.msra.mxu0 0.0
    %1750 = vmatprep.subr.mxu0 0.0
    %1751 = vmatpush1.msra.mxu0 0.0
    %1752 = vmatprep.subr.mxu0 0.0
    %1753 = vmatpush1.msra.mxu0 0.0
    %1754 = vmatprep.subr.mxu0 0.0
    %1755 = vmatpush1.msra.mxu0 0.0
    %1756 = vmatprep.mubr.f32.mxu0 0.0
    %1757 = vmatmul.mubr.f32.gmra.mrb[0].mxu0 %v1521
    %v1758 = vpop.f32.mrb[0].mxu0
    %v1759 = vadd.f32 0.0, %v1758
    %v1760 = vpop.f32.mrb[0].mxu0
    %v1761 = vadd.f32 0.0, %v1760
    %1762 = vdwg.mxu0
    %v1767 = vcombine.low %v1688, %v1690
    %v1768 = vcombine.low %v1759, %v1761
    %v1770 = vunpack.c.l.s4 1966171168
    %v1771 = vunpack.c.0.s8 %v1770
    %v1772 = vlaneseq
    %v1773 = vshrl.u32 %v1772, 7
    %v1774 = vsub.s32 %v1771, %v1773
    %v1775 = vrot.slane %v1767, %v1774
    %v1777 = vunpack.c.l.s4 1966171168
    %v1778 = vunpack.c.0.s8 %v1777
    %v1779 = vlaneseq
    %v1780 = vshrl.u32 %v1779, 7
    %v1781 = vsub.s32 %v1778, %v1780
    %v1782 = vrot.slane %v1768, %v1781
    %v1783 = vcombine.low %v1775, %v1782
    %v1785 = vunpack.c.l.s4 1966171168
    %v1786 = vunpack.c.0.s8 %v1785
    %v1787 = vlaneseq
    %v1788 = vshrl.u32 %v1787, 7
    %v1789 = vsub.s32 %v1786, %v1788
    %v1790 = vrot.slane %v1783, %v1789
    %v1792 = vadd.f32 %v1556, %v1790
    %s1793 = scalar_lea.vmem [#allocation2], 37
    %v1794 = vld [vmem:[%s1793] ss:$8 sm:$0xf]
    %v1795 = vld [vmem:[#allocation13] sm:$0xff]
    %v1796 = vld [vmem:[#allocation13 + $0x8] sm:$0xff]
    %v1797 = vld [vmem:[#allocation13 + $0x10] sm:$0xff]
    %v1798 = vld [vmem:[#allocation13 + $0x18] sm:$0xff]
    %v1799 = vld [vmem:[#allocation13 + $0x20] sm:$0xff]
    %v1800 = vld [vmem:[#allocation13 + $0x28] sm:$0xff]
    %v1801 = vld [vmem:[#allocation13 + $0x30] sm:$0xff]
    %v1802 = vld [vmem:[#allocation13 + $0x38] sm:$0xff]
    %v1803 = vld [vmem:[#allocation13 + $0x40] sm:$0xff]
    %v1804 = vld [vmem:[#allocation13 + $0x48] sm:$0xff]
    %v1805 = vld [vmem:[#allocation13 + $0x50] sm:$0xff]
    %v1806 = vld [vmem:[#allocation13 + $0x58] sm:$0xff]
    %v1807 = vld [vmem:[#allocation13 + $0x60] sm:$0xff]
    %v1808 = vld [vmem:[#allocation13 + $0x68] sm:$0xff]
    %v1809 = vld [vmem:[#allocation13 + $0x70] sm:$0xff]
    %v1810 = vld [vmem:[#allocation13 + $0x78] sm:$0xff]
    %v1811 = vld [vmem:[#allocation13 + $0x80] sm:$0xff]
    %v1812 = vld [vmem:[#allocation13 + $0x88] sm:$0xff]
    %v1813 = vld [vmem:[#allocation13 + $0x90] sm:$0xff]
    %v1814 = vld [vmem:[#allocation13 + $0x98] sm:$0xff]
    %v1815 = vld [vmem:[#allocation13 + $0xa0] sm:$0xff]
    %v1816 = vld [vmem:[#allocation13 + $0xa8] sm:$0xff]
    %v1817 = vld [vmem:[#allocation13 + $0xb0] sm:$0xff]
    %v1818 = vld [vmem:[#allocation13 + $0xb8] sm:$0xff]
    %v1819 = vld [vmem:[#allocation13 + $0xc0] sm:$0xff]
    %v1820 = vld [vmem:[#allocation13 + $0xc8] sm:$0xff]
    %v1821 = vld [vmem:[#allocation13 + $0xd0] sm:$0xff]
    %v1822 = vld [vmem:[#allocation13 + $0xd8] sm:$0xff]
    %v1823 = vld [vmem:[#allocation13 + $0xe0] sm:$0xff]
    %v1824 = vld [vmem:[#allocation13 + $0xe8] sm:$0xff]
    %v1825 = vld [vmem:[#allocation13 + $0xf0] sm:$0xff]
    %v1826 = vld [vmem:[#allocation13 + $0xf8] sm:$0xff]
    %v1827 = vld [vmem:[#allocation13 + $0x100] sm:$0xff]
    %v1828 = vld [vmem:[#allocation13 + $0x108] sm:$0xff]
    %v1829 = vld [vmem:[#allocation13 + $0x110] sm:$0xff]
    %v1830 = vld [vmem:[#allocation13 + $0x118] sm:$0xff]
    %v1831 = vld [vmem:[#allocation13 + $0x120] sm:$0xff]
    %v1832 = vld [vmem:[#allocation13 + $0x128] sm:$0xff]
    %v1833 = vld [vmem:[#allocation13 + $0x130] sm:$0xff]
    %v1834 = vld [vmem:[#allocation13 + $0x138] sm:$0xff]
    %v1835 = vld [vmem:[#allocation13 + $0x140] sm:$0xff]
    %v1836 = vld [vmem:[#allocation13 + $0x148] sm:$0xff]
    %v1837 = vld [vmem:[#allocation13 + $0x150] sm:$0xff]
    %v1838 = vld [vmem:[#allocation13 + $0x158] sm:$0xff]
    %v1839 = vld [vmem:[#allocation13 + $0x160] sm:$0xff]
    %v1840 = vld [vmem:[#allocation13 + $0x168] sm:$0xff]
    %v1841 = vld [vmem:[#allocation13 + $0x170] sm:$0xff]
    %v1842 = vld [vmem:[#allocation13 + $0x178] sm:$0xff]
    %v1843 = vld [vmem:[#allocation13 + $0x180] sm:$0xff]
    %v1844 = vld [vmem:[#allocation13 + $0x188] sm:$0xff]
    %v1845 = vld [vmem:[#allocation13 + $0x190] sm:$0xff]
    %v1846 = vld [vmem:[#allocation13 + $0x198] sm:$0xff]
    %v1847 = vld [vmem:[#allocation13 + $0x1a0] sm:$0xff]
    %v1848 = vld [vmem:[#allocation13 + $0x1a8] sm:$0xff]
    %v1849 = vld [vmem:[#allocation13 + $0x1b0] sm:$0xff]
    %v1850 = vld [vmem:[#allocation13 + $0x1b8] sm:$0xff]
    %v1851 = vld [vmem:[#allocation13 + $0x1c0] sm:$0xff]
    %v1852 = vld [vmem:[#allocation13 + $0x1c8] sm:$0xff]
    %v1853 = vld [vmem:[#allocation13 + $0x1d0] sm:$0xff]
    %v1854 = vld [vmem:[#allocation13 + $0x1d8] sm:$0xff]
    %v1855 = vld [vmem:[#allocation13 + $0x1e0] sm:$0xff]
    %v1856 = vld [vmem:[#allocation13 + $0x1e8] sm:$0xff]
    %v1857 = vld [vmem:[#allocation13 + $0x1f0] sm:$0xff]
    %v1858 = vld [vmem:[#allocation13 + $0x1f8] sm:$0xff]
    %1859 = vmatprep.subr.mxu0 %v1796
    %1860 = vmatpush1.msra.mxu0 %v1795
    %1861 = vmatprep.subr.mxu0 %v1800
    %1862 = vmatpush1.msra.mxu0 %v1799
    %1863 = vmatprep.subr.mxu0 %v1804
    %1864 = vmatpush1.msra.mxu0 %v1803
    %1865 = vmatprep.subr.mxu0 %v1808
    %1866 = vmatpush1.msra.mxu0 %v1807
    %1867 = vmatprep.subr.mxu0 %v1812
    %1868 = vmatpush1.msra.mxu0 %v1811
    %1869 = vmatprep.subr.mxu0 %v1816
    %1870 = vmatpush1.msra.mxu0 %v1815
    %1871 = vmatprep.subr.mxu0 %v1820
    %1872 = vmatpush1.msra.mxu0 %v1819
    %1873 = vmatprep.subr.mxu0 %v1824
    %1874 = vmatpush1.msra.mxu0 %v1823
    %1875 = vmatprep.subr.mxu0 %v1828
    %1876 = vmatpush1.msra.mxu0 %v1827
    %1877 = vmatprep.subr.mxu0 %v1832
    %1878 = vmatpush1.msra.mxu0 %v1831
    %1879 = vmatprep.subr.mxu0 %v1836
    %1880 = vmatpush1.msra.mxu0 %v1835
    %1881 = vmatprep.subr.mxu0 %v1840
    %1882 = vmatpush1.msra.mxu0 %v1839
    %1883 = vmatprep.subr.mxu0 %v1844
    %1884 = vmatpush1.msra.mxu0 %v1843
    %1885 = vmatprep.subr.mxu0 %v1848
    %1886 = vmatpush1.msra.mxu0 %v1847
    %1887 = vmatprep.subr.mxu0 %v1852
    %1888 = vmatpush1.msra.mxu0 %v1851
    %1889 = vmatprep.subr.mxu0 %v1856
    %1890 = vmatpush1.msra.mxu0 %v1855
    %1891 = vmatprep.subr.mxu0 0.0
    %1892 = vmatpush1.msra.mxu0 0.0
    %1893 = vmatprep.subr.mxu0 0.0
    %1894 = vmatpush1.msra.mxu0 0.0
    %1895 = vmatprep.subr.mxu0 0.0
    %1896 = vmatpush1.msra.mxu0 0.0
    %1897 = vmatprep.subr.mxu0 0.0
    %1898 = vmatpush1.msra.mxu0 0.0
    %1899 = vmatprep.subr.mxu0 0.0
    %1900 = vmatpush1.msra.mxu0 0.0
    %1901 = vmatprep.subr.mxu0 0.0
    %1902 = vmatpush1.msra.mxu0 0.0
    %1903 = vmatprep.subr.mxu0 0.0
    %1904 = vmatpush1.msra.mxu0 0.0
    %1905 = vmatprep.subr.mxu0 0.0
    %1906 = vmatpush1.msra.mxu0 0.0
    %1907 = vmatprep.subr.mxu0 0.0
    %1908 = vmatpush1.msra.mxu0 0.0
    %1909 = vmatprep.subr.mxu0 0.0
    %1910 = vmatpush1.msra.mxu0 0.0
    %1911 = vmatprep.subr.mxu0 0.0
    %1912 = vmatpush1.msra.mxu0 0.0
    %1913 = vmatprep.subr.mxu0 0.0
    %1914 = vmatpush1.msra.mxu0 0.0
    %1915 = vmatprep.subr.mxu0 0.0
    %1916 = vmatpush1.msra.mxu0 0.0
    %1917 = vmatprep.subr.mxu0 0.0
    %1918 = vmatpush1.msra.mxu0 0.0
    %1919 = vmatprep.subr.mxu0 0.0
    %1920 = vmatpush1.msra.mxu0 0.0
    %1921 = vmatprep.subr.mxu0 0.0
    %1922 = vmatpush1.msra.mxu0 0.0
    %1923 = vmatprep.mubr.f32.mxu0 0.0
    %1924 = vmatmul.mubr.f32.gmra.mrb[0].mxu0 %v1552
    %v1925 = vpop.f32.mrb[0].mxu0
    %v1926 = vadd.f32 0.0, %v1925
    %v1927 = vpop.f32.mrb[0].mxu0
    %v1928 = vadd.f32 0.0, %v1927
    %1929 = vdwg.mxu0
    %1930 = vmatprep.subr.mxu0 %v1798
    %1931 = vmatpush1.msra.mxu0 %v1797
    %1932 = vmatprep.subr.mxu0 %v1802
    %1933 = vmatpush1.msra.mxu0 %v1801
    %1934 = vmatprep.subr.mxu0 %v1806
    %1935 = vmatpush1.msra.mxu0 %v1805
    %1936 = vmatprep.subr.mxu0 %v1810
    %1937 = vmatpush1.msra.mxu0 %v1809
    %1938 = vmatprep.subr.mxu0 %v1814
    %1939 = vmatpush1.msra.mxu0 %v1813
    %1940 = vmatprep.subr.mxu0 %v1818
    %1941 = vmatpush1.msra.mxu0 %v1817
    %1942 = vmatprep.subr.mxu0 %v1822
    %1943 = vmatpush1.msra.mxu0 %v1821
    %1944 = vmatprep.subr.mxu0 %v1826
    %1945 = vmatpush1.msra.mxu0 %v1825
    %1946 = vmatprep.subr.mxu0 %v1830
    %1947 = vmatpush1.msra.mxu0 %v1829
    %1948 = vmatprep.subr.mxu0 %v1834
    %1949 = vmatpush1.msra.mxu0 %v1833
    %1950 = vmatprep.subr.mxu0 %v1838
    %1951 = vmatpush1.msra.mxu0 %v1837
    %1952 = vmatprep.subr.mxu0 %v1842
    %1953 = vmatpush1.msra.mxu0 %v1841
    %1954 = vmatprep.subr.mxu0 %v1846
    %1955 = vmatpush1.msra.mxu0 %v1845
    %1956 = vmatprep.subr.mxu0 %v1850
    %1957 = vmatpush1.msra.mxu0 %v1849
    %1958 = vmatprep.subr.mxu0 %v1854
    %1959 = vmatpush1.msra.mxu0 %v1853
    %1960 = vmatprep.subr.mxu0 %v1858
    %1961 = vmatpush1.msra.mxu0 %v1857
    %1962 = vmatprep.subr.mxu0 0.0
    %1963 = vmatpush1.msra.mxu0 0.0
    %1964 = vmatprep.subr.mxu0 0.0
    %1965 = vmatpush1.msra.mxu0 0.0
    %1966 = vmatprep.subr.mxu0 0.0
    %1967 = vmatpush1.msra.mxu0 0.0
    %1968 = vmatprep.subr.mxu0 0.0
    %1969 = vmatpush1.msra.mxu0 0.0
    %1970 = vmatprep.subr.mxu0 0.0
    %1971 = vmatpush1.msra.mxu0 0.0
    %1972 = vmatprep.subr.mxu0 0.0
    %1973 = vmatpush1.msra.mxu0 0.0
    %1974 = vmatprep.subr.mxu0 0.0
    %1975 = vmatpush1.msra.mxu0 0.0
    %1976 = vmatprep.subr.mxu0 0.0
    %1977 = vmatpush1.msra.mxu0 0.0
    %1978 = vmatprep.subr.mxu0 0.0
    %1979 = vmatpush1.msra.mxu0 0.0
    %1980 = vmatprep.subr.mxu0 0.0
    %1981 = vmatpush1.msra.mxu0 0.0
    %1982 = vmatprep.subr.mxu0 0.0
    %1983 = vmatpush1.msra.mxu0 0.0
    %1984 = vmatprep.subr.mxu0 0.0
    %1985 = vmatpush1.msra.mxu0 0.0
    %1986 = vmatprep.subr.mxu0 0.0
    %1987 = vmatpush1.msra.mxu0 0.0
    %1988 = vmatprep.subr.mxu0 0.0
    %1989 = vmatpush1.msra.mxu0 0.0
    %1990 = vmatprep.subr.mxu0 0.0
    %1991 = vmatpush1.msra.mxu0 0.0
    %1992 = vmatprep.subr.mxu0 0.0
    %1993 = vmatpush1.msra.mxu0 0.0
    %1994 = vmatprep.mubr.f32.mxu0 0.0
    %1995 = vmatmul.mubr.f32.gmra.mrb[0].mxu0 %v1552
    %v1996 = vpop.f32.mrb[0].mxu0
    %v1997 = vadd.f32 0.0, %v1996
    %v1998 = vpop.f32.mrb[0].mxu0
    %v1999 = vadd.f32 0.0, %v1998
    %2000 = vdwg.mxu0
    %v2005 = vcombine.low %v1926, %v1928
    %v2006 = vcombine.low %v1997, %v1999
    %v2008 = vunpack.c.l.s4 1966171168
    %v2009 = vunpack.c.0.s8 %v2008
    %v2010 = vlaneseq
    %v2011 = vshrl.u32 %v2010, 7
    %v2012 = vsub.s32 %v2009, %v2011
    %v2013 = vrot.slane %v2005, %v2012
    %v2015 = vunpack.c.l.s4 1966171168
    %v2016 = vunpack.c.0.s8 %v2015
    %v2017 = vlaneseq
    %v2018 = vshrl.u32 %v2017, 7
    %v2019 = vsub.s32 %v2016, %v2018
    %v2020 = vrot.slane %v2006, %v2019
    %v2021 = vcombine.low %v2013, %v2020
    %v2023 = vunpack.c.l.s4 1966171168
    %v2024 = vunpack.c.0.s8 %v2023
    %v2025 = vlaneseq
    %v2026 = vshrl.u32 %v2025, 7
    %v2027 = vsub.s32 %v2024, %v2026
    %v2028 = vrot.slane %v2021, %v2027
    %v2030 = vadd.f32 %v1794, %v2028
    %v2031 = vxor.u32 %v1792, 2147483648
    %v2032 = vmul.f32 %v2031, 1.442695
    %v2033 = vpow.pop %v2032
    %v2034 = vadd.f32 %v2033, 1.0
    %v2035 = vrcp.pop %v2034
    %v2036 = vmul.f32 1.0, %v2035
    %v2038 = vrot.slane %v1792, 1
    %v2040 = vxor.u32 %v2038, 2147483648
    %v2041 = vmul.f32 %v2040, 1.442695
    %v2042 = vpow.pop %v2041
    %v2043 = vadd.f32 %v2042, 1.0
    %v2044 = vrcp.pop %v2043
    %v2045 = vmul.f32 1.0, %v2044
    %v2046 = vrot.slane %v1792, 2
    %v2048 = vtanh.pop %v2046
    %v2049 = vrot.slane %v1792, 3
    %v2051 = vxor.u32 %v2049, 2147483648
    %v2052 = vmul.f32 %v2051, 1.442695
    %v2053 = vpow.pop %v2052
    %v2054 = vadd.f32 %v2053, 1.0
    %v2055 = vrcp.pop %v2054
    %v2056 = vmul.f32 1.0, %v2055
    %v2057 = vmul.f32 %v2045, %v1519
    %v2058 = vmul.f32 %v2036, %v2048
    %v2059 = vadd.f32 %v2057, %v2058
    %v2060 = vtanh.pop %v2059
    %v2061 = vmul.f32 %v2056, %v2060
    %v2062 = vxor.u32 %v2030, 2147483648
    %v2063 = vmul.f32 %v2062, 1.442695
    %v2064 = vpow.pop %v2063
    %v2065 = vadd.f32 %v2064, 1.0
    %v2066 = vrcp.pop %v2065
    %v2067 = vmul.f32 1.0, %v2066
    %v2069 = vrot.slane %v2030, 1
    %v2071 = vxor.u32 %v2069, 2147483648
    %v2072 = vmul.f32 %v2071, 1.442695
    %v2073 = vpow.pop %v2072
    %v2074 = vadd.f32 %v2073, 1.0
    %v2075 = vrcp.pop %v2074
    %v2076 = vmul.f32 1.0, %v2075
    %v2077 = vrot.slane %v2030, 2
    %v2079 = vtanh.pop %v2077
    %v2080 = vrot.slane %v2030, 3
    %v2082 = vxor.u32 %v2080, 2147483648
    %v2083 = vmul.f32 %v2082, 1.442695
    %v2084 = vpow.pop %v2083
    %v2085 = vadd.f32 %v2084, 1.0
    %v2086 = vrcp.pop %v2085
    %v2087 = vmul.f32 1.0, %v2086
    %v2088 = vmul.f32 %v2076, %v1550
    %v2089 = vmul.f32 %v2067, %v2079
    %v2090 = vadd.f32 %v2088, %v2089
    %v2091 = vtanh.pop %v2090
    %v2092 = vmul.f32 %v2087, %v2091
    %2093 = vst [vmem:[#allocation3 + $0x2] sm:$0x1] %v2061
    %2094 = vst [vmem:[#allocation4 + $0x5] sm:$0x1] %v2092
    %s2095 = scalar_lea.vmem [#allocation2], 3
    %v2096 = vld [vmem:[%s2095] ss:$8 sm:$0xf]
    %v2097 = vld [vmem:[#allocation11] sm:$0xff]
    %v2098 = vld [vmem:[#allocation11 + $0x8] sm:$0xff]
    %v2099 = vld [vmem:[#allocation11 + $0x10] sm:$0xff]
    %v2100 = vld [vmem:[#allocation11 + $0x18] sm:$0xff]
    %v2101 = vld [vmem:[#allocation11 + $0x20] sm:$0xff]
    %v2102 = vld [vmem:[#allocation11 + $0x28] sm:$0xff]
    %v2103 = vld [vmem:[#allocation11 + $0x30] sm:$0xff]
    %v2104 = vld [vmem:[#allocation11 + $0x38] sm:$0xff]
    %v2105 = vld [vmem:[#allocation11 + $0x40] sm:$0xff]
    %v2106 = vld [vmem:[#allocation11 + $0x48] sm:$0xff]
    %v2107 = vld [vmem:[#allocation11 + $0x50] sm:$0xff]
    %v2108 = vld [vmem:[#allocation11 + $0x58] sm:$0xff]
    %v2109 = vld [vmem:[#allocation11 + $0x60] sm:$0xff]
    %v2110 = vld [vmem:[#allocation11 + $0x68] sm:$0xff]
    %v2111 = vld [vmem:[#allocation11 + $0x70] sm:$0xff]
    %v2112 = vld [vmem:[#allocation11 + $0x78] sm:$0xff]
    %v2113 = vld [vmem:[#allocation11 + $0x80] sm:$0xff]
    %v2114 = vld [vmem:[#allocation11 + $0x88] sm:$0xff]
    %v2115 = vld [vmem:[#allocation11 + $0x90] sm:$0xff]
    %v2116 = vld [vmem:[#allocation11 + $0x98] sm:$0xff]
    %v2117 = vld [vmem:[#allocation11 + $0xa0] sm:$0xff]
    %v2118 = vld [vmem:[#allocation11 + $0xa8] sm:$0xff]
    %v2119 = vld [vmem:[#allocation11 + $0xb0] sm:$0xff]
    %v2120 = vld [vmem:[#allocation11 + $0xb8] sm:$0xff]
    %v2121 = vld [vmem:[#allocation11 + $0xc0] sm:$0xff]
    %v2122 = vld [vmem:[#allocation11 + $0xc8] sm:$0xff]
    %v2123 = vld [vmem:[#allocation11 + $0xd0] sm:$0xff]
    %v2124 = vld [vmem:[#allocation11 + $0xd8] sm:$0xff]
    %v2125 = vld [vmem:[#allocation11 + $0xe0] sm:$0xff]
    %v2126 = vld [vmem:[#allocation11 + $0xe8] sm:$0xff]
    %v2127 = vld [vmem:[#allocation11 + $0xf0] sm:$0xff]
    %v2128 = vld [vmem:[#allocation11 + $0xf8] sm:$0xff]
    %v2129 = vld [vmem:[#allocation11 + $0x100] sm:$0xff]
    %v2130 = vld [vmem:[#allocation11 + $0x108] sm:$0xff]
    %v2131 = vld [vmem:[#allocation11 + $0x110] sm:$0xff]
    %v2132 = vld [vmem:[#allocation11 + $0x118] sm:$0xff]
    %v2133 = vld [vmem:[#allocation11 + $0x120] sm:$0xff]
    %v2134 = vld [vmem:[#allocation11 + $0x128] sm:$0xff]
    %v2135 = vld [vmem:[#allocation11 + $0x130] sm:$0xff]
    %v2136 = vld [vmem:[#allocation11 + $0x138] sm:$0xff]
    %v2137 = vld [vmem:[#allocation11 + $0x140] sm:$0xff]
    %v2138 = vld [vmem:[#allocation11 + $0x148] sm:$0xff]
    %v2139 = vld [vmem:[#allocation11 + $0x150] sm:$0xff]
    %v2140 = vld [vmem:[#allocation11 + $0x158] sm:$0xff]
    %v2141 = vld [vmem:[#allocation11 + $0x160] sm:$0xff]
    %v2142 = vld [vmem:[#allocation11 + $0x168] sm:$0xff]
    %v2143 = vld [vmem:[#allocation11 + $0x170] sm:$0xff]
    %v2144 = vld [vmem:[#allocation11 + $0x178] sm:$0xff]
    %v2145 = vld [vmem:[#allocation11 + $0x180] sm:$0xff]
    %v2146 = vld [vmem:[#allocation11 + $0x188] sm:$0xff]
    %v2147 = vld [vmem:[#allocation11 + $0x190] sm:$0xff]
    %v2148 = vld [vmem:[#allocation11 + $0x198] sm:$0xff]
    %v2149 = vld [vmem:[#allocation11 + $0x1a0] sm:$0xff]
    %v2150 = vld [vmem:[#allocation11 + $0x1a8] sm:$0xff]
    %v2151 = vld [vmem:[#allocation11 + $0x1b0] sm:$0xff]
    %v2152 = vld [vmem:[#allocation11 + $0x1b8] sm:$0xff]
    %v2153 = vld [vmem:[#allocation11 + $0x1c0] sm:$0xff]
    %v2154 = vld [vmem:[#allocation11 + $0x1c8] sm:$0xff]
    %v2155 = vld [vmem:[#allocation11 + $0x1d0] sm:$0xff]
    %v2156 = vld [vmem:[#allocation11 + $0x1d8] sm:$0xff]
    %v2157 = vld [vmem:[#allocation11 + $0x1e0] sm:$0xff]
    %v2158 = vld [vmem:[#allocation11 + $0x1e8] sm:$0xff]
    %v2159 = vld [vmem:[#allocation11 + $0x1f0] sm:$0xff]
    %v2160 = vld [vmem:[#allocation11 + $0x1f8] sm:$0xff]
    %2161 = vmatprep.subr.mxu0 %v2098
    %2162 = vmatpush1.msra.mxu0 %v2097
    %2163 = vmatprep.subr.mxu0 %v2102
    %2164 = vmatpush1.msra.mxu0 %v2101
    %2165 = vmatprep.subr.mxu0 %v2106
    %2166 = vmatpush1.msra.mxu0 %v2105
    %2167 = vmatprep.subr.mxu0 %v2110
    %2168 = vmatpush1.msra.mxu0 %v2109
    %2169 = vmatprep.subr.mxu0 %v2114
    %2170 = vmatpush1.msra.mxu0 %v2113
    %2171 = vmatprep.subr.mxu0 %v2118
    %2172 = vmatpush1.msra.mxu0 %v2117
    %2173 = vmatprep.subr.mxu0 %v2122
    %2174 = vmatpush1.msra.mxu0 %v2121
    %2175 = vmatprep.subr.mxu0 %v2126
    %2176 = vmatpush1.msra.mxu0 %v2125
    %2177 = vmatprep.subr.mxu0 %v2130
    %2178 = vmatpush1.msra.mxu0 %v2129
    %2179 = vmatprep.subr.mxu0 %v2134
    %2180 = vmatpush1.msra.mxu0 %v2133
    %2181 = vmatprep.subr.mxu0 %v2138
    %2182 = vmatpush1.msra.mxu0 %v2137
    %2183 = vmatprep.subr.mxu0 %v2142
    %2184 = vmatpush1.msra.mxu0 %v2141
    %2185 = vmatprep.subr.mxu0 %v2146
    %2186 = vmatpush1.msra.mxu0 %v2145
    %2187 = vmatprep.subr.mxu0 %v2150
    %2188 = vmatpush1.msra.mxu0 %v2149
    %2189 = vmatprep.subr.mxu0 %v2154
    %2190 = vmatpush1.msra.mxu0 %v2153
    %2191 = vmatprep.subr.mxu0 %v2158
    %2192 = vmatpush1.msra.mxu0 %v2157
    %2193 = vmatprep.subr.mxu0 0.0
    %2194 = vmatpush1.msra.mxu0 0.0
    %2195 = vmatprep.subr.mxu0 0.0
    %2196 = vmatpush1.msra.mxu0 0.0
    %2197 = vmatprep.subr.mxu0 0.0
    %2198 = vmatpush1.msra.mxu0 0.0
    %2199 = vmatprep.subr.mxu0 0.0
    %2200 = vmatpush1.msra.mxu0 0.0
    %2201 = vmatprep.subr.mxu0 0.0
    %2202 = vmatpush1.msra.mxu0 0.0
    %2203 = vmatprep.subr.mxu0 0.0
    %2204 = vmatpush1.msra.mxu0 0.0
    %2205 = vmatprep.subr.mxu0 0.0
    %2206 = vmatpush1.msra.mxu0 0.0
    %2207 = vmatprep.subr.mxu0 0.0
    %2208 = vmatpush1.msra.mxu0 0.0
    %2209 = vmatprep.subr.mxu0 0.0
    %2210 = vmatpush1.msra.mxu0 0.0
    %2211 = vmatprep.subr.mxu0 0.0
    %2212 = vmatpush1.msra.mxu0 0.0
    %2213 = vmatprep.subr.mxu0 0.0
    %2214 = vmatpush1.msra.mxu0 0.0
    %2215 = vmatprep.subr.mxu0 0.0
    %2216 = vmatpush1.msra.mxu0 0.0
    %2217 = vmatprep.subr.mxu0 0.0
    %2218 = vmatpush1.msra.mxu0 0.0
    %2219 = vmatprep.subr.mxu0 0.0
    %2220 = vmatpush1.msra.mxu0 0.0
    %2221 = vmatprep.subr.mxu0 0.0
    %2222 = vmatpush1.msra.mxu0 0.0
    %2223 = vmatprep.subr.mxu0 0.0
    %2224 = vmatpush1.msra.mxu0 0.0
    %2225 = vmatprep.mubr.f32.mxu0 0.0
    %2226 = vmatmul.mubr.f32.gmra.mrb[0].mxu0 %v2061
    %v2227 = vpop.f32.mrb[0].mxu0
    %v2228 = vadd.f32 0.0, %v2227
    %v2229 = vpop.f32.mrb[0].mxu0
    %v2230 = vadd.f32 0.0, %v2229
    %2231 = vdwg.mxu0
    %2232 = vmatprep.subr.mxu0 %v2100
    %2233 = vmatpush1.msra.mxu0 %v2099
    %2234 = vmatprep.subr.mxu0 %v2104
    %2235 = vmatpush1.msra.mxu0 %v2103
    %2236 = vmatprep.subr.mxu0 %v2108
    %2237 = vmatpush1.msra.mxu0 %v2107
    %2238 = vmatprep.subr.mxu0 %v2112
    %2239 = vmatpush1.msra.mxu0 %v2111
    %2240 = vmatprep.subr.mxu0 %v2116
    %2241 = vmatpush1.msra.mxu0 %v2115
    %2242 = vmatprep.subr.mxu0 %v2120
    %2243 = vmatpush1.msra.mxu0 %v2119
    %2244 = vmatprep.subr.mxu0 %v2124
    %2245 = vmatpush1.msra.mxu0 %v2123
    %2246 = vmatprep.subr.mxu0 %v2128
    %2247 = vmatpush1.msra.mxu0 %v2127
    %2248 = vmatprep.subr.mxu0 %v2132
    %2249 = vmatpush1.msra.mxu0 %v2131
    %2250 = vmatprep.subr.mxu0 %v2136
    %2251 = vmatpush1.msra.mxu0 %v2135
    %2252 = vmatprep.subr.mxu0 %v2140
    %2253 = vmatpush1.msra.mxu0 %v2139
    %2254 = vmatprep.subr.mxu0 %v2144
    %2255 = vmatpush1.msra.mxu0 %v2143
    %2256 = vmatprep.subr.mxu0 %v2148
    %2257 = vmatpush1.msra.mxu0 %v2147
    %2258 = vmatprep.subr.mxu0 %v2152
    %2259 = vmatpush1.msra.mxu0 %v2151
    %2260 = vmatprep.subr.mxu0 %v2156
    %2261 = vmatpush1.msra.mxu0 %v2155
    %2262 = vmatprep.subr.mxu0 %v2160
    %2263 = vmatpush1.msra.mxu0 %v2159
    %2264 = vmatprep.subr.mxu0 0.0
    %2265 = vmatpush1.msra.mxu0 0.0
    %2266 = vmatprep.subr.mxu0 0.0
    %2267 = vmatpush1.msra.mxu0 0.0
    %2268 = vmatprep.subr.mxu0 0.0
    %2269 = vmatpush1.msra.mxu0 0.0
    %2270 = vmatprep.subr.mxu0 0.0
    %2271 = vmatpush1.msra.mxu0 0.0
    %2272 = vmatprep.subr.mxu0 0.0
    %2273 = vmatpush1.msra.mxu0 0.0
    %2274 = vmatprep.subr.mxu0 0.0
    %2275 = vmatpush1.msra.mxu0 0.0
    %2276 = vmatprep.subr.mxu0 0.0
    %2277 = vmatpush1.msra.mxu0 0.0
    %2278 = vmatprep.subr.mxu0 0.0
    %2279 = vmatpush1.msra.mxu0 0.0
    %2280 = vmatprep.subr.mxu0 0.0
    %2281 = vmatpush1.msra.mxu0 0.0
    %2282 = vmatprep.subr.mxu0 0.0
    %2283 = vmatpush1.msra.mxu0 0.0
    %2284 = vmatprep.subr.mxu0 0.0
    %2285 = vmatpush1.msra.mxu0 0.0
    %2286 = vmatprep.subr.mxu0 0.0
    %2287 = vmatpush1.msra.mxu0 0.0
    %2288 = vmatprep.subr.mxu0 0.0
    %2289 = vmatpush1.msra.mxu0 0.0
    %2290 = vmatprep.subr.mxu0 0.0
    %2291 = vmatpush1.msra.mxu0 0.0
    %2292 = vmatprep.subr.mxu0 0.0
    %2293 = vmatpush1.msra.mxu0 0.0
    %2294 = vmatprep.subr.mxu0 0.0
    %2295 = vmatpush1.msra.mxu0 0.0
    %2296 = vmatprep.mubr.f32.mxu0 0.0
    %2297 = vmatmul.mubr.f32.gmra.mrb[0].mxu0 %v2061
    %v2298 = vpop.f32.mrb[0].mxu0
    %v2299 = vadd.f32 0.0, %v2298
    %v2300 = vpop.f32.mrb[0].mxu0
    %v2301 = vadd.f32 0.0, %v2300
    %2302 = vdwg.mxu0
    %v2307 = vcombine.low %v2228, %v2230
    %v2308 = vcombine.low %v2299, %v2301
    %v2310 = vunpack.c.l.s4 1966171168
    %v2311 = vunpack.c.0.s8 %v2310
    %v2312 = vlaneseq
    %v2313 = vshrl.u32 %v2312, 7
    %v2314 = vsub.s32 %v2311, %v2313
    %v2315 = vrot.slane %v2307, %v2314
    %v2317 = vunpack.c.l.s4 1966171168
    %v2318 = vunpack.c.0.s8 %v2317
    %v2319 = vlaneseq
    %v2320 = vshrl.u32 %v2319, 7
    %v2321 = vsub.s32 %v2318, %v2320
    %v2322 = vrot.slane %v2308, %v2321
    %v2323 = vcombine.low %v2315, %v2322
    %v2325 = vunpack.c.l.s4 1966171168
    %v2326 = vunpack.c.0.s8 %v2325
    %v2327 = vlaneseq
    %v2328 = vshrl.u32 %v2327, 7
    %v2329 = vsub.s32 %v2326, %v2328
    %v2330 = vrot.slane %v2323, %v2329
    %v2332 = vadd.f32 %v2096, %v2330
    %s2333 = scalar_lea.vmem [#allocation2], 36
    %v2334 = vld [vmem:[%s2333] ss:$8 sm:$0xf]
    %v2335 = vld [vmem:[#allocation13] sm:$0xff]
    %v2336 = vld [vmem:[#allocation13 + $0x8] sm:$0xff]
    %v2337 = vld [vmem:[#allocation13 + $0x10] sm:$0xff]
    %v2338 = vld [vmem:[#allocation13 + $0x18] sm:$0xff]
    %v2339 = vld [vmem:[#allocation13 + $0x20] sm:$0xff]
    %v2340 = vld [vmem:[#allocation13 + $0x28] sm:$0xff]
    %v2341 = vld [vmem:[#allocation13 + $0x30] sm:$0xff]
    %v2342 = vld [vmem:[#allocation13 + $0x38] sm:$0xff]
    %v2343 = vld [vmem:[#allocation13 + $0x40] sm:$0xff]
    %v2344 = vld [vmem:[#allocation13 + $0x48] sm:$0xff]
    %v2345 = vld [vmem:[#allocation13 + $0x50] sm:$0xff]
    %v2346 = vld [vmem:[#allocation13 + $0x58] sm:$0xff]
    %v2347 = vld [vmem:[#allocation13 + $0x60] sm:$0xff]
    %v2348 = vld [vmem:[#allocation13 + $0x68] sm:$0xff]
    %v2349 = vld [vmem:[#allocation13 + $0x70] sm:$0xff]
    %v2350 = vld [vmem:[#allocation13 + $0x78] sm:$0xff]
    %v2351 = vld [vmem:[#allocation13 + $0x80] sm:$0xff]
    %v2352 = vld [vmem:[#allocation13 + $0x88] sm:$0xff]
    %v2353 = vld [vmem:[#allocation13 + $0x90] sm:$0xff]
    %v2354 = vld [vmem:[#allocation13 + $0x98] sm:$0xff]
    %v2355 = vld [vmem:[#allocation13 + $0xa0] sm:$0xff]
    %v2356 = vld [vmem:[#allocation13 + $0xa8] sm:$0xff]
    %v2357 = vld [vmem:[#allocation13 + $0xb0] sm:$0xff]
    %v2358 = vld [vmem:[#allocation13 + $0xb8] sm:$0xff]
    %v2359 = vld [vmem:[#allocation13 + $0xc0] sm:$0xff]
    %v2360 = vld [vmem:[#allocation13 + $0xc8] sm:$0xff]
    %v2361 = vld [vmem:[#allocation13 + $0xd0] sm:$0xff]
    %v2362 = vld [vmem:[#allocation13 + $0xd8] sm:$0xff]
    %v2363 = vld [vmem:[#allocation13 + $0xe0] sm:$0xff]
    %v2364 = vld [vmem:[#allocation13 + $0xe8] sm:$0xff]
    %v2365 = vld [vmem:[#allocation13 + $0xf0] sm:$0xff]
    %v2366 = vld [vmem:[#allocation13 + $0xf8] sm:$0xff]
    %v2367 = vld [vmem:[#allocation13 + $0x100] sm:$0xff]
    %v2368 = vld [vmem:[#allocation13 + $0x108] sm:$0xff]
    %v2369 = vld [vmem:[#allocation13 + $0x110] sm:$0xff]
    %v2370 = vld [vmem:[#allocation13 + $0x118] sm:$0xff]
    %v2371 = vld [vmem:[#allocation13 + $0x120] sm:$0xff]
    %v2372 = vld [vmem:[#allocation13 + $0x128] sm:$0xff]
    %v2373 = vld [vmem:[#allocation13 + $0x130] sm:$0xff]
    %v2374 = vld [vmem:[#allocation13 + $0x138] sm:$0xff]
    %v2375 = vld [vmem:[#allocation13 + $0x140] sm:$0xff]
    %v2376 = vld [vmem:[#allocation13 + $0x148] sm:$0xff]
    %v2377 = vld [vmem:[#allocation13 + $0x150] sm:$0xff]
    %v2378 = vld [vmem:[#allocation13 + $0x158] sm:$0xff]
    %v2379 = vld [vmem:[#allocation13 + $0x160] sm:$0xff]
    %v2380 = vld [vmem:[#allocation13 + $0x168] sm:$0xff]
    %v2381 = vld [vmem:[#allocation13 + $0x170] sm:$0xff]
    %v2382 = vld [vmem:[#allocation13 + $0x178] sm:$0xff]
    %v2383 = vld [vmem:[#allocation13 + $0x180] sm:$0xff]
    %v2384 = vld [vmem:[#allocation13 + $0x188] sm:$0xff]
    %v2385 = vld [vmem:[#allocation13 + $0x190] sm:$0xff]
    %v2386 = vld [vmem:[#allocation13 + $0x198] sm:$0xff]
    %v2387 = vld [vmem:[#allocation13 + $0x1a0] sm:$0xff]
    %v2388 = vld [vmem:[#allocation13 + $0x1a8] sm:$0xff]
    %v2389 = vld [vmem:[#allocation13 + $0x1b0] sm:$0xff]
    %v2390 = vld [vmem:[#allocation13 + $0x1b8] sm:$0xff]
    %v2391 = vld [vmem:[#allocation13 + $0x1c0] sm:$0xff]
    %v2392 = vld [vmem:[#allocation13 + $0x1c8] sm:$0xff]
    %v2393 = vld [vmem:[#allocation13 + $0x1d0] sm:$0xff]
    %v2394 = vld [vmem:[#allocation13 + $0x1d8] sm:$0xff]
    %v2395 = vld [vmem:[#allocation13 + $0x1e0] sm:$0xff]
    %v2396 = vld [vmem:[#allocation13 + $0x1e8] sm:$0xff]
    %v2397 = vld [vmem:[#allocation13 + $0x1f0] sm:$0xff]
    %v2398 = vld [vmem:[#allocation13 + $0x1f8] sm:$0xff]
    %2399 = vmatprep.subr.mxu0 %v2336
    %2400 = vmatpush1.msra.mxu0 %v2335
    %2401 = vmatprep.subr.mxu0 %v2340
    %2402 = vmatpush1.msra.mxu0 %v2339
    %2403 = vmatprep.subr.mxu0 %v2344
    %2404 = vmatpush1.msra.mxu0 %v2343
    %2405 = vmatprep.subr.mxu0 %v2348
    %2406 = vmatpush1.msra.mxu0 %v2347
    %2407 = vmatprep.subr.mxu0 %v2352
    %2408 = vmatpush1.msra.mxu0 %v2351
    %2409 = vmatprep.subr.mxu0 %v2356
    %2410 = vmatpush1.msra.mxu0 %v2355
    %2411 = vmatprep.subr.mxu0 %v2360
    %2412 = vmatpush1.msra.mxu0 %v2359
    %2413 = vmatprep.subr.mxu0 %v2364
    %2414 = vmatpush1.msra.mxu0 %v2363
    %2415 = vmatprep.subr.mxu0 %v2368
    %2416 = vmatpush1.msra.mxu0 %v2367
    %2417 = vmatprep.subr.mxu0 %v2372
    %2418 = vmatpush1.msra.mxu0 %v2371
    %2419 = vmatprep.subr.mxu0 %v2376
    %2420 = vmatpush1.msra.mxu0 %v2375
    %2421 = vmatprep.subr.mxu0 %v2380
    %2422 = vmatpush1.msra.mxu0 %v2379
    %2423 = vmatprep.subr.mxu0 %v2384
    %2424 = vmatpush1.msra.mxu0 %v2383
    %2425 = vmatprep.subr.mxu0 %v2388
    %2426 = vmatpush1.msra.mxu0 %v2387
    %2427 = vmatprep.subr.mxu0 %v2392
    %2428 = vmatpush1.msra.mxu0 %v2391
    %2429 = vmatprep.subr.mxu0 %v2396
    %2430 = vmatpush1.msra.mxu0 %v2395
    %2431 = vmatprep.subr.mxu0 0.0
    %2432 = vmatpush1.msra.mxu0 0.0
    %2433 = vmatprep.subr.mxu0 0.0
    %2434 = vmatpush1.msra.mxu0 0.0
    %2435 = vmatprep.subr.mxu0 0.0
    %2436 = vmatpush1.msra.mxu0 0.0
    %2437 = vmatprep.subr.mxu0 0.0
    %2438 = vmatpush1.msra.mxu0 0.0
    %2439 = vmatprep.subr.mxu0 0.0
    %2440 = vmatpush1.msra.mxu0 0.0
    %2441 = vmatprep.subr.mxu0 0.0
    %2442 = vmatpush1.msra.mxu0 0.0
    %2443 = vmatprep.subr.mxu0 0.0
    %2444 = vmatpush1.msra.mxu0 0.0
    %2445 = vmatprep.subr.mxu0 0.0
    %2446 = vmatpush1.msra.mxu0 0.0
    %2447 = vmatprep.subr.mxu0 0.0
    %2448 = vmatpush1.msra.mxu0 0.0
    %2449 = vmatprep.subr.mxu0 0.0
    %2450 = vmatpush1.msra.mxu0 0.0
    %2451 = vmatprep.subr.mxu0 0.0
    %2452 = vmatpush1.msra.mxu0 0.0
    %2453 = vmatprep.subr.mxu0 0.0
    %2454 = vmatpush1.msra.mxu0 0.0
    %2455 = vmatprep.subr.mxu0 0.0
    %2456 = vmatpush1.msra.mxu0 0.0
    %2457 = vmatprep.subr.mxu0 0.0
    %2458 = vmatpush1.msra.mxu0 0.0
    %2459 = vmatprep.subr.mxu0 0.0
    %2460 = vmatpush1.msra.mxu0 0.0
    %2461 = vmatprep.subr.mxu0 0.0
    %2462 = vmatpush1.msra.mxu0 0.0
    %2463 = vmatprep.mubr.f32.mxu0 0.0
    %2464 = vmatmul.mubr.f32.gmra.mrb[0].mxu0 %v2092
    %v2465 = vpop.f32.mrb[0].mxu0
    %v2466 = vadd.f32 0.0, %v2465
    %v2467 = vpop.f32.mrb[0].mxu0
    %v2468 = vadd.f32 0.0, %v2467
    %2469 = vdwg.mxu0
    %2470 = vmatprep.subr.mxu0 %v2338
    %2471 = vmatpush1.msra.mxu0 %v2337
    %2472 = vmatprep.subr.mxu0 %v2342
    %2473 = vmatpush1.msra.mxu0 %v2341
    %2474 = vmatprep.subr.mxu0 %v2346
    %2475 = vmatpush1.msra.mxu0 %v2345
    %2476 = vmatprep.subr.mxu0 %v2350
    %2477 = vmatpush1.msra.mxu0 %v2349
    %2478 = vmatprep.subr.mxu0 %v2354
    %2479 = vmatpush1.msra.mxu0 %v2353
    %2480 = vmatprep.subr.mxu0 %v2358
    %2481 = vmatpush1.msra.mxu0 %v2357
    %2482 = vmatprep.subr.mxu0 %v2362
    %2483 = vmatpush1.msra.mxu0 %v2361
    %2484 = vmatprep.subr.mxu0 %v2366
    %2485 = vmatpush1.msra.mxu0 %v2365
    %2486 = vmatprep.subr.mxu0 %v2370
    %2487 = vmatpush1.msra.mxu0 %v2369
    %2488 = vmatprep.subr.mxu0 %v2374
    %2489 = vmatpush1.msra.mxu0 %v2373
    %2490 = vmatprep.subr.mxu0 %v2378
    %2491 = vmatpush1.msra.mxu0 %v2377
    %2492 = vmatprep.subr.mxu0 %v2382
    %2493 = vmatpush1.msra.mxu0 %v2381
    %2494 = vmatprep.subr.mxu0 %v2386
    %2495 = vmatpush1.msra.mxu0 %v2385
    %2496 = vmatprep.subr.mxu0 %v2390
    %2497 = vmatpush1.msra.mxu0 %v2389
    %2498 = vmatprep.subr.mxu0 %v2394
    %2499 = vmatpush1.msra.mxu0 %v2393
    %2500 = vmatprep.subr.mxu0 %v2398
    %2501 = vmatpush1.msra.mxu0 %v2397
    %2502 = vmatprep.subr.mxu0 0.0
    %2503 = vmatpush1.msra.mxu0 0.0
    %2504 = vmatprep.subr.mxu0 0.0
    %2505 = vmatpush1.msra.mxu0 0.0
    %2506 = vmatprep.subr.mxu0 0.0
    %2507 = vmatpush1.msra.mxu0 0.0
    %2508 = vmatprep.subr.mxu0 0.0
    %2509 = vmatpush1.msra.mxu0 0.0
    %2510 = vmatprep.subr.mxu0 0.0
    %2511 = vmatpush1.msra.mxu0 0.0
    %2512 = vmatprep.subr.mxu0 0.0
    %2513 = vmatpush1.msra.mxu0 0.0
    %2514 = vmatprep.subr.mxu0 0.0
    %2515 = vmatpush1.msra.mxu0 0.0
    %2516 = vmatprep.subr.mxu0 0.0
    %2517 = vmatpush1.msra.mxu0 0.0
    %2518 = vmatprep.subr.mxu0 0.0
    %2519 = vmatpush1.msra.mxu0 0.0
    %2520 = vmatprep.subr.mxu0 0.0
    %2521 = vmatpush1.msra.mxu0 0.0
    %2522 = vmatprep.subr.mxu0 0.0
    %2523 = vmatpush1.msra.mxu0 0.0
    %2524 = vmatprep.subr.mxu0 0.0
    %2525 = vmatpush1.msra.mxu0 0.0
    %2526 = vmatprep.subr.mxu0 0.0
    %2527 = vmatpush1.msra.mxu0 0.0
    %2528 = vmatprep.subr.mxu0 0.0
    %2529 = vmatpush1.msra.mxu0 0.0
    %2530 = vmatprep.subr.mxu0 0.0
    %2531 = vmatpush1.msra.mxu0 0.0
    %2532 = vmatprep.subr.mxu0 0.0
    %2533 = vmatpush1.msra.mxu0 0.0
    %2534 = vmatprep.mubr.f32.mxu0 0.0
    %2535 = vmatmul.mubr.f32.gmra.mrb[0].mxu0 %v2092
    %v2536 = vpop.f32.mrb[0].mxu0
    %v2537 = vadd.f32 0.0, %v2536
    %v2538 = vpop.f32.mrb[0].mxu0
    %v2539 = vadd.f32 0.0, %v2538
    %2540 = vdwg.mxu0
    %v2545 = vcombine.low %v2466, %v2468
    %v2546 = vcombine.low %v2537, %v2539
    %v2548 = vunpack.c.l.s4 1966171168
    %v2549 = vunpack.c.0.s8 %v2548
    %v2550 = vlaneseq
    %v2551 = vshrl.u32 %v2550, 7
    %v2552 = vsub.s32 %v2549, %v2551
    %v2553 = vrot.slane %v2545, %v2552
    %v2555 = vunpack.c.l.s4 1966171168
    %v2556 = vunpack.c.0.s8 %v2555
    %v2557 = vlaneseq
    %v2558 = vshrl.u32 %v2557, 7
    %v2559 = vsub.s32 %v2556, %v2558
    %v2560 = vrot.slane %v2546, %v2559
    %v2561 = vcombine.low %v2553, %v2560
    %v2563 = vunpack.c.l.s4 1966171168
    %v2564 = vunpack.c.0.s8 %v2563
    %v2565 = vlaneseq
    %v2566 = vshrl.u32 %v2565, 7
    %v2567 = vsub.s32 %v2564, %v2566
    %v2568 = vrot.slane %v2561, %v2567
    %v2570 = vadd.f32 %v2334, %v2568
    %v2571 = vxor.u32 %v2332, 2147483648
    %v2572 = vmul.f32 %v2571, 1.442695
    %v2573 = vpow.pop %v2572
    %v2574 = vadd.f32 %v2573, 1.0
    %v2575 = vrcp.pop %v2574
    %v2576 = vmul.f32 1.0, %v2575
    %v2578 = vrot.slane %v2332, 1
    %v2580 = vxor.u32 %v2578, 2147483648
    %v2581 = vmul.f32 %v2580, 1.442695
    %v2582 = vpow.pop %v2581
    %v2583 = vadd.f32 %v2582, 1.0
    %v2584 = vrcp.pop %v2583
    %v2585 = vmul.f32 1.0, %v2584
    %v2586 = vrot.slane %v2332, 2
    %v2588 = vtanh.pop %v2586
    %v2589 = vrot.slane %v2332, 3
    %v2591 = vxor.u32 %v2589, 2147483648
    %v2592 = vmul.f32 %v2591, 1.442695
    %v2593 = vpow.pop %v2592
    %v2594 = vadd.f32 %v2593, 1.0
    %v2595 = vrcp.pop %v2594
    %v2596 = vmul.f32 1.0, %v2595
    %v2597 = vmul.f32 %v2585, %v2059
    %v2598 = vmul.f32 %v2576, %v2588
    %v2599 = vadd.f32 %v2597, %v2598
    %v2600 = vtanh.pop %v2599
    %v2601 = vmul.f32 %v2596, %v2600
    %v2602 = vxor.u32 %v2570, 2147483648
    %v2603 = vmul.f32 %v2602, 1.442695
    %v2604 = vpow.pop %v2603
    %v2605 = vadd.f32 %v2604, 1.0
    %v2606 = vrcp.pop %v2605
    %v2607 = vmul.f32 1.0, %v2606
    %v2609 = vrot.slane %v2570, 1
    %v2611 = vxor.u32 %v2609, 2147483648
    %v2612 = vmul.f32 %v2611, 1.442695
    %v2613 = vpow.pop %v2612
    %v2614 = vadd.f32 %v2613, 1.0
    %v2615 = vrcp.pop %v2614
    %v2616 = vmul.f32 1.0, %v2615
    %v2617 = vrot.slane %v2570, 2
    %v2619 = vtanh.pop %v2617
    %v2620 = vrot.slane %v2570, 3
    %v2622 = vxor.u32 %v2620, 2147483648
    %v2623 = vmul.f32 %v2622, 1.442695
    %v2624 = vpow.pop %v2623
    %v2625 = vadd.f32 %v2624, 1.0
    %v2626 = vrcp.pop %v2625
    %v2627 = vmul.f32 1.0, %v2626
    %v2628 = vmul.f32 %v2616, %v2090
    %v2629 = vmul.f32 %v2607, %v2619
    %v2630 = vadd.f32 %v2628, %v2629
    %v2631 = vtanh.pop %v2630
    %v2632 = vmul.f32 %v2627, %v2631
    %2633 = vst [vmem:[#allocation3 + $0x3] sm:$0x1] %v2601
    %2634 = vst [vmem:[#allocation4 + $0x4] sm:$0x1] %v2632
    %s2635 = scalar_lea.vmem [#allocation2], 4
    %v2636 = vld [vmem:[%s2635] ss:$8 sm:$0xf]
    %v2637 = vld [vmem:[#allocation11] sm:$0xff]
    %v2638 = vld [vmem:[#allocation11 + $0x8] sm:$0xff]
    %v2639 = vld [vmem:[#allocation11 + $0x10] sm:$0xff]
    %v2640 = vld [vmem:[#allocation11 + $0x18] sm:$0xff]
    %v2641 = vld [vmem:[#allocation11 + $0x20] sm:$0xff]
    %v2642 = vld [vmem:[#allocation11 + $0x28] sm:$0xff]
    %v2643 = vld [vmem:[#allocation11 + $0x30] sm:$0xff]
    %v2644 = vld [vmem:[#allocation11 + $0x38] sm:$0xff]
    %v2645 = vld [vmem:[#allocation11 + $0x40] sm:$0xff]
    %v2646 = vld [vmem:[#allocation11 + $0x48] sm:$0xff]
    %v2647 = vld [vmem:[#allocation11 + $0x50] sm:$0xff]
    %v2648 = vld [vmem:[#allocation11 + $0x58] sm:$0xff]
    %v2649 = vld [vmem:[#allocation11 + $0x60] sm:$0xff]
    %v2650 = vld [vmem:[#allocation11 + $0x68] sm:$0xff]
    %v2651 = vld [vmem:[#allocation11 + $0x70] sm:$0xff]
    %v2652 = vld [vmem:[#allocation11 + $0x78] sm:$0xff]
    %v2653 = vld [vmem:[#allocation11 + $0x80] sm:$0xff]
    %v2654 = vld [vmem:[#allocation11 + $0x88] sm:$0xff]
    %v2655 = vld [vmem:[#allocation11 + $0x90] sm:$0xff]
    %v2656 = vld [vmem:[#allocation11 + $0x98] sm:$0xff]
    %v2657 = vld [vmem:[#allocation11 + $0xa0] sm:$0xff]
    %v2658 = vld [vmem:[#allocation11 + $0xa8] sm:$0xff]
    %v2659 = vld [vmem:[#allocation11 + $0xb0] sm:$0xff]
    %v2660 = vld [vmem:[#allocation11 + $0xb8] sm:$0xff]
    %v2661 = vld [vmem:[#allocation11 + $0xc0] sm:$0xff]
    %v2662 = vld [vmem:[#allocation11 + $0xc8] sm:$0xff]
    %v2663 = vld [vmem:[#allocation11 + $0xd0] sm:$0xff]
    %v2664 = vld [vmem:[#allocation11 + $0xd8] sm:$0xff]
    %v2665 = vld [vmem:[#allocation11 + $0xe0] sm:$0xff]
    %v2666 = vld [vmem:[#allocation11 + $0xe8] sm:$0xff]
    %v2667 = vld [vmem:[#allocation11 + $0xf0] sm:$0xff]
    %v2668 = vld [vmem:[#allocation11 + $0xf8] sm:$0xff]
    %v2669 = vld [vmem:[#allocation11 + $0x100] sm:$0xff]
    %v2670 = vld [vmem:[#allocation11 + $0x108] sm:$0xff]
    %v2671 = vld [vmem:[#allocation11 + $0x110] sm:$0xff]
    %v2672 = vld [vmem:[#allocation11 + $0x118] sm:$0xff]
    %v2673 = vld [vmem:[#allocation11 + $0x120] sm:$0xff]
    %v2674 = vld [vmem:[#allocation11 + $0x128] sm:$0xff]
    %v2675 = vld [vmem:[#allocation11 + $0x130] sm:$0xff]
    %v2676 = vld [vmem:[#allocation11 + $0x138] sm:$0xff]
    %v2677 = vld [vmem:[#allocation11 + $0x140] sm:$0xff]
    %v2678 = vld [vmem:[#allocation11 + $0x148] sm:$0xff]
    %v2679 = vld [vmem:[#allocation11 + $0x150] sm:$0xff]
    %v2680 = vld [vmem:[#allocation11 + $0x158] sm:$0xff]
    %v2681 = vld [vmem:[#allocation11 + $0x160] sm:$0xff]
    %v2682 = vld [vmem:[#allocation11 + $0x168] sm:$0xff]
    %v2683 = vld [vmem:[#allocation11 + $0x170] sm:$0xff]
    %v2684 = vld [vmem:[#allocation11 + $0x178] sm:$0xff]
    %v2685 = vld [vmem:[#allocation11 + $0x180] sm:$0xff]
    %v2686 = vld [vmem:[#allocation11 + $0x188] sm:$0xff]
    %v2687 = vld [vmem:[#allocation11 + $0x190] sm:$0xff]
    %v2688 = vld [vmem:[#allocation11 + $0x198] sm:$0xff]
    %v2689 = vld [vmem:[#allocation11 + $0x1a0] sm:$0xff]
    %v2690 = vld [vmem:[#allocation11 + $0x1a8] sm:$0xff]
    %v2691 = vld [vmem:[#allocation11 + $0x1b0] sm:$0xff]
    %v2692 = vld [vmem:[#allocation11 + $0x1b8] sm:$0xff]
    %v2693 = vld [vmem:[#allocation11 + $0x1c0] sm:$0xff]
    %v2694 = vld [vmem:[#allocation11 + $0x1c8] sm:$0xff]
    %v2695 = vld [vmem:[#allocation11 + $0x1d0] sm:$0xff]
    %v2696 = vld [vmem:[#allocation11 + $0x1d8] sm:$0xff]
    %v2697 = vld [vmem:[#allocation11 + $0x1e0] sm:$0xff]
    %v2698 = vld [vmem:[#allocation11 + $0x1e8] sm:$0xff]
    %v2699 = vld [vmem:[#allocation11 + $0x1f0] sm:$0xff]
    %v2700 = vld [vmem:[#allocation11 + $0x1f8] sm:$0xff]
    %2701 = vmatprep.subr.mxu0 %v2638
    %2702 = vmatpush1.msra.mxu0 %v2637
    %2703 = vmatprep.subr.mxu0 %v2642
    %2704 = vmatpush1.msra.mxu0 %v2641
    %2705 = vmatprep.subr.mxu0 %v2646
    %2706 = vmatpush1.msra.mxu0 %v2645
    %2707 = vmatprep.subr.mxu0 %v2650
    %2708 = vmatpush1.msra.mxu0 %v2649
    %2709 = vmatprep.subr.mxu0 %v2654
    %2710 = vmatpush1.msra.mxu0 %v2653
    %2711 = vmatprep.subr.mxu0 %v2658
    %2712 = vmatpush1.msra.mxu0 %v2657
    %2713 = vmatprep.subr.mxu0 %v2662
    %2714 = vmatpush1.msra.mxu0 %v2661
    %2715 = vmatprep.subr.mxu0 %v2666
    %2716 = vmatpush1.msra.mxu0 %v2665
    %2717 = vmatprep.subr.mxu0 %v2670
    %2718 = vmatpush1.msra.mxu0 %v2669
    %2719 = vmatprep.subr.mxu0 %v2674
    %2720 = vmatpush1.msra.mxu0 %v2673
    %2721 = vmatprep.subr.mxu0 %v2678
    %2722 = vmatpush1.msra.mxu0 %v2677
    %2723 = vmatprep.subr.mxu0 %v2682
    %2724 = vmatpush1.msra.mxu0 %v2681
    %2725 = vmatprep.subr.mxu0 %v2686
    %2726 = vmatpush1.msra.mxu0 %v2685
    %2727 = vmatprep.subr.mxu0 %v2690
    %2728 = vmatpush1.msra.mxu0 %v2689
    %2729 = vmatprep.subr.mxu0 %v2694
    %2730 = vmatpush1.msra.mxu0 %v2693
    %2731 = vmatprep.subr.mxu0 %v2698
    %2732 = vmatpush1.msra.mxu0 %v2697
    %2733 = vmatprep.subr.mxu0 0.0
    %2734 = vmatpush1.msra.mxu0 0.0
    %2735 = vmatprep.subr.mxu0 0.0
    %2736 = vmatpush1.msra.mxu0 0.0
    %2737 = vmatprep.subr.mxu0 0.0
    %2738 = vmatpush1.msra.mxu0 0.0
    %2739 = vmatprep.subr.mxu0 0.0
    %2740 = vmatpush1.msra.mxu0 0.0
    %2741 = vmatprep.subr.mxu0 0.0
    %2742 = vmatpush1.msra.mxu0 0.0
    %2743 = vmatprep.subr.mxu0 0.0
    %2744 = vmatpush1.msra.mxu0 0.0
    %2745 = vmatprep.subr.mxu0 0.0
    %2746 = vmatpush1.msra.mxu0 0.0
    %2747 = vmatprep.subr.mxu0 0.0
    %2748 = vmatpush1.msra.mxu0 0.0
    %2749 = vmatprep.subr.mxu0 0.0
    %2750 = vmatpush1.msra.mxu0 0.0
    %2751 = vmatprep.subr.mxu0 0.0
    %2752 = vmatpush1.msra.mxu0 0.0
    %2753 = vmatprep.subr.mxu0 0.0
    %2754 = vmatpush1.msra.mxu0 0.0
    %2755 = vmatprep.subr.mxu0 0.0
    %2756 = vmatpush1.msra.mxu0 0.0
    %2757 = vmatprep.subr.mxu0 0.0
    %2758 = vmatpush1.msra.mxu0 0.0
    %2759 = vmatprep.subr.mxu0 0.0
    %2760 = vmatpush1.msra.mxu0 0.0
    %2761 = vmatprep.subr.mxu0 0.0
    %2762 = vmatpush1.msra.mxu0 0.0
    %2763 = vmatprep.subr.mxu0 0.0
    %2764 = vmatpush1.msra.mxu0 0.0
    %2765 = vmatprep.mubr.f32.mxu0 0.0
    %2766 = vmatmul.mubr.f32.gmra.mrb[0].mxu0 %v2601
    %v2767 = vpop.f32.mrb[0].mxu0
    %v2768 = vadd.f32 0.0, %v2767
    %v2769 = vpop.f32.mrb[0].mxu0
    %v2770 = vadd.f32 0.0, %v2769
    %2771 = vdwg.mxu0
    %2772 = vmatprep.subr.mxu0 %v2640
    %2773 = vmatpush1.msra.mxu0 %v2639
    %2774 = vmatprep.subr.mxu0 %v2644
    %2775 = vmatpush1.msra.mxu0 %v2643
    %2776 = vmatprep.subr.mxu0 %v2648
    %2777 = vmatpush1.msra.mxu0 %v2647
    %2778 = vmatprep.subr.mxu0 %v2652
    %2779 = vmatpush1.msra.mxu0 %v2651
    %2780 = vmatprep.subr.mxu0 %v2656
    %2781 = vmatpush1.msra.mxu0 %v2655
    %2782 = vmatprep.subr.mxu0 %v2660
    %2783 = vmatpush1.msra.mxu0 %v2659
    %2784 = vmatprep.subr.mxu0 %v2664
    %2785 = vmatpush1.msra.mxu0 %v2663
    %2786 = vmatprep.subr.mxu0 %v2668
    %2787 = vmatpush1.msra.mxu0 %v2667
    %2788 = vmatprep.subr.mxu0 %v2672
    %2789 = vmatpush1.msra.mxu0 %v2671
    %2790 = vmatprep.subr.mxu0 %v2676
    %2791 = vmatpush1.msra.mxu0 %v2675
    %2792 = vmatprep.subr.mxu0 %v2680
    %2793 = vmatpush1.msra.mxu0 %v2679
    %2794 = vmatprep.subr.mxu0 %v2684
    %2795 = vmatpush1.msra.mxu0 %v2683
    %2796 = vmatprep.subr.mxu0 %v2688
    %2797 = vmatpush1.msra.mxu0 %v2687
    %2798 = vmatprep.subr.mxu0 %v2692
    %2799 = vmatpush1.msra.mxu0 %v2691
    %2800 = vmatprep.subr.mxu0 %v2696
    %2801 = vmatpush1.msra.mxu0 %v2695
    %2802 = vmatprep.subr.mxu0 %v2700
    %2803 = vmatpush1.msra.mxu0 %v2699
    %2804 = vmatprep.subr.mxu0 0.0
    %2805 = vmatpush1.msra.mxu0 0.0
    %2806 = vmatprep.subr.mxu0 0.0
    %2807 = vmatpush1.msra.mxu0 0.0
    %2808 = vmatprep.subr.mxu0 0.0
    %2809 = vmatpush1.msra.mxu0 0.0
    %2810 = vmatprep.subr.mxu0 0.0
    %2811 = vmatpush1.msra.mxu0 0.0
    %2812 = vmatprep.subr.mxu0 0.0
    %2813 = vmatpush1.msra.mxu0 0.0
    %2814 = vmatprep.subr.mxu0 0.0
    %2815 = vmatpush1.msra.mxu0 0.0
    %2816 = vmatprep.subr.mxu0 0.0
    %2817 = vmatpush1.msra.mxu0 0.0
    %2818 = vmatprep.subr.mxu0 0.0
    %2819 = vmatpush1.msra.mxu0 0.0
    %2820 = vmatprep.subr.mxu0 0.0
    %2821 = vmatpush1.msra.mxu0 0.0
    %2822 = vmatprep.subr.mxu0 0.0
    %2823 = vmatpush1.msra.mxu0 0.0
    %2824 = vmatprep.subr.mxu0 0.0
    %2825 = vmatpush1.msra.mxu0 0.0
    %2826 = vmatprep.subr.mxu0 0.0
    %2827 = vmatpush1.msra.mxu0 0.0
    %2828 = vmatprep.subr.mxu0 0.0
    %2829 = vmatpush1.msra.mxu0 0.0
    %2830 = vmatprep.subr.mxu0 0.0
    %2831 = vmatpush1.msra.mxu0 0.0
    %2832 = vmatprep.subr.mxu0 0.0
    %2833 = vmatpush1.msra.mxu0 0.0
    %2834 = vmatprep.subr.mxu0 0.0
    %2835 = vmatpush1.msra.mxu0 0.0
    %2836 = vmatprep.mubr.f32.mxu0 0.0
    %2837 = vmatmul.mubr.f32.gmra.mrb[0].mxu0 %v2601
    %v2838 = vpop.f32.mrb[0].mxu0
    %v2839 = vadd.f32 0.0, %v2838
    %v2840 = vpop.f32.mrb[0].mxu0
    %v2841 = vadd.f32 0.0, %v2840
    %2842 = vdwg.mxu0
    %v2847 = vcombine.low %v2768, %v2770
    %v2848 = vcombine.low %v2839, %v2841
    %v2850 = vunpack.c.l.s4 1966171168
    %v2851 = vunpack.c.0.s8 %v2850
    %v2852 = vlaneseq
    %v2853 = vshrl.u32 %v2852, 7
    %v2854 = vsub.s32 %v2851, %v2853
    %v2855 = vrot.slane %v2847, %v2854
    %v2857 = vunpack.c.l.s4 1966171168
    %v2858 = vunpack.c.0.s8 %v2857
    %v2859 = vlaneseq
    %v2860 = vshrl.u32 %v2859, 7
    %v2861 = vsub.s32 %v2858, %v2860
    %v2862 = vrot.slane %v2848, %v2861
    %v2863 = vcombine.low %v2855, %v2862
    %v2865 = vunpack.c.l.s4 1966171168
    %v2866 = vunpack.c.0.s8 %v2865
    %v2867 = vlaneseq
    %v2868 = vshrl.u32 %v2867, 7
    %v2869 = vsub.s32 %v2866, %v2868
    %v2870 = vrot.slane %v2863, %v2869
    %v2872 = vadd.f32 %v2636, %v2870
    %s2873 = scalar_lea.vmem [#allocation2], 35
    %v2874 = vld [vmem:[%s2873] ss:$8 sm:$0xf]
    %v2875 = vld [vmem:[#allocation13] sm:$0xff]
    %v2876 = vld [vmem:[#allocation13 + $0x8] sm:$0xff]
    %v2877 = vld [vmem:[#allocation13 + $0x10] sm:$0xff]
    %v2878 = vld [vmem:[#allocation13 + $0x18] sm:$0xff]
    %v2879 = vld [vmem:[#allocation13 + $0x20] sm:$0xff]
    %v2880 = vld [vmem:[#allocation13 + $0x28] sm:$0xff]
    %v2881 = vld [vmem:[#allocation13 + $0x30] sm:$0xff]
    %v2882 = vld [vmem:[#allocation13 + $0x38] sm:$0xff]
    %v2883 = vld [vmem:[#allocation13 + $0x40] sm:$0xff]
    %v2884 = vld [vmem:[#allocation13 + $0x48] sm:$0xff]
    %v2885 = vld [vmem:[#allocation13 + $0x50] sm:$0xff]
    %v2886 = vld [vmem:[#allocation13 + $0x58] sm:$0xff]
    %v2887 = vld [vmem:[#allocation13 + $0x60] sm:$0xff]
    %v2888 = vld [vmem:[#allocation13 + $0x68] sm:$0xff]
    %v2889 = vld [vmem:[#allocation13 + $0x70] sm:$0xff]
    %v2890 = vld [vmem:[#allocation13 + $0x78] sm:$0xff]
    %v2891 = vld [vmem:[#allocation13 + $0x80] sm:$0xff]
    %v2892 = vld [vmem:[#allocation13 + $0x88] sm:$0xff]
    %v2893 = vld [vmem:[#allocation13 + $0x90] sm:$0xff]
    %v2894 = vld [vmem:[#allocation13 + $0x98] sm:$0xff]
    %v2895 = vld [vmem:[#allocation13 + $0xa0] sm:$0xff]
    %v2896 = vld [vmem:[#allocation13 + $0xa8] sm:$0xff]
    %v2897 = vld [vmem:[#allocation13 + $0xb0] sm:$0xff]
    %v2898 = vld [vmem:[#allocation13 + $0xb8] sm:$0xff]
    %v2899 = vld [vmem:[#allocation13 + $0xc0] sm:$0xff]
    %v2900 = vld [vmem:[#allocation13 + $0xc8] sm:$0xff]
    %v2901 = vld [vmem:[#allocation13 + $0xd0] sm:$0xff]
    %v2902 = vld [vmem:[#allocation13 + $0xd8] sm:$0xff]
    %v2903 = vld [vmem:[#allocation13 + $0xe0] sm:$0xff]
    %v2904 = vld [vmem:[#allocation13 + $0xe8] sm:$0xff]
    %v2905 = vld [vmem:[#allocation13 + $0xf0] sm:$0xff]
    %v2906 = vld [vmem:[#allocation13 + $0xf8] sm:$0xff]
    %v2907 = vld [vmem:[#allocation13 + $0x100] sm:$0xff]
    %v2908 = vld [vmem:[#allocation13 + $0x108] sm:$0xff]
    %v2909 = vld [vmem:[#allocation13 + $0x110] sm:$0xff]
    %v2910 = vld [vmem:[#allocation13 + $0x118] sm:$0xff]
    %v2911 = vld [vmem:[#allocation13 + $0x120] sm:$0xff]
    %v2912 = vld [vmem:[#allocation13 + $0x128] sm:$0xff]
    %v2913 = vld [vmem:[#allocation13 + $0x130] sm:$0xff]
    %v2914 = vld [vmem:[#allocation13 + $0x138] sm:$0xff]
    %v2915 = vld [vmem:[#allocation13 + $0x140] sm:$0xff]
    %v2916 = vld [vmem:[#allocation13 + $0x148] sm:$0xff]
    %v2917 = vld [vmem:[#allocation13 + $0x150] sm:$0xff]
    %v2918 = vld [vmem:[#allocation13 + $0x158] sm:$0xff]
    %v2919 = vld [vmem:[#allocation13 + $0x160] sm:$0xff]
    %v2920 = vld [vmem:[#allocation13 + $0x168] sm:$0xff]
    %v2921 = vld [vmem:[#allocation13 + $0x170] sm:$0xff]
    %v2922 = vld [vmem:[#allocation13 + $0x178] sm:$0xff]
    %v2923 = vld [vmem:[#allocation13 + $0x180] sm:$0xff]
    %v2924 = vld [vmem:[#allocation13 + $0x188] sm:$0xff]
    %v2925 = vld [vmem:[#allocation13 + $0x190] sm:$0xff]
    %v2926 = vld [vmem:[#allocation13 + $0x198] sm:$0xff]
    %v2927 = vld [vmem:[#allocation13 + $0x1a0] sm:$0xff]
    %v2928 = vld [vmem:[#allocation13 + $0x1a8] sm:$0xff]
    %v2929 = vld [vmem:[#allocation13 + $0x1b0] sm:$0xff]
    %v2930 = vld [vmem:[#allocation13 + $0x1b8] sm:$0xff]
    %v2931 = vld [vmem:[#allocation13 + $0x1c0] sm:$0xff]
    %v2932 = vld [vmem:[#allocation13 + $0x1c8] sm:$0xff]
    %v2933 = vld [vmem:[#allocation13 + $0x1d0] sm:$0xff]
    %v2934 = vld [vmem:[#allocation13 + $0x1d8] sm:$0xff]
    %v2935 = vld [vmem:[#allocation13 + $0x1e0] sm:$0xff]
    %v2936 = vld [vmem:[#allocation13 + $0x1e8] sm:$0xff]
    %v2937 = vld [vmem:[#allocation13 + $0x1f0] sm:$0xff]
    %v2938 = vld [vmem:[#allocation13 + $0x1f8] sm:$0xff]
    %2939 = vmatprep.subr.mxu0 %v2876
    %2940 = vmatpush1.msra.mxu0 %v2875
    %2941 = vmatprep.subr.mxu0 %v2880
    %2942 = vmatpush1.msra.mxu0 %v2879
    %2943 = vmatprep.subr.mxu0 %v2884
    %2944 = vmatpush1.msra.mxu0 %v2883
    %2945 = vmatprep.subr.mxu0 %v2888
    %2946 = vmatpush1.msra.mxu0 %v2887
    %2947 = vmatprep.subr.mxu0 %v2892
    %2948 = vmatpush1.msra.mxu0 %v2891
    %2949 = vmatprep.subr.mxu0 %v2896
    %2950 = vmatpush1.msra.mxu0 %v2895
    %2951 = vmatprep.subr.mxu0 %v2900
    %2952 = vmatpush1.msra.mxu0 %v2899
    %2953 = vmatprep.subr.mxu0 %v2904
    %2954 = vmatpush1.msra.mxu0 %v2903
    %2955 = vmatprep.subr.mxu0 %v2908
    %2956 = vmatpush1.msra.mxu0 %v2907
    %2957 = vmatprep.subr.mxu0 %v2912
    %2958 = vmatpush1.msra.mxu0 %v2911
    %2959 = vmatprep.subr.mxu0 %v2916
    %2960 = vmatpush1.msra.mxu0 %v2915
    %2961 = vmatprep.subr.mxu0 %v2920
    %2962 = vmatpush1.msra.mxu0 %v2919
    %2963 = vmatprep.subr.mxu0 %v2924
    %2964 = vmatpush1.msra.mxu0 %v2923
    %2965 = vmatprep.subr.mxu0 %v2928
    %2966 = vmatpush1.msra.mxu0 %v2927
    %2967 = vmatprep.subr.mxu0 %v2932
    %2968 = vmatpush1.msra.mxu0 %v2931
    %2969 = vmatprep.subr.mxu0 %v2936
    %2970 = vmatpush1.msra.mxu0 %v2935
    %2971 = vmatprep.subr.mxu0 0.0
    %2972 = vmatpush1.msra.mxu0 0.0
    %2973 = vmatprep.subr.mxu0 0.0
    %2974 = vmatpush1.msra.mxu0 0.0
    %2975 = vmatprep.subr.mxu0 0.0
    %2976 = vmatpush1.msra.mxu0 0.0
    %2977 = vmatprep.subr.mxu0 0.0
    %2978 = vmatpush1.msra.mxu0 0.0
    %2979 = vmatprep.subr.mxu0 0.0
    %2980 = vmatpush1.msra.mxu0 0.0
    %2981 = vmatprep.subr.mxu0 0.0
    %2982 = vmatpush1.msra.mxu0 0.0
    %2983 = vmatprep.subr.mxu0 0.0
    %2984 = vmatpush1.msra.mxu0 0.0
    %2985 = vmatprep.subr.mxu0 0.0
    %2986 = vmatpush1.msra.mxu0 0.0
    %2987 = vmatprep.subr.mxu0 0.0
    %2988 = vmatpush1.msra.mxu0 0.0
    %2989 = vmatprep.subr.mxu0 0.0
    %2990 = vmatpush1.msra.mxu0 0.0
    %2991 = vmatprep.subr.mxu0 0.0
    %2992 = vmatpush1.msra.mxu0 0.0
    %2993 = vmatprep.subr.mxu0 0.0
    %2994 = vmatpush1.msra.mxu0 0.0
    %2995 = vmatprep.subr.mxu0 0.0
    %2996 = vmatpush1.msra.mxu0 0.0
    %2997 = vmatprep.subr.mxu0 0.0
    %2998 = vmatpush1.msra.mxu0 0.0
    %2999 = vmatprep.subr.mxu0 0.0
    %3000 = vmatpush1.msra.mxu0 0.0
    %3001 = vmatprep.subr.mxu0 0.0
    %3002 = vmatpush1.msra.mxu0 0.0
    %3003 = vmatprep.mubr.f32.mxu0 0.0
    %3004 = vmatmul.mubr.f32.gmra.mrb[0].mxu0 %v2632
    %v3005 = vpop.f32.mrb[0].mxu0
    %v3006 = vadd.f32 0.0, %v3005
    %v3007 = vpop.f32.mrb[0].mxu0
    %v3008 = vadd.f32 0.0, %v3007
    %3009 = vdwg.mxu0
    %3010 = vmatprep.subr.mxu0 %v2878
    %3011 = vmatpush1.msra.mxu0 %v2877
    %3012 = vmatprep.subr.mxu0 %v2882
    %3013 = vmatpush1.msra.mxu0 %v2881
    %3014 = vmatprep.subr.mxu0 %v2886
    %3015 = vmatpush1.msra.mxu0 %v2885
    %3016 = vmatprep.subr.mxu0 %v2890
    %3017 = vmatpush1.msra.mxu0 %v2889
    %3018 = vmatprep.subr.mxu0 %v2894
    %3019 = vmatpush1.msra.mxu0 %v2893
    %3020 = vmatprep.subr.mxu0 %v2898
    %3021 = vmatpush1.msra.mxu0 %v2897
    %3022 = vmatprep.subr.mxu0 %v2902
    %3023 = vmatpush1.msra.mxu0 %v2901
    %3024 = vmatprep.subr.mxu0 %v2906
    %3025 = vmatpush1.msra.mxu0 %v2905
    %3026 = vmatprep.subr.mxu0 %v2910
    %3027 = vmatpush1.msra.mxu0 %v2909
    %3028 = vmatprep.subr.mxu0 %v2914
    %3029 = vmatpush1.msra.mxu0 %v2913
    %3030 = vmatprep.subr.mxu0 %v2918
    %3031 = vmatpush1.msra.mxu0 %v2917
    %3032 = vmatprep.subr.mxu0 %v2922
    %3033 = vmatpush1.msra.mxu0 %v2921
    %3034 = vmatprep.subr.mxu0 %v2926
    %3035 = vmatpush1.msra.mxu0 %v2925
    %3036 = vmatprep.subr.mxu0 %v2930
    %3037 = vmatpush1.msra.mxu0 %v2929
    %3038 = vmatprep.subr.mxu0 %v2934
    %3039 = vmatpush1.msra.mxu0 %v2933
    %3040 = vmatprep.subr.mxu0 %v2938
    %3041 = vmatpush1.msra.mxu0 %v2937
    %3042 = vmatprep.subr.mxu0 0.0
    %3043 = vmatpush1.msra.mxu0 0.0
    %3044 = vmatprep.subr.mxu0 0.0
    %3045 = vmatpush1.msra.mxu0 0.0
    %3046 = vmatprep.subr.mxu0 0.0
    %3047 = vmatpush1.msra.mxu0 0.0
    %3048 = vmatprep.subr.mxu0 0.0
    %3049 = vmatpush1.msra.mxu0 0.0
    %3050 = vmatprep.subr.mxu0 0.0
    %3051 = vmatpush1.msra.mxu0 0.0
    %3052 = vmatprep.subr.mxu0 0.0
    %3053 = vmatpush1.msra.mxu0 0.0
    %3054 = vmatprep.subr.mxu0 0.0
    %3055 = vmatpush1.msra.mxu0 0.0
    %3056 = vmatprep.subr.mxu0 0.0
    %3057 = vmatpush1.msra.mxu0 0.0
    %3058 = vmatprep.subr.mxu0 0.0
    %3059 = vmatpush1.msra.mxu0 0.0
    %3060 = vmatprep.subr.mxu0 0.0
    %3061 = vmatpush1.msra.mxu0 0.0
    %3062 = vmatprep.subr.mxu0 0.0
    %3063 = vmatpush1.msra.mxu0 0.0
    %3064 = vmatprep.subr.mxu0 0.0
    %3065 = vmatpush1.msra.mxu0 0.0
    %3066 = vmatprep.subr.mxu0 0.0
    %3067 = vmatpush1.msra.mxu0 0.0
    %3068 = vmatprep.subr.mxu0 0.0
    %3069 = vmatpush1.msra.mxu0 0.0
    %3070 = vmatprep.subr.mxu0 0.0
    %3071 = vmatpush1.msra.mxu0 0.0
    %3072 = vmatprep.subr.mxu0 0.0
    %3073 = vmatpush1.msra.mxu0 0.0
    %3074 = vmatprep.mubr.f32.mxu0 0.0
    %3075 = vmatmul.mubr.f32.gmra.mrb[0].mxu0 %v2632
    %v3076 = vpop.f32.mrb[0].mxu0
    %v3077 = vadd.f32 0.0, %v3076
    %v3078 = vpop.f32.mrb[0].mxu0
    %v3079 = vadd.f32 0.0, %v3078
    %3080 = vdwg.mxu0
    %v3085 = vcombine.low %v3006, %v3008
    %v3086 = vcombine.low %v3077, %v3079
    %v3088 = vunpack.c.l.s4 1966171168
    %v3089 = vunpack.c.0.s8 %v3088
    %v3090 = vlaneseq
    %v3091 = vshrl.u32 %v3090, 7
    %v3092 = vsub.s32 %v3089, %v3091
    %v3093 = vrot.slane %v3085, %v3092
    %v3095 = vunpack.c.l.s4 1966171168
    %v3096 = vunpack.c.0.s8 %v3095
    %v3097 = vlaneseq
    %v3098 = vshrl.u32 %v3097, 7
    %v3099 = vsub.s32 %v3096, %v3098
    %v3100 = vrot.slane %v3086, %v3099
    %v3101 = vcombine.low %v3093, %v3100
    %v3103 = vunpack.c.l.s4 1966171168
    %v3104 = vunpack.c.0.s8 %v3103
    %v3105 = vlaneseq
    %v3106 = vshrl.u32 %v3105, 7
    %v3107 = vsub.s32 %v3104, %v3106
    %v3108 = vrot.slane %v3101, %v3107
    %v3110 = vadd.f32 %v2874, %v3108
    %v3111 = vxor.u32 %v2872, 2147483648
    %v3112 = vmul.f32 %v3111, 1.442695
    %v3113 = vpow.pop %v3112
    %v3114 = vadd.f32 %v3113, 1.0
    %v3115 = vrcp.pop %v3114
    %v3116 = vmul.f32 1.0, %v3115
    %v3118 = vrot.slane %v2872, 1
    %v3120 = vxor.u32 %v3118, 2147483648
    %v3121 = vmul.f32 %v3120, 1.442695
    %v3122 = vpow.pop %v3121
    %v3123 = vadd.f32 %v3122, 1.0
    %v3124 = vrcp.pop %v3123
    %v3125 = vmul.f32 1.0, %v3124
    %v3126 = vrot.slane %v2872, 2
    %v3128 = vtanh.pop %v3126
    %v3129 = vrot.slane %v2872, 3
    %v3131 = vxor.u32 %v3129, 2147483648
    %v3132 = vmul.f32 %v3131, 1.442695
    %v3133 = vpow.pop %v3132
    %v3134 = vadd.f32 %v3133, 1.0
    %v3135 = vrcp.pop %v3134
    %v3136 = vmul.f32 1.0, %v3135
    %v3137 = vmul.f32 %v3125, %v2599
    %v3138 = vmul.f32 %v3116, %v3128
    %v3139 = vadd.f32 %v3137, %v3138
    %v3140 = vtanh.pop %v3139
    %v3141 = vmul.f32 %v3136, %v3140
    %v3142 = vxor.u32 %v3110, 2147483648
    %v3143 = vmul.f32 %v3142, 1.442695
    %v3144 = vpow.pop %v3143
    %v3145 = vadd.f32 %v3144, 1.0
    %v3146 = vrcp.pop %v3145
    %v3147 = vmul.f32 1.0, %v3146
    %v3149 = vrot.slane %v3110, 1
    %v3151 = vxor.u32 %v3149, 2147483648
    %v3152 = vmul.f32 %v3151, 1.442695
    %v3153 = vpow.pop %v3152
    %v3154 = vadd.f32 %v3153, 1.0
    %v3155 = vrcp.pop %v3154
    %v3156 = vmul.f32 1.0, %v3155
    %v3157 = vrot.slane %v3110, 2
    %v3159 = vtanh.pop %v3157
    %v3160 = vrot.slane %v3110, 3
    %v3162 = vxor.u32 %v3160, 2147483648
    %v3163 = vmul.f32 %v3162, 1.442695
    %v3164 = vpow.pop %v3163
    %v3165 = vadd.f32 %v3164, 1.0
    %v3166 = vrcp.pop %v3165
    %v3167 = vmul.f32 1.0, %v3166
    %v3168 = vmul.f32 %v3156, %v2630
    %v3169 = vmul.f32 %v3147, %v3159
    %v3170 = vadd.f32 %v3168, %v3169
    %v3171 = vtanh.pop %v3170
    %v3172 = vmul.f32 %v3167, %v3171
    %3173 = vst [vmem:[#allocation3 + $0x4] sm:$0x1] %v3141
    %3174 = vst [vmem:[#allocation4 + $0x3] sm:$0x1] %v3172
    %s3175 = scalar_lea.vmem [#allocation2], 5
    %v3176 = vld [vmem:[%s3175] ss:$8 sm:$0xf]
    %v3177 = vld [vmem:[#allocation11] sm:$0xff]
    %v3178 = vld [vmem:[#allocation11 + $0x8] sm:$0xff]
    %v3179 = vld [vmem:[#allocation11 + $0x10] sm:$0xff]
    %v3180 = vld [vmem:[#allocation11 + $0x18] sm:$0xff]
    %v3181 = vld [vmem:[#allocation11 + $0x20] sm:$0xff]
    %v3182 = vld [vmem:[#allocation11 + $0x28] sm:$0xff]
    %v3183 = vld [vmem:[#allocation11 + $0x30] sm:$0xff]
    %v3184 = vld [vmem:[#allocation11 + $0x38] sm:$0xff]
    %v3185 = vld [vmem:[#allocation11 + $0x40] sm:$0xff]
    %v3186 = vld [vmem:[#allocation11 + $0x48] sm:$0xff]
    %v3187 = vld [vmem:[#allocation11 + $0x50] sm:$0xff]
    %v3188 = vld [vmem:[#allocation11 + $0x58] sm:$0xff]
    %v3189 = vld [vmem:[#allocation11 + $0x60] sm:$0xff]
    %v3190 = vld [vmem:[#allocation11 + $0x68] sm:$0xff]
    %v3191 = vld [vmem:[#allocation11 + $0x70] sm:$0xff]
    %v3192 = vld [vmem:[#allocation11 + $0x78] sm:$0xff]
    %v3193 = vld [vmem:[#allocation11 + $0x80] sm:$0xff]
    %v3194 = vld [vmem:[#allocation11 + $0x88] sm:$0xff]
    %v3195 = vld [vmem:[#allocation11 + $0x90] sm:$0xff]
    %v3196 = vld [vmem:[#allocation11 + $0x98] sm:$0xff]
    %v3197 = vld [vmem:[#allocation11 + $0xa0] sm:$0xff]
    %v3198 = vld [vmem:[#allocation11 + $0xa8] sm:$0xff]
    %v3199 = vld [vmem:[#allocation11 + $0xb0] sm:$0xff]
    %v3200 = vld [vmem:[#allocation11 + $0xb8] sm:$0xff]
    %v3201 = vld [vmem:[#allocation11 + $0xc0] sm:$0xff]
    %v3202 = vld [vmem:[#allocation11 + $0xc8] sm:$0xff]
    %v3203 = vld [vmem:[#allocation11 + $0xd0] sm:$0xff]
    %v3204 = vld [vmem:[#allocation11 + $0xd8] sm:$0xff]
    %v3205 = vld [vmem:[#allocation11 + $0xe0] sm:$0xff]
    %v3206 = vld [vmem:[#allocation11 + $0xe8] sm:$0xff]
    %v3207 = vld [vmem:[#allocation11 + $0xf0] sm:$0xff]
    %v3208 = vld [vmem:[#allocation11 + $0xf8] sm:$0xff]
    %v3209 = vld [vmem:[#allocation11 + $0x100] sm:$0xff]
    %v3210 = vld [vmem:[#allocation11 + $0x108] sm:$0xff]
    %v3211 = vld [vmem:[#allocation11 + $0x110] sm:$0xff]
    %v3212 = vld [vmem:[#allocation11 + $0x118] sm:$0xff]
    %v3213 = vld [vmem:[#allocation11 + $0x120] sm:$0xff]
    %v3214 = vld [vmem:[#allocation11 + $0x128] sm:$0xff]
    %v3215 = vld [vmem:[#allocation11 + $0x130] sm:$0xff]
    %v3216 = vld [vmem:[#allocation11 + $0x138] sm:$0xff]
    %v3217 = vld [vmem:[#allocation11 + $0x140] sm:$0xff]
    %v3218 = vld [vmem:[#allocation11 + $0x148] sm:$0xff]
    %v3219 = vld [vmem:[#allocation11 + $0x150] sm:$0xff]
    %v3220 = vld [vmem:[#allocation11 + $0x158] sm:$0xff]
    %v3221 = vld [vmem:[#allocation11 + $0x160] sm:$0xff]
    %v3222 = vld [vmem:[#allocation11 + $0x168] sm:$0xff]
    %v3223 = vld [vmem:[#allocation11 + $0x170] sm:$0xff]
    %v3224 = vld [vmem:[#allocation11 + $0x178] sm:$0xff]
    %v3225 = vld [vmem:[#allocation11 + $0x180] sm:$0xff]
    %v3226 = vld [vmem:[#allocation11 + $0x188] sm:$0xff]
    %v3227 = vld [vmem:[#allocation11 + $0x190] sm:$0xff]
    %v3228 = vld [vmem:[#allocation11 + $0x198] sm:$0xff]
    %v3229 = vld [vmem:[#allocation11 + $0x1a0] sm:$0xff]
    %v3230 = vld [vmem:[#allocation11 + $0x1a8] sm:$0xff]
    %v3231 = vld [vmem:[#allocation11 + $0x1b0] sm:$0xff]
    %v3232 = vld [vmem:[#allocation11 + $0x1b8] sm:$0xff]
    %v3233 = vld [vmem:[#allocation11 + $0x1c0] sm:$0xff]
    %v3234 = vld [vmem:[#allocation11 + $0x1c8] sm:$0xff]
    %v3235 = vld [vmem:[#allocation11 + $0x1d0] sm:$0xff]
    %v3236 = vld [vmem:[#allocation11 + $0x1d8] sm:$0xff]
    %v3237 = vld [vmem:[#allocation11 + $0x1e0] sm:$0xff]
    %v3238 = vld [vmem:[#allocation11 + $0x1e8] sm:$0xff]
    %v3239 = vld [vmem:[#allocation11 + $0x1f0] sm:$0xff]
    %v3240 = vld [vmem:[#allocation11 + $0x1f8] sm:$0xff]
    %3241 = vmatprep.subr.mxu0 %v3178
    %3242 = vmatpush1.msra.mxu0 %v3177
    %3243 = vmatprep.subr.mxu0 %v3182
    %3244 = vmatpush1.msra.mxu0 %v3181
    %3245 = vmatprep.subr.mxu0 %v3186
    %3246 = vmatpush1.msra.mxu0 %v3185
    %3247 = vmatprep.subr.mxu0 %v3190
    %3248 = vmatpush1.msra.mxu0 %v3189
    %3249 = vmatprep.subr.mxu0 %v3194
    %3250 = vmatpush1.msra.mxu0 %v3193
    %3251 = vmatprep.subr.mxu0 %v3198
    %3252 = vmatpush1.msra.mxu0 %v3197
    %3253 = vmatprep.subr.mxu0 %v3202
    %3254 = vmatpush1.msra.mxu0 %v3201
    %3255 = vmatprep.subr.mxu0 %v3206
    %3256 = vmatpush1.msra.mxu0 %v3205
    %3257 = vmatprep.subr.mxu0 %v3210
    %3258 = vmatpush1.msra.mxu0 %v3209
    %3259 = vmatprep.subr.mxu0 %v3214
    %3260 = vmatpush1.msra.mxu0 %v3213
    %3261 = vmatprep.subr.mxu0 %v3218
    %3262 = vmatpush1.msra.mxu0 %v3217
    %3263 = vmatprep.subr.mxu0 %v3222
    %3264 = vmatpush1.msra.mxu0 %v3221
    %3265 = vmatprep.subr.mxu0 %v3226
    %3266 = vmatpush1.msra.mxu0 %v3225
    %3267 = vmatprep.subr.mxu0 %v3230
    %3268 = vmatpush1.msra.mxu0 %v3229
    %3269 = vmatprep.subr.mxu0 %v3234
    %3270 = vmatpush1.msra.mxu0 %v3233
    %3271 = vmatprep.subr.mxu0 %v3238
    %3272 = vmatpush1.msra.mxu0 %v3237
    %3273 = vmatprep.subr.mxu0 0.0
    %3274 = vmatpush1.msra.mxu0 0.0
    %3275 = vmatprep.subr.mxu0 0.0
    %3276 = vmatpush1.msra.mxu0 0.0
    %3277 = vmatprep.subr.mxu0 0.0
    %3278 = vmatpush1.msra.mxu0 0.0
    %3279 = vmatprep.subr.mxu0 0.0
    %3280 = vmatpush1.msra.mxu0 0.0
    %3281 = vmatprep.subr.mxu0 0.0
    %3282 = vmatpush1.msra.mxu0 0.0
    %3283 = vmatprep.subr.mxu0 0.0
    %3284 = vmatpush1.msra.mxu0 0.0
    %3285 = vmatprep.subr.mxu0 0.0
    %3286 = vmatpush1.msra.mxu0 0.0
    %3287 = vmatprep.subr.mxu0 0.0
    %3288 = vmatpush1.msra.mxu0 0.0
    %3289 = vmatprep.subr.mxu0 0.0
    %3290 = vmatpush1.msra.mxu0 0.0
    %3291 = vmatprep.subr.mxu0 0.0
    %3292 = vmatpush1.msra.mxu0 0.0
    %3293 = vmatprep.subr.mxu0 0.0
    %3294 = vmatpush1.msra.mxu0 0.0
    %3295 = vmatprep.subr.mxu0 0.0
    %3296 = vmatpush1.msra.mxu0 0.0
    %3297 = vmatprep.subr.mxu0 0.0
    %3298 = vmatpush1.msra.mxu0 0.0
    %3299 = vmatprep.subr.mxu0 0.0
    %3300 = vmatpush1.msra.mxu0 0.0
    %3301 = vmatprep.subr.mxu0 0.0
    %3302 = vmatpush1.msra.mxu0 0.0
    %3303 = vmatprep.subr.mxu0 0.0
    %3304 = vmatpush1.msra.mxu0 0.0
    %3305 = vmatprep.mubr.f32.mxu0 0.0
    %3306 = vmatmul.mubr.f32.gmra.mrb[0].mxu0 %v3141
    %v3307 = vpop.f32.mrb[0].mxu0
    %v3308 = vadd.f32 0.0, %v3307
    %v3309 = vpop.f32.mrb[0].mxu0
    %v3310 = vadd.f32 0.0, %v3309
    %3311 = vdwg.mxu0
    %3312 = vmatprep.subr.mxu0 %v3180
    %3313 = vmatpush1.msra.mxu0 %v3179
    %3314 = vmatprep.subr.mxu0 %v3184
    %3315 = vmatpush1.msra.mxu0 %v3183
    %3316 = vmatprep.subr.mxu0 %v3188
    %3317 = vmatpush1.msra.mxu0 %v3187
    %3318 = vmatprep.subr.mxu0 %v3192
    %3319 = vmatpush1.msra.mxu0 %v3191
    %3320 = vmatprep.subr.mxu0 %v3196
    %3321 = vmatpush1.msra.mxu0 %v3195
    %3322 = vmatprep.subr.mxu0 %v3200
    %3323 = vmatpush1.msra.mxu0 %v3199
    %3324 = vmatprep.subr.mxu0 %v3204
    %3325 = vmatpush1.msra.mxu0 %v3203
    %3326 = vmatprep.subr.mxu0 %v3208
    %3327 = vmatpush1.msra.mxu0 %v3207
    %3328 = vmatprep.subr.mxu0 %v3212
    %3329 = vmatpush1.msra.mxu0 %v3211
    %3330 = vmatprep.subr.mxu0 %v3216
    %3331 = vmatpush1.msra.mxu0 %v3215
    %3332 = vmatprep.subr.mxu0 %v3220
    %3333 = vmatpush1.msra.mxu0 %v3219
    %3334 = vmatprep.subr.mxu0 %v3224
    %3335 = vmatpush1.msra.mxu0 %v3223
    %3336 = vmatprep.subr.mxu0 %v3228
    %3337 = vmatpush1.msra.mxu0 %v3227
    %3338 = vmatprep.subr.mxu0 %v3232
    %3339 = vmatpush1.msra.mxu0 %v3231
    %3340 = vmatprep.subr.mxu0 %v3236
    %3341 = vmatpush1.msra.mxu0 %v3235
    %3342 = vmatprep.subr.mxu0 %v3240
    %3343 = vmatpush1.msra.mxu0 %v3239
    %3344 = vmatprep.subr.mxu0 0.0
    %3345 = vmatpush1.msra.mxu0 0.0
    %3346 = vmatprep.subr.mxu0 0.0
    %3347 = vmatpush1.msra.mxu0 0.0
    %3348 = vmatprep.subr.mxu0 0.0
    %3349 = vmatpush1.msra.mxu0 0.0
    %3350 = vmatprep.subr.mxu0 0.0
    %3351 = vmatpush1.msra.mxu0 0.0
    %3352 = vmatprep.subr.mxu0 0.0
    %3353 = vmatpush1.msra.mxu0 0.0
    %3354 = vmatprep.subr.mxu0 0.0
    %3355 = vmatpush1.msra.mxu0 0.0
    %3356 = vmatprep.subr.mxu0 0.0
    %3357 = vmatpush1.msra.mxu0 0.0
    %3358 = vmatprep.subr.mxu0 0.0
    %3359 = vmatpush1.msra.mxu0 0.0
    %3360 = vmatprep.subr.mxu0 0.0
    %3361 = vmatpush1.msra.mxu0 0.0
    %3362 = vmatprep.subr.mxu0 0.0
    %3363 = vmatpush1.msra.mxu0 0.0
    %3364 = vmatprep.subr.mxu0 0.0
    %3365 = vmatpush1.msra.mxu0 0.0
    %3366 = vmatprep.subr.mxu0 0.0
    %3367 = vmatpush1.msra.mxu0 0.0
    %3368 = vmatprep.subr.mxu0 0.0
    %3369 = vmatpush1.msra.mxu0 0.0
    %3370 = vmatprep.subr.mxu0 0.0
    %3371 = vmatpush1.msra.mxu0 0.0
    %3372 = vmatprep.subr.mxu0 0.0
    %3373 = vmatpush1.msra.mxu0 0.0
    %3374 = vmatprep.subr.mxu0 0.0
    %3375 = vmatpush1.msra.mxu0 0.0
    %3376 = vmatprep.mubr.f32.mxu0 0.0
    %3377 = vmatmul.mubr.f32.gmra.mrb[0].mxu0 %v3141
    %v3378 = vpop.f32.mrb[0].mxu0
    %v3379 = vadd.f32 0.0, %v3378
    %v3380 = vpop.f32.mrb[0].mxu0
    %v3381 = vadd.f32 0.0, %v3380
    %3382 = vdwg.mxu0
    %v3387 = vcombine.low %v3308, %v3310
    %v3388 = vcombine.low %v3379, %v3381
    %v3390 = vunpack.c.l.s4 1966171168
    %v3391 = vunpack.c.0.s8 %v3390
    %v3392 = vlaneseq
    %v3393 = vshrl.u32 %v3392, 7
    %v3394 = vsub.s32 %v3391, %v3393
    %v3395 = vrot.slane %v3387, %v3394
    %v3397 = vunpack.c.l.s4 1966171168
    %v3398 = vunpack.c.0.s8 %v3397
    %v3399 = vlaneseq
    %v3400 = vshrl.u32 %v3399, 7
    %v3401 = vsub.s32 %v3398, %v3400
    %v3402 = vrot.slane %v3388, %v3401
    %v3403 = vcombine.low %v3395, %v3402
    %v3405 = vunpack.c.l.s4 1966171168
    %v3406 = vunpack.c.0.s8 %v3405
    %v3407 = vlaneseq
    %v3408 = vshrl.u32 %v3407, 7
    %v3409 = vsub.s32 %v3406, %v3408
    %v3410 = vrot.slane %v3403, %v3409
    %v3412 = vadd.f32 %v3176, %v3410
    %s3413 = scalar_lea.vmem [#allocation2], 34
    %v3414 = vld [vmem:[%s3413] ss:$8 sm:$0xf]
    %v3415 = vld [vmem:[#allocation13] sm:$0xff]
    %v3416 = vld [vmem:[#allocation13 + $0x8] sm:$0xff]
    %v3417 = vld [vmem:[#allocation13 + $0x10] sm:$0xff]
    %v3418 = vld [vmem:[#allocation13 + $0x18] sm:$0xff]
    %v3419 = vld [vmem:[#allocation13 + $0x20] sm:$0xff]
    %v3420 = vld [vmem:[#allocation13 + $0x28] sm:$0xff]
    %v3421 = vld [vmem:[#allocation13 + $0x30] sm:$0xff]
    %v3422 = vld [vmem:[#allocation13 + $0x38] sm:$0xff]
    %v3423 = vld [vmem:[#allocation13 + $0x40] sm:$0xff]
    %v3424 = vld [vmem:[#allocation13 + $0x48] sm:$0xff]
    %v3425 = vld [vmem:[#allocation13 + $0x50] sm:$0xff]
    %v3426 = vld [vmem:[#allocation13 + $0x58] sm:$0xff]
    %v3427 = vld [vmem:[#allocation13 + $0x60] sm:$0xff]
    %v3428 = vld [vmem:[#allocation13 + $0x68] sm:$0xff]
    %v3429 = vld [vmem:[#allocation13 + $0x70] sm:$0xff]
    %v3430 = vld [vmem:[#allocation13 + $0x78] sm:$0xff]
    %v3431 = vld [vmem:[#allocation13 + $0x80] sm:$0xff]
    %v3432 = vld [vmem:[#allocation13 + $0x88] sm:$0xff]
    %v3433 = vld [vmem:[#allocation13 + $0x90] sm:$0xff]
    %v3434 = vld [vmem:[#allocation13 + $0x98] sm:$0xff]
    %v3435 = vld [vmem:[#allocation13 + $0xa0] sm:$0xff]
    %v3436 = vld [vmem:[#allocation13 + $0xa8] sm:$0xff]
    %v3437 = vld [vmem:[#allocation13 + $0xb0] sm:$0xff]
    %v3438 = vld [vmem:[#allocation13 + $0xb8] sm:$0xff]
    %v3439 = vld [vmem:[#allocation13 + $0xc0] sm:$0xff]
    %v3440 = vld [vmem:[#allocation13 + $0xc8] sm:$0xff]
    %v3441 = vld [vmem:[#allocation13 + $0xd0] sm:$0xff]
    %v3442 = vld [vmem:[#allocation13 + $0xd8] sm:$0xff]
    %v3443 = vld [vmem:[#allocation13 + $0xe0] sm:$0xff]
    %v3444 = vld [vmem:[#allocation13 + $0xe8] sm:$0xff]
    %v3445 = vld [vmem:[#allocation13 + $0xf0] sm:$0xff]
    %v3446 = vld [vmem:[#allocation13 + $0xf8] sm:$0xff]
    %v3447 = vld [vmem:[#allocation13 + $0x100] sm:$0xff]
    %v3448 = vld [vmem:[#allocation13 + $0x108] sm:$0xff]
    %v3449 = vld [vmem:[#allocation13 + $0x110] sm:$0xff]
    %v3450 = vld [vmem:[#allocation13 + $0x118] sm:$0xff]
    %v3451 = vld [vmem:[#allocation13 + $0x120] sm:$0xff]
    %v3452 = vld [vmem:[#allocation13 + $0x128] sm:$0xff]
    %v3453 = vld [vmem:[#allocation13 + $0x130] sm:$0xff]
    %v3454 = vld [vmem:[#allocation13 + $0x138] sm:$0xff]
    %v3455 = vld [vmem:[#allocation13 + $0x140] sm:$0xff]
    %v3456 = vld [vmem:[#allocation13 + $0x148] sm:$0xff]
    %v3457 = vld [vmem:[#allocation13 + $0x150] sm:$0xff]
    %v3458 = vld [vmem:[#allocation13 + $0x158] sm:$0xff]
    %v3459 = vld [vmem:[#allocation13 + $0x160] sm:$0xff]
    %v3460 = vld [vmem:[#allocation13 + $0x168] sm:$0xff]
    %v3461 = vld [vmem:[#allocation13 + $0x170] sm:$0xff]
    %v3462 = vld [vmem:[#allocation13 + $0x178] sm:$0xff]
    %v3463 = vld [vmem:[#allocation13 + $0x180] sm:$0xff]
    %v3464 = vld [vmem:[#allocation13 + $0x188] sm:$0xff]
    %v3465 = vld [vmem:[#allocation13 + $0x190] sm:$0xff]
    %v3466 = vld [vmem:[#allocation13 + $0x198] sm:$0xff]
    %v3467 = vld [vmem:[#allocation13 + $0x1a0] sm:$0xff]
    %v3468 = vld [vmem:[#allocation13 + $0x1a8] sm:$0xff]
    %v3469 = vld [vmem:[#allocation13 + $0x1b0] sm:$0xff]
    %v3470 = vld [vmem:[#allocation13 + $0x1b8] sm:$0xff]
    %v3471 = vld [vmem:[#allocation13 + $0x1c0] sm:$0xff]
    %v3472 = vld [vmem:[#allocation13 + $0x1c8] sm:$0xff]
    %v3473 = vld [vmem:[#allocation13 + $0x1d0] sm:$0xff]
    %v3474 = vld [vmem:[#allocation13 + $0x1d8] sm:$0xff]
    %v3475 = vld [vmem:[#allocation13 + $0x1e0] sm:$0xff]
    %v3476 = vld [vmem:[#allocation13 + $0x1e8] sm:$0xff]
    %v3477 = vld [vmem:[#allocation13 + $0x1f0] sm:$0xff]
    %v3478 = vld [vmem:[#allocation13 + $0x1f8] sm:$0xff]
    %3479 = vmatprep.subr.mxu0 %v3416
    %3480 = vmatpush1.msra.mxu0 %v3415
    %3481 = vmatprep.subr.mxu0 %v3420
    %3482 = vmatpush1.msra.mxu0 %v3419
    %3483 = vmatprep.subr.mxu0 %v3424
    %3484 = vmatpush1.msra.mxu0 %v3423
    %3485 = vmatprep.subr.mxu0 %v3428
    %3486 = vmatpush1.msra.mxu0 %v3427
    %3487 = vmatprep.subr.mxu0 %v3432
    %3488 = vmatpush1.msra.mxu0 %v3431
    %3489 = vmatprep.subr.mxu0 %v3436
    %3490 = vmatpush1.msra.mxu0 %v3435
    %3491 = vmatprep.subr.mxu0 %v3440
    %3492 = vmatpush1.msra.mxu0 %v3439
    %3493 = vmatprep.subr.mxu0 %v3444
    %3494 = vmatpush1.msra.mxu0 %v3443
    %3495 = vmatprep.subr.mxu0 %v3448
    %3496 = vmatpush1.msra.mxu0 %v3447
    %3497 = vmatprep.subr.mxu0 %v3452
    %3498 = vmatpush1.msra.mxu0 %v3451
    %3499 = vmatprep.subr.mxu0 %v3456
    %3500 = vmatpush1.msra.mxu0 %v3455
    %3501 = vmatprep.subr.mxu0 %v3460
    %3502 = vmatpush1.msra.mxu0 %v3459
    %3503 = vmatprep.subr.mxu0 %v3464
    %3504 = vmatpush1.msra.mxu0 %v3463
    %3505 = vmatprep.subr.mxu0 %v3468
    %3506 = vmatpush1.msra.mxu0 %v3467
    %3507 = vmatprep.subr.mxu0 %v3472
    %3508 = vmatpush1.msra.mxu0 %v3471
    %3509 = vmatprep.subr.mxu0 %v3476
    %3510 = vmatpush1.msra.mxu0 %v3475
    %3511 = vmatprep.subr.mxu0 0.0
    %3512 = vmatpush1.msra.mxu0 0.0
    %3513 = vmatprep.subr.mxu0 0.0
    %3514 = vmatpush1.msra.mxu0 0.0
    %3515 = vmatprep.subr.mxu0 0.0
    %3516 = vmatpush1.msra.mxu0 0.0
    %3517 = vmatprep.subr.mxu0 0.0
    %3518 = vmatpush1.msra.mxu0 0.0
    %3519 = vmatprep.subr.mxu0 0.0
    %3520 = vmatpush1.msra.mxu0 0.0
    %3521 = vmatprep.subr.mxu0 0.0
    %3522 = vmatpush1.msra.mxu0 0.0
    %3523 = vmatprep.subr.mxu0 0.0
    %3524 = vmatpush1.msra.mxu0 0.0
    %3525 = vmatprep.subr.mxu0 0.0
    %3526 = vmatpush1.msra.mxu0 0.0
    %3527 = vmatprep.subr.mxu0 0.0
    %3528 = vmatpush1.msra.mxu0 0.0
    %3529 = vmatprep.subr.mxu0 0.0
    %3530 = vmatpush1.msra.mxu0 0.0
    %3531 = vmatprep.subr.mxu0 0.0
    %3532 = vmatpush1.msra.mxu0 0.0
    %3533 = vmatprep.subr.mxu0 0.0
    %3534 = vmatpush1.msra.mxu0 0.0
    %3535 = vmatprep.subr.mxu0 0.0
    %3536 = vmatpush1.msra.mxu0 0.0
    %3537 = vmatprep.subr.mxu0 0.0
    %3538 = vmatpush1.msra.mxu0 0.0
    %3539 = vmatprep.subr.mxu0 0.0
    %3540 = vmatpush1.msra.mxu0 0.0
    %3541 = vmatprep.subr.mxu0 0.0
    %3542 = vmatpush1.msra.mxu0 0.0
    %3543 = vmatprep.mubr.f32.mxu0 0.0
    %3544 = vmatmul.mubr.f32.gmra.mrb[0].mxu0 %v3172
    %v3545 = vpop.f32.mrb[0].mxu0
    %v3546 = vadd.f32 0.0, %v3545
    %v3547 = vpop.f32.mrb[0].mxu0
    %v3548 = vadd.f32 0.0, %v3547
    %3549 = vdwg.mxu0
    %3550 = vmatprep.subr.mxu0 %v3418
    %3551 = vmatpush1.msra.mxu0 %v3417
    %3552 = vmatprep.subr.mxu0 %v3422
    %3553 = vmatpush1.msra.mxu0 %v3421
    %3554 = vmatprep.subr.mxu0 %v3426
    %3555 = vmatpush1.msra.mxu0 %v3425
    %3556 = vmatprep.subr.mxu0 %v3430
    %3557 = vmatpush1.msra.mxu0 %v3429
    %3558 = vmatprep.subr.mxu0 %v3434
    %3559 = vmatpush1.msra.mxu0 %v3433
    %3560 = vmatprep.subr.mxu0 %v3438
    %3561 = vmatpush1.msra.mxu0 %v3437
    %3562 = vmatprep.subr.mxu0 %v3442
    %3563 = vmatpush1.msra.mxu0 %v3441
    %3564 = vmatprep.subr.mxu0 %v3446
    %3565 = vmatpush1.msra.mxu0 %v3445
    %3566 = vmatprep.subr.mxu0 %v3450
    %3567 = vmatpush1.msra.mxu0 %v3449
    %3568 = vmatprep.subr.mxu0 %v3454
    %3569 = vmatpush1.msra.mxu0 %v3453
    %3570 = vmatprep.subr.mxu0 %v3458
    %3571 = vmatpush1.msra.mxu0 %v3457
    %3572 = vmatprep.subr.mxu0 %v3462
    %3573 = vmatpush1.msra.mxu0 %v3461
    %3574 = vmatprep.subr.mxu0 %v3466
    %3575 = vmatpush1.msra.mxu0 %v3465
    %3576 = vmatprep.subr.mxu0 %v3470
    %3577 = vmatpush1.msra.mxu0 %v3469
    %3578 = vmatprep.subr.mxu0 %v3474
    %3579 = vmatpush1.msra.mxu0 %v3473
    %3580 = vmatprep.subr.mxu0 %v3478
    %3581 = vmatpush1.msra.mxu0 %v3477
    %3582 = vmatprep.subr.mxu0 0.0
    %3583 = vmatpush1.msra.mxu0 0.0
    %3584 = vmatprep.subr.mxu0 0.0
    %3585 = vmatpush1.msra.mxu0 0.0
    %3586 = vmatprep.subr.mxu0 0.0
    %3587 = vmatpush1.msra.mxu0 0.0
    %3588 = vmatprep.subr.mxu0 0.0
    %3589 = vmatpush1.msra.mxu0 0.0
    %3590 = vmatprep.subr.mxu0 0.0
    %3591 = vmatpush1.msra.mxu0 0.0
    %3592 = vmatprep.subr.mxu0 0.0
    %3593 = vmatpush1.msra.mxu0 0.0
    %3594 = vmatprep.subr.mxu0 0.0
    %3595 = vmatpush1.msra.mxu0 0.0
    %3596 = vmatprep.subr.mxu0 0.0
    %3597 = vmatpush1.msra.mxu0 0.0
    %3598 = vmatprep.subr.mxu0 0.0
    %3599 = vmatpush1.msra.mxu0 0.0
    %3600 = vmatprep.subr.mxu0 0.0
    %3601 = vmatpush1.msra.mxu0 0.0
    %3602 = vmatprep.subr.mxu0 0.0
    %3603 = vmatpush1.msra.mxu0 0.0
    %3604 = vmatprep.subr.mxu0 0.0
    %3605 = vmatpush1.msra.mxu0 0.0
    %3606 = vmatprep.subr.mxu0 0.0
    %3607 = vmatpush1.msra.mxu0 0.0
    %3608 = vmatprep.subr.mxu0 0.0
    %3609 = vmatpush1.msra.mxu0 0.0
    %3610 = vmatprep.subr.mxu0 0.0
    %3611 = vmatpush1.msra.mxu0 0.0
    %3612 = vmatprep.subr.mxu0 0.0
    %3613 = vmatpush1.msra.mxu0 0.0
    %3614 = vmatprep.mubr.f32.mxu0 0.0
    %3615 = vmatmul.mubr.f32.gmra.mrb[0].mxu0 %v3172
    %v3616 = vpop.f32.mrb[0].mxu0
    %v3617 = vadd.f32 0.0, %v3616
    %v3618 = vpop.f32.mrb[0].mxu0
    %v3619 = vadd.f32 0.0, %v3618
    %3620 = vdwg.mxu0
    %v3625 = vcombine.low %v3546, %v3548
    %v3626 = vcombine.low %v3617, %v3619
    %v3628 = vunpack.c.l.s4 1966171168
    %v3629 = vunpack.c.0.s8 %v3628
    %v3630 = vlaneseq
    %v3631 = vshrl.u32 %v3630, 7
    %v3632 = vsub.s32 %v3629, %v3631
    %v3633 = vrot.slane %v3625, %v3632
    %v3635 = vunpack.c.l.s4 1966171168
    %v3636 = vunpack.c.0.s8 %v3635
    %v3637 = vlaneseq
    %v3638 = vshrl.u32 %v3637, 7
    %v3639 = vsub.s32 %v3636, %v3638
    %v3640 = vrot.slane %v3626, %v3639
    %v3641 = vcombine.low %v3633, %v3640
    %v3643 = vunpack.c.l.s4 1966171168
    %v3644 = vunpack.c.0.s8 %v3643
    %v3645 = vlaneseq
    %v3646 = vshrl.u32 %v3645, 7
    %v3647 = vsub.s32 %v3644, %v3646
    %v3648 = vrot.slane %v3641, %v3647
    %v3650 = vadd.f32 %v3414, %v3648
    %v3651 = vxor.u32 %v3412, 2147483648
    %v3652 = vmul.f32 %v3651, 1.442695
    %v3653 = vpow.pop %v3652
    %v3654 = vadd.f32 %v3653, 1.0
    %v3655 = vrcp.pop %v3654
    %v3656 = vmul.f32 1.0, %v3655
    %v3658 = vrot.slane %v3412, 1
    %v3660 = vxor.u32 %v3658, 2147483648
    %v3661 = vmul.f32 %v3660, 1.442695
    %v3662 = vpow.pop %v3661
    %v3663 = vadd.f32 %v3662, 1.0
    %v3664 = vrcp.pop %v3663
    %v3665 = vmul.f32 1.0, %v3664
    %v3666 = vrot.slane %v3412, 2
    %v3668 = vtanh.pop %v3666
    %v3669 = vrot.slane %v3412, 3
    %v3671 = vxor.u32 %v3669, 2147483648
    %v3672 = vmul.f32 %v3671, 1.442695
    %v3673 = vpow.pop %v3672
    %v3674 = vadd.f32 %v3673, 1.0
    %v3675 = vrcp.pop %v3674
    %v3676 = vmul.f32 1.0, %v3675
    %v3677 = vmul.f32 %v3665, %v3139
    %v3678 = vmul.f32 %v3656, %v3668
    %v3679 = vadd.f32 %v3677, %v3678
    %v3680 = vtanh.pop %v3679
    %v3681 = vmul.f32 %v3676, %v3680
    %v3682 = vxor.u32 %v3650, 2147483648
    %v3683 = vmul.f32 %v3682, 1.442695
    %v3684 = vpow.pop %v3683
    %v3685 = vadd.f32 %v3684, 1.0
    %v3686 = vrcp.pop %v3685
    %v3687 = vmul.f32 1.0, %v3686
    %v3689 = vrot.slane %v3650, 1
    %v3691 = vxor.u32 %v3689, 2147483648
    %v3692 = vmul.f32 %v3691, 1.442695
    %v3693 = vpow.pop %v3692
    %v3694 = vadd.f32 %v3693, 1.0
    %v3695 = vrcp.pop %v3694
    %v3696 = vmul.f32 1.0, %v3695
    %v3697 = vrot.slane %v3650, 2
    %v3699 = vtanh.pop %v3697
    %v3700 = vrot.slane %v3650, 3
    %v3702 = vxor.u32 %v3700, 2147483648
    %v3703 = vmul.f32 %v3702, 1.442695
    %v3704 = vpow.pop %v3703
    %v3705 = vadd.f32 %v3704, 1.0
    %v3706 = vrcp.pop %v3705
    %v3707 = vmul.f32 1.0, %v3706
    %v3708 = vmul.f32 %v3696, %v3170
    %v3709 = vmul.f32 %v3687, %v3699
    %v3710 = vadd.f32 %v3708, %v3709
    %v3711 = vtanh.pop %v3710
    %v3712 = vmul.f32 %v3707, %v3711
    %3713 = vst [vmem:[#allocation3 + $0x5] sm:$0x1] %v3681
    %3714 = vst [vmem:[#allocation4 + $0x2] sm:$0x1] %v3712
    %s3715 = scalar_lea.vmem [#allocation2], 6
    %v3716 = vld [vmem:[%s3715] ss:$8 sm:$0xf]
    %v3717 = vld [vmem:[#allocation11] sm:$0xff]
    %v3718 = vld [vmem:[#allocation11 + $0x8] sm:$0xff]
    %v3719 = vld [vmem:[#allocation11 + $0x10] sm:$0xff]
    %v3720 = vld [vmem:[#allocation11 + $0x18] sm:$0xff]
    %v3721 = vld [vmem:[#allocation11 + $0x20] sm:$0xff]
    %v3722 = vld [vmem:[#allocation11 + $0x28] sm:$0xff]
    %v3723 = vld [vmem:[#allocation11 + $0x30] sm:$0xff]
    %v3724 = vld [vmem:[#allocation11 + $0x38] sm:$0xff]
    %v3725 = vld [vmem:[#allocation11 + $0x40] sm:$0xff]
    %v3726 = vld [vmem:[#allocation11 + $0x48] sm:$0xff]
    %v3727 = vld [vmem:[#allocation11 + $0x50] sm:$0xff]
    %v3728 = vld [vmem:[#allocation11 + $0x58] sm:$0xff]
    %v3729 = vld [vmem:[#allocation11 + $0x60] sm:$0xff]
    %v3730 = vld [vmem:[#allocation11 + $0x68] sm:$0xff]
    %v3731 = vld [vmem:[#allocation11 + $0x70] sm:$0xff]
    %v3732 = vld [vmem:[#allocation11 + $0x78] sm:$0xff]
    %v3733 = vld [vmem:[#allocation11 + $0x80] sm:$0xff]
    %v3734 = vld [vmem:[#allocation11 + $0x88] sm:$0xff]
    %v3735 = vld [vmem:[#allocation11 + $0x90] sm:$0xff]
    %v3736 = vld [vmem:[#allocation11 + $0x98] sm:$0xff]
    %v3737 = vld [vmem:[#allocation11 + $0xa0] sm:$0xff]
    %v3738 = vld [vmem:[#allocation11 + $0xa8] sm:$0xff]
    %v3739 = vld [vmem:[#allocation11 + $0xb0] sm:$0xff]
    %v3740 = vld [vmem:[#allocation11 + $0xb8] sm:$0xff]
    %v3741 = vld [vmem:[#allocation11 + $0xc0] sm:$0xff]
    %v3742 = vld [vmem:[#allocation11 + $0xc8] sm:$0xff]
    %v3743 = vld [vmem:[#allocation11 + $0xd0] sm:$0xff]
    %v3744 = vld [vmem:[#allocation11 + $0xd8] sm:$0xff]
    %v3745 = vld [vmem:[#allocation11 + $0xe0] sm:$0xff]
    %v3746 = vld [vmem:[#allocation11 + $0xe8] sm:$0xff]
    %v3747 = vld [vmem:[#allocation11 + $0xf0] sm:$0xff]
    %v3748 = vld [vmem:[#allocation11 + $0xf8] sm:$0xff]
    %v3749 = vld [vmem:[#allocation11 + $0x100] sm:$0xff]
    %v3750 = vld [vmem:[#allocation11 + $0x108] sm:$0xff]
    %v3751 = vld [vmem:[#allocation11 + $0x110] sm:$0xff]
    %v3752 = vld [vmem:[#allocation11 + $0x118] sm:$0xff]
    %v3753 = vld [vmem:[#allocation11 + $0x120] sm:$0xff]
    %v3754 = vld [vmem:[#allocation11 + $0x128] sm:$0xff]
    %v3755 = vld [vmem:[#allocation11 + $0x130] sm:$0xff]
    %v3756 = vld [vmem:[#allocation11 + $0x138] sm:$0xff]
    %v3757 = vld [vmem:[#allocation11 + $0x140] sm:$0xff]
    %v3758 = vld [vmem:[#allocation11 + $0x148] sm:$0xff]
    %v3759 = vld [vmem:[#allocation11 + $0x150] sm:$0xff]
    %v3760 = vld [vmem:[#allocation11 + $0x158] sm:$0xff]
    %v3761 = vld [vmem:[#allocation11 + $0x160] sm:$0xff]
    %v3762 = vld [vmem:[#allocation11 + $0x168] sm:$0xff]
    %v3763 = vld [vmem:[#allocation11 + $0x170] sm:$0xff]
    %v3764 = vld [vmem:[#allocation11 + $0x178] sm:$0xff]
    %v3765 = vld [vmem:[#allocation11 + $0x180] sm:$0xff]
    %v3766 = vld [vmem:[#allocation11 + $0x188] sm:$0xff]
    %v3767 = vld [vmem:[#allocation11 + $0x190] sm:$0xff]
    %v3768 = vld [vmem:[#allocation11 + $0x198] sm:$0xff]
    %v3769 = vld [vmem:[#allocation11 + $0x1a0] sm:$0xff]
    %v3770 = vld [vmem:[#allocation11 + $0x1a8] sm:$0xff]
    %v3771 = vld [vmem:[#allocation11 + $0x1b0] sm:$0xff]
    %v3772 = vld [vmem:[#allocation11 + $0x1b8] sm:$0xff]
    %v3773 = vld [vmem:[#allocation11 + $0x1c0] sm:$0xff]
    %v3774 = vld [vmem:[#allocation11 + $0x1c8] sm:$0xff]
    %v3775 = vld [vmem:[#allocation11 + $0x1d0] sm:$0xff]
    %v3776 = vld [vmem:[#allocation11 + $0x1d8] sm:$0xff]
    %v3777 = vld [vmem:[#allocation11 + $0x1e0] sm:$0xff]
    %v3778 = vld [vmem:[#allocation11 + $0x1e8] sm:$0xff]
    %v3779 = vld [vmem:[#allocation11 + $0x1f0] sm:$0xff]
    %v3780 = vld [vmem:[#allocation11 + $0x1f8] sm:$0xff]
    %3781 = vmatprep.subr.mxu0 %v3718
    %3782 = vmatpush1.msra.mxu0 %v3717
    %3783 = vmatprep.subr.mxu0 %v3722
    %3784 = vmatpush1.msra.mxu0 %v3721
    %3785 = vmatprep.subr.mxu0 %v3726
    %3786 = vmatpush1.msra.mxu0 %v3725
    %3787 = vmatprep.subr.mxu0 %v3730
    %3788 = vmatpush1.msra.mxu0 %v3729
    %3789 = vmatprep.subr.mxu0 %v3734
    %3790 = vmatpush1.msra.mxu0 %v3733
    %3791 = vmatprep.subr.mxu0 %v3738
    %3792 = vmatpush1.msra.mxu0 %v3737
    %3793 = vmatprep.subr.mxu0 %v3742
    %3794 = vmatpush1.msra.mxu0 %v3741
    %3795 = vmatprep.subr.mxu0 %v3746
    %3796 = vmatpush1.msra.mxu0 %v3745
    %3797 = vmatprep.subr.mxu0 %v3750
    %3798 = vmatpush1.msra.mxu0 %v3749
    %3799 = vmatprep.subr.mxu0 %v3754
    %3800 = vmatpush1.msra.mxu0 %v3753
    %3801 = vmatprep.subr.mxu0 %v3758
    %3802 = vmatpush1.msra.mxu0 %v3757
    %3803 = vmatprep.subr.mxu0 %v3762
    %3804 = vmatpush1.msra.mxu0 %v3761
    %3805 = vmatprep.subr.mxu0 %v3766
    %3806 = vmatpush1.msra.mxu0 %v3765
    %3807 = vmatprep.subr.mxu0 %v3770
    %3808 = vmatpush1.msra.mxu0 %v3769
    %3809 = vmatprep.subr.mxu0 %v3774
    %3810 = vmatpush1.msra.mxu0 %v3773
    %3811 = vmatprep.subr.mxu0 %v3778
    %3812 = vmatpush1.msra.mxu0 %v3777
    %3813 = vmatprep.subr.mxu0 0.0
    %3814 = vmatpush1.msra.mxu0 0.0
    %3815 = vmatprep.subr.mxu0 0.0
    %3816 = vmatpush1.msra.mxu0 0.0
    %3817 = vmatprep.subr.mxu0 0.0
    %3818 = vmatpush1.msra.mxu0 0.0
    %3819 = vmatprep.subr.mxu0 0.0
    %3820 = vmatpush1.msra.mxu0 0.0
    %3821 = vmatprep.subr.mxu0 0.0
    %3822 = vmatpush1.msra.mxu0 0.0
    %3823 = vmatprep.subr.mxu0 0.0
    %3824 = vmatpush1.msra.mxu0 0.0
    %3825 = vmatprep.subr.mxu0 0.0
    %3826 = vmatpush1.msra.mxu0 0.0
    %3827 = vmatprep.subr.mxu0 0.0
    %3828 = vmatpush1.msra.mxu0 0.0
    %3829 = vmatprep.subr.mxu0 0.0
    %3830 = vmatpush1.msra.mxu0 0.0
    %3831 = vmatprep.subr.mxu0 0.0
    %3832 = vmatpush1.msra.mxu0 0.0
    %3833 = vmatprep.subr.mxu0 0.0
    %3834 = vmatpush1.msra.mxu0 0.0
    %3835 = vmatprep.subr.mxu0 0.0
    %3836 = vmatpush1.msra.mxu0 0.0
    %3837 = vmatprep.subr.mxu0 0.0
    %3838 = vmatpush1.msra.mxu0 0.0
    %3839 = vmatprep.subr.mxu0 0.0
    %3840 = vmatpush1.msra.mxu0 0.0
    %3841 = vmatprep.subr.mxu0 0.0
    %3842 = vmatpush1.msra.mxu0 0.0
    %3843 = vmatprep.subr.mxu0 0.0
    %3844 = vmatpush1.msra.mxu0 0.0
    %3845 = vmatprep.mubr.f32.mxu0 0.0
    %3846 = vmatmul.mubr.f32.gmra.mrb[0].mxu0 %v3681
    %v3847 = vpop.f32.mrb[0].mxu0
    %v3848 = vadd.f32 0.0, %v3847
    %v3849 = vpop.f32.mrb[0].mxu0
    %v3850 = vadd.f32 0.0, %v3849
    %3851 = vdwg.mxu0
    %3852 = vmatprep.subr.mxu0 %v3720
    %3853 = vmatpush1.msra.mxu0 %v3719
    %3854 = vmatprep.subr.mxu0 %v3724
    %3855 = vmatpush1.msra.mxu0 %v3723
    %3856 = vmatprep.subr.mxu0 %v3728
    %3857 = vmatpush1.msra.mxu0 %v3727
    %3858 = vmatprep.subr.mxu0 %v3732
    %3859 = vmatpush1.msra.mxu0 %v3731
    %3860 = vmatprep.subr.mxu0 %v3736
    %3861 = vmatpush1.msra.mxu0 %v3735
    %3862 = vmatprep.subr.mxu0 %v3740
    %3863 = vmatpush1.msra.mxu0 %v3739
    %3864 = vmatprep.subr.mxu0 %v3744
    %3865 = vmatpush1.msra.mxu0 %v3743
    %3866 = vmatprep.subr.mxu0 %v3748
    %3867 = vmatpush1.msra.mxu0 %v3747
    %3868 = vmatprep.subr.mxu0 %v3752
    %3869 = vmatpush1.msra.mxu0 %v3751
    %3870 = vmatprep.subr.mxu0 %v3756
    %3871 = vmatpush1.msra.mxu0 %v3755
    %3872 = vmatprep.subr.mxu0 %v3760
    %3873 = vmatpush1.msra.mxu0 %v3759
    %3874 = vmatprep.subr.mxu0 %v3764
    %3875 = vmatpush1.msra.mxu0 %v3763
    %3876 = vmatprep.subr.mxu0 %v3768
    %3877 = vmatpush1.msra.mxu0 %v3767
    %3878 = vmatprep.subr.mxu0 %v3772
    %3879 = vmatpush1.msra.mxu0 %v3771
    %3880 = vmatprep.subr.mxu0 %v3776
    %3881 = vmatpush1.msra.mxu0 %v3775
    %3882 = vmatprep.subr.mxu0 %v3780
    %3883 = vmatpush1.msra.mxu0 %v3779
    %3884 = vmatprep.subr.mxu0 0.0
    %3885 = vmatpush1.msra.mxu0 0.0
    %3886 = vmatprep.subr.mxu0 0.0
    %3887 = vmatpush1.msra.mxu0 0.0
    %3888 = vmatprep.subr.mxu0 0.0
    %3889 = vmatpush1.msra.mxu0 0.0
    %3890 = vmatprep.subr.mxu0 0.0
    %3891 = vmatpush1.msra.mxu0 0.0
    %3892 = vmatprep.subr.mxu0 0.0
    %3893 = vmatpush1.msra.mxu0 0.0
    %3894 = vmatprep.subr.mxu0 0.0
    %3895 = vmatpush1.msra.mxu0 0.0
    %3896 = vmatprep.subr.mxu0 0.0
    %3897 = vmatpush1.msra.mxu0 0.0
    %3898 = vmatprep.subr.mxu0 0.0
    %3899 = vmatpush1.msra.mxu0 0.0
    %3900 = vmatprep.subr.mxu0 0.0
    %3901 = vmatpush1.msra.mxu0 0.0
    %3902 = vmatprep.subr.mxu0 0.0
    %3903 = vmatpush1.msra.mxu0 0.0
    %3904 = vmatprep.subr.mxu0 0.0
    %3905 = vmatpush1.msra.mxu0 0.0
    %3906 = vmatprep.subr.mxu0 0.0
    %3907 = vmatpush1.msra.mxu0 0.0
    %3908 = vmatprep.subr.mxu0 0.0
    %3909 = vmatpush1.msra.mxu0 0.0
    %3910 = vmatprep.subr.mxu0 0.0
    %3911 = vmatpush1.msra.mxu0 0.0
    %3912 = vmatprep.subr.mxu0 0.0
    %3913 = vmatpush1.msra.mxu0 0.0
    %3914 = vmatprep.subr.mxu0 0.0
    %3915 = vmatpush1.msra.mxu0 0.0
    %3916 = vmatprep.mubr.f32.mxu0 0.0
    %3917 = vmatmul.mubr.f32.gmra.mrb[0].mxu0 %v3681
    %v3918 = vpop.f32.mrb[0].mxu0
    %v3919 = vadd.f32 0.0, %v3918
    %v3920 = vpop.f32.mrb[0].mxu0
    %v3921 = vadd.f32 0.0, %v3920
    %3922 = vdwg.mxu0
    %v3927 = vcombine.low %v3848, %v3850
    %v3928 = vcombine.low %v3919, %v3921
    %v3930 = vunpack.c.l.s4 1966171168
    %v3931 = vunpack.c.0.s8 %v3930
    %v3932 = vlaneseq
    %v3933 = vshrl.u32 %v3932, 7
    %v3934 = vsub.s32 %v3931, %v3933
    %v3935 = vrot.slane %v3927, %v3934
    %v3937 = vunpack.c.l.s4 1966171168
    %v3938 = vunpack.c.0.s8 %v3937
    %v3939 = vlaneseq
    %v3940 = vshrl.u32 %v3939, 7
    %v3941 = vsub.s32 %v3938, %v3940
    %v3942 = vrot.slane %v3928, %v3941
    %v3943 = vcombine.low %v3935, %v3942
    %v3945 = vunpack.c.l.s4 1966171168
    %v3946 = vunpack.c.0.s8 %v3945
    %v3947 = vlaneseq
    %v3948 = vshrl.u32 %v3947, 7
    %v3949 = vsub.s32 %v3946, %v3948
    %v3950 = vrot.slane %v3943, %v3949
    %v3952 = vadd.f32 %v3716, %v3950
    %s3953 = scalar_lea.vmem [#allocation2], 33
    %v3954 = vld [vmem:[%s3953] ss:$8 sm:$0xf]
    %v3955 = vld [vmem:[#allocation13] sm:$0xff]
    %v3956 = vld [vmem:[#allocation13 + $0x8] sm:$0xff]
    %v3957 = vld [vmem:[#allocation13 + $0x10] sm:$0xff]
    %v3958 = vld [vmem:[#allocation13 + $0x18] sm:$0xff]
    %v3959 = vld [vmem:[#allocation13 + $0x20] sm:$0xff]
    %v3960 = vld [vmem:[#allocation13 + $0x28] sm:$0xff]
    %v3961 = vld [vmem:[#allocation13 + $0x30] sm:$0xff]
    %v3962 = vld [vmem:[#allocation13 + $0x38] sm:$0xff]
    %v3963 = vld [vmem:[#allocation13 + $0x40] sm:$0xff]
    %v3964 = vld [vmem:[#allocation13 + $0x48] sm:$0xff]
    %v3965 = vld [vmem:[#allocation13 + $0x50] sm:$0xff]
    %v3966 = vld [vmem:[#allocation13 + $0x58] sm:$0xff]
    %v3967 = vld [vmem:[#allocation13 + $0x60] sm:$0xff]
    %v3968 = vld [vmem:[#allocation13 + $0x68] sm:$0xff]
    %v3969 = vld [vmem:[#allocation13 + $0x70] sm:$0xff]
    %v3970 = vld [vmem:[#allocation13 + $0x78] sm:$0xff]
    %v3971 = vld [vmem:[#allocation13 + $0x80] sm:$0xff]
    %v3972 = vld [vmem:[#allocation13 + $0x88] sm:$0xff]
    %v3973 = vld [vmem:[#allocation13 + $0x90] sm:$0xff]
    %v3974 = vld [vmem:[#allocation13 + $0x98] sm:$0xff]
    %v3975 = vld [vmem:[#allocation13 + $0xa0] sm:$0xff]
    %v3976 = vld [vmem:[#allocation13 + $0xa8] sm:$0xff]
    %v3977 = vld [vmem:[#allocation13 + $0xb0] sm:$0xff]
    %v3978 = vld [vmem:[#allocation13 + $0xb8] sm:$0xff]
    %v3979 = vld [vmem:[#allocation13 + $0xc0] sm:$0xff]
    %v3980 = vld [vmem:[#allocation13 + $0xc8] sm:$0xff]
    %v3981 = vld [vmem:[#allocation13 + $0xd0] sm:$0xff]
    %v3982 = vld [vmem:[#allocation13 + $0xd8] sm:$0xff]
    %v3983 = vld [vmem:[#allocation13 + $0xe0] sm:$0xff]
    %v3984 = vld [vmem:[#allocation13 + $0xe8] sm:$0xff]
    %v3985 = vld [vmem:[#allocation13 + $0xf0] sm:$0xff]
    %v3986 = vld [vmem:[#allocation13 + $0xf8] sm:$0xff]
    %v3987 = vld [vmem:[#allocation13 + $0x100] sm:$0xff]
    %v3988 = vld [vmem:[#allocation13 + $0x108] sm:$0xff]
    %v3989 = vld [vmem:[#allocation13 + $0x110] sm:$0xff]
    %v3990 = vld [vmem:[#allocation13 + $0x118] sm:$0xff]
    %v3991 = vld [vmem:[#allocation13 + $0x120] sm:$0xff]
    %v3992 = vld [vmem:[#allocation13 + $0x128] sm:$0xff]
    %v3993 = vld [vmem:[#allocation13 + $0x130] sm:$0xff]
    %v3994 = vld [vmem:[#allocation13 + $0x138] sm:$0xff]
    %v3995 = vld [vmem:[#allocation13 + $0x140] sm:$0xff]
    %v3996 = vld [vmem:[#allocation13 + $0x148] sm:$0xff]
    %v3997 = vld [vmem:[#allocation13 + $0x150] sm:$0xff]
    %v3998 = vld [vmem:[#allocation13 + $0x158] sm:$0xff]
    %v3999 = vld [vmem:[#allocation13 + $0x160] sm:$0xff]
    %v4000 = vld [vmem:[#allocation13 + $0x168] sm:$0xff]
    %v4001 = vld [vmem:[#allocation13 + $0x170] sm:$0xff]
    %v4002 = vld [vmem:[#allocation13 + $0x178] sm:$0xff]
    %v4003 = vld [vmem:[#allocation13 + $0x180] sm:$0xff]
    %v4004 = vld [vmem:[#allocation13 + $0x188] sm:$0xff]
    %v4005 = vld [vmem:[#allocation13 + $0x190] sm:$0xff]
    %v4006 = vld [vmem:[#allocation13 + $0x198] sm:$0xff]
    %v4007 = vld [vmem:[#allocation13 + $0x1a0] sm:$0xff]
    %v4008 = vld [vmem:[#allocation13 + $0x1a8] sm:$0xff]
    %v4009 = vld [vmem:[#allocation13 + $0x1b0] sm:$0xff]
    %v4010 = vld [vmem:[#allocation13 + $0x1b8] sm:$0xff]
    %v4011 = vld [vmem:[#allocation13 + $0x1c0] sm:$0xff]
    %v4012 = vld [vmem:[#allocation13 + $0x1c8] sm:$0xff]
    %v4013 = vld [vmem:[#allocation13 + $0x1d0] sm:$0xff]
    %v4014 = vld [vmem:[#allocation13 + $0x1d8] sm:$0xff]
    %v4015 = vld [vmem:[#allocation13 + $0x1e0] sm:$0xff]
    %v4016 = vld [vmem:[#allocation13 + $0x1e8] sm:$0xff]
    %v4017 = vld [vmem:[#allocation13 + $0x1f0] sm:$0xff]
    %v4018 = vld [vmem:[#allocation13 + $0x1f8] sm:$0xff]
    %4019 = vmatprep.subr.mxu0 %v3956
    %4020 = vmatpush1.msra.mxu0 %v3955
    %4021 = vmatprep.subr.mxu0 %v3960
    %4022 = vmatpush1.msra.mxu0 %v3959
    %4023 = vmatprep.subr.mxu0 %v3964
    %4024 = vmatpush1.msra.mxu0 %v3963
    %4025 = vmatprep.subr.mxu0 %v3968
    %4026 = vmatpush1.msra.mxu0 %v3967
    %4027 = vmatprep.subr.mxu0 %v3972
    %4028 = vmatpush1.msra.mxu0 %v3971
    %4029 = vmatprep.subr.mxu0 %v3976
    %4030 = vmatpush1.msra.mxu0 %v3975
    %4031 = vmatprep.subr.mxu0 %v3980
    %4032 = vmatpush1.msra.mxu0 %v3979
    %4033 = vmatprep.subr.mxu0 %v3984
    %4034 = vmatpush1.msra.mxu0 %v3983
    %4035 = vmatprep.subr.mxu0 %v3988
    %4036 = vmatpush1.msra.mxu0 %v3987
    %4037 = vmatprep.subr.mxu0 %v3992
    %4038 = vmatpush1.msra.mxu0 %v3991
    %4039 = vmatprep.subr.mxu0 %v3996
    %4040 = vmatpush1.msra.mxu0 %v3995
    %4041 = vmatprep.subr.mxu0 %v4000
    %4042 = vmatpush1.msra.mxu0 %v3999
    %4043 = vmatprep.subr.mxu0 %v4004
    %4044 = vmatpush1.msra.mxu0 %v4003
    %4045 = vmatprep.subr.mxu0 %v4008
    %4046 = vmatpush1.msra.mxu0 %v4007
    %4047 = vmatprep.subr.mxu0 %v4012
    %4048 = vmatpush1.msra.mxu0 %v4011
    %4049 = vmatprep.subr.mxu0 %v4016
    %4050 = vmatpush1.msra.mxu0 %v4015
    %4051 = vmatprep.subr.mxu0 0.0
    %4052 = vmatpush1.msra.mxu0 0.0
    %4053 = vmatprep.subr.mxu0 0.0
    %4054 = vmatpush1.msra.mxu0 0.0
    %4055 = vmatprep.subr.mxu0 0.0
    %4056 = vmatpush1.msra.mxu0 0.0
    %4057 = vmatprep.subr.mxu0 0.0
    %4058 = vmatpush1.msra.mxu0 0.0
    %4059 = vmatprep.subr.mxu0 0.0
    %4060 = vmatpush1.msra.mxu0 0.0
    %4061 = vmatprep.subr.mxu0 0.0
    %4062 = vmatpush1.msra.mxu0 0.0
    %4063 = vmatprep.subr.mxu0 0.0
    %4064 = vmatpush1.msra.mxu0 0.0
    %4065 = vmatprep.subr.mxu0 0.0
    %4066 = vmatpush1.msra.mxu0 0.0
    %4067 = vmatprep.subr.mxu0 0.0
    %4068 = vmatpush1.msra.mxu0 0.0
    %4069 = vmatprep.subr.mxu0 0.0
    %4070 = vmatpush1.msra.mxu0 0.0
    %4071 = vmatprep.subr.mxu0 0.0
    %4072 = vmatpush1.msra.mxu0 0.0
    %4073 = vmatprep.subr.mxu0 0.0
    %4074 = vmatpush1.msra.mxu0 0.0
    %4075 = vmatprep.subr.mxu0 0.0
    %4076 = vmatpush1.msra.mxu0 0.0
    %4077 = vmatprep.subr.mxu0 0.0
    %4078 = vmatpush1.msra.mxu0 0.0
    %4079 = vmatprep.subr.mxu0 0.0
    %4080 = vmatpush1.msra.mxu0 0.0
    %4081 = vmatprep.subr.mxu0 0.0
    %4082 = vmatpush1.msra.mxu0 0.0
    %4083 = vmatprep.mubr.f32.mxu0 0.0
    %4084 = vmatmul.mubr.f32.gmra.mrb[0].mxu0 %v3712
    %v4085 = vpop.f32.mrb[0].mxu0
    %v4086 = vadd.f32 0.0, %v4085
    %v4087 = vpop.f32.mrb[0].mxu0
    %v4088 = vadd.f32 0.0, %v4087
    %4089 = vdwg.mxu0
    %4090 = vmatprep.subr.mxu0 %v3958
    %4091 = vmatpush1.msra.mxu0 %v3957
    %4092 = vmatprep.subr.mxu0 %v3962
    %4093 = vmatpush1.msra.mxu0 %v3961
    %4094 = vmatprep.subr.mxu0 %v3966
    %4095 = vmatpush1.msra.mxu0 %v3965
    %4096 = vmatprep.subr.mxu0 %v3970
    %4097 = vmatpush1.msra.mxu0 %v3969
    %4098 = vmatprep.subr.mxu0 %v3974
    %4099 = vmatpush1.msra.mxu0 %v3973
    %4100 = vmatprep.subr.mxu0 %v3978
    %4101 = vmatpush1.msra.mxu0 %v3977
    %4102 = vmatprep.subr.mxu0 %v3982
    %4103 = vmatpush1.msra.mxu0 %v3981
    %4104 = vmatprep.subr.mxu0 %v3986
    %4105 = vmatpush1.msra.mxu0 %v3985
    %4106 = vmatprep.subr.mxu0 %v3990
    %4107 = vmatpush1.msra.mxu0 %v3989
    %4108 = vmatprep.subr.mxu0 %v3994
    %4109 = vmatpush1.msra.mxu0 %v3993
    %4110 = vmatprep.subr.mxu0 %v3998
    %4111 = vmatpush1.msra.mxu0 %v3997
    %4112 = vmatprep.subr.mxu0 %v4002
    %4113 = vmatpush1.msra.mxu0 %v4001
    %4114 = vmatprep.subr.mxu0 %v4006
    %4115 = vmatpush1.msra.mxu0 %v4005
    %4116 = vmatprep.subr.mxu0 %v4010
    %4117 = vmatpush1.msra.mxu0 %v4009
    %4118 = vmatprep.subr.mxu0 %v4014
    %4119 = vmatpush1.msra.mxu0 %v4013
    %4120 = vmatprep.subr.mxu0 %v4018
    %4121 = vmatpush1.msra.mxu0 %v4017
    %4122 = vmatprep.subr.mxu0 0.0
    %4123 = vmatpush1.msra.mxu0 0.0
    %4124 = vmatprep.subr.mxu0 0.0
    %4125 = vmatpush1.msra.mxu0 0.0
    %4126 = vmatprep.subr.mxu0 0.0
    %4127 = vmatpush1.msra.mxu0 0.0
    %4128 = vmatprep.subr.mxu0 0.0
    %4129 = vmatpush1.msra.mxu0 0.0
    %4130 = vmatprep.subr.mxu0 0.0
    %4131 = vmatpush1.msra.mxu0 0.0
    %4132 = vmatprep.subr.mxu0 0.0
    %4133 = vmatpush1.msra.mxu0 0.0
    %4134 = vmatprep.subr.mxu0 0.0
    %4135 = vmatpush1.msra.mxu0 0.0
    %4136 = vmatprep.subr.mxu0 0.0
    %4137 = vmatpush1.msra.mxu0 0.0
    %4138 = vmatprep.subr.mxu0 0.0
    %4139 = vmatpush1.msra.mxu0 0.0
    %4140 = vmatprep.subr.mxu0 0.0
    %4141 = vmatpush1.msra.mxu0 0.0
    %4142 = vmatprep.subr.mxu0 0.0
    %4143 = vmatpush1.msra.mxu0 0.0
    %4144 = vmatprep.subr.mxu0 0.0
    %4145 = vmatpush1.msra.mxu0 0.0
    %4146 = vmatprep.subr.mxu0 0.0
    %4147 = vmatpush1.msra.mxu0 0.0
    %4148 = vmatprep.subr.mxu0 0.0
    %4149 = vmatpush1.msra.mxu0 0.0
    %4150 = vmatprep.subr.mxu0 0.0
    %4151 = vmatpush1.msra.mxu0 0.0
    %4152 = vmatprep.subr.mxu0 0.0
    %4153 = vmatpush1.msra.mxu0 0.0
    %4154 = vmatprep.mubr.f32.mxu0 0.0
    %4155 = vmatmul.mubr.f32.gmra.mrb[0].mxu0 %v3712
    %v4156 = vpop.f32.mrb[0].mxu0
    %v4157 = vadd.f32 0.0, %v4156
    %v4158 = vpop.f32.mrb[0].mxu0
    %v4159 = vadd.f32 0.0, %v4158
    %4160 = vdwg.mxu0
    %v4165 = vcombine.low %v4086, %v4088
    %v4166 = vcombine.low %v4157, %v4159
    %v4168 = vunpack.c.l.s4 1966171168
    %v4169 = vunpack.c.0.s8 %v4168
    %v4170 = vlaneseq
    %v4171 = vshrl.u32 %v4170, 7
    %v4172 = vsub.s32 %v4169, %v4171
    %v4173 = vrot.slane %v4165, %v4172
    %v4175 = vunpack.c.l.s4 1966171168
    %v4176 = vunpack.c.0.s8 %v4175
    %v4177 = vlaneseq
    %v4178 = vshrl.u32 %v4177, 7
    %v4179 = vsub.s32 %v4176, %v4178
    %v4180 = vrot.slane %v4166, %v4179
    %v4181 = vcombine.low %v4173, %v4180
    %v4183 = vunpack.c.l.s4 1966171168
    %v4184 = vunpack.c.0.s8 %v4183
    %v4185 = vlaneseq
    %v4186 = vshrl.u32 %v4185, 7
    %v4187 = vsub.s32 %v4184, %v4186
    %v4188 = vrot.slane %v4181, %v4187
    %v4190 = vadd.f32 %v3954, %v4188
    %v4191 = vxor.u32 %v3952, 2147483648
    %v4192 = vmul.f32 %v4191, 1.442695
    %v4193 = vpow.pop %v4192
    %v4194 = vadd.f32 %v4193, 1.0
    %v4195 = vrcp.pop %v4194
    %v4196 = vmul.f32 1.0, %v4195
    %v4198 = vrot.slane %v3952, 1
    %v4200 = vxor.u32 %v4198, 2147483648
    %v4201 = vmul.f32 %v4200, 1.442695
    %v4202 = vpow.pop %v4201
    %v4203 = vadd.f32 %v4202, 1.0
    %v4204 = vrcp.pop %v4203
    %v4205 = vmul.f32 1.0, %v4204
    %v4206 = vrot.slane %v3952, 2
    %v4208 = vtanh.pop %v4206
    %v4209 = vrot.slane %v3952, 3
    %v4211 = vxor.u32 %v4209, 2147483648
    %v4212 = vmul.f32 %v4211, 1.442695
    %v4213 = vpow.pop %v4212
    %v4214 = vadd.f32 %v4213, 1.0
    %v4215 = vrcp.pop %v4214
    %v4216 = vmul.f32 1.0, %v4215
    %v4217 = vmul.f32 %v4205, %v3679
    %v4218 = vmul.f32 %v4196, %v4208
    %v4219 = vadd.f32 %v4217, %v4218
    %v4220 = vtanh.pop %v4219
    %v4221 = vmul.f32 %v4216, %v4220
    %v4222 = vxor.u32 %v4190, 2147483648
    %v4223 = vmul.f32 %v4222, 1.442695
    %v4224 = vpow.pop %v4223
    %v4225 = vadd.f32 %v4224, 1.0
    %v4226 = vrcp.pop %v4225
    %v4227 = vmul.f32 1.0, %v4226
    %v4229 = vrot.slane %v4190, 1
    %v4231 = vxor.u32 %v4229, 2147483648
    %v4232 = vmul.f32 %v4231, 1.442695
    %v4233 = vpow.pop %v4232
    %v4234 = vadd.f32 %v4233, 1.0
    %v4235 = vrcp.pop %v4234
    %v4236 = vmul.f32 1.0, %v4235
    %v4237 = vrot.slane %v4190, 2
    %v4239 = vtanh.pop %v4237
    %v4240 = vrot.slane %v4190, 3
    %v4242 = vxor.u32 %v4240, 2147483648
    %v4243 = vmul.f32 %v4242, 1.442695
    %v4244 = vpow.pop %v4243
    %v4245 = vadd.f32 %v4244, 1.0
    %v4246 = vrcp.pop %v4245
    %v4247 = vmul.f32 1.0, %v4246
    %v4248 = vmul.f32 %v4236, %v3710
    %v4249 = vmul.f32 %v4227, %v4239
    %v4250 = vadd.f32 %v4248, %v4249
    %v4251 = vtanh.pop %v4250
    %v4252 = vmul.f32 %v4247, %v4251
    %4253 = vst [vmem:[#allocation3 + $0x6] sm:$0x1] %v4221
    %4254 = vst [vmem:[#allocation4 + $0x1] sm:$0x1] %v4252
    %s4255 = scalar_lea.vmem [#allocation2], 7
    %v4256 = vld [vmem:[%s4255] ss:$8 sm:$0xf]
    %v4257 = vld [vmem:[#allocation11] sm:$0xff]
    %v4258 = vld [vmem:[#allocation11 + $0x8] sm:$0xff]
    %v4259 = vld [vmem:[#allocation11 + $0x10] sm:$0xff]
    %v4260 = vld [vmem:[#allocation11 + $0x18] sm:$0xff]
    %v4261 = vld [vmem:[#allocation11 + $0x20] sm:$0xff]
    %v4262 = vld [vmem:[#allocation11 + $0x28] sm:$0xff]
    %v4263 = vld [vmem:[#allocation11 + $0x30] sm:$0xff]
    %v4264 = vld [vmem:[#allocation11 + $0x38] sm:$0xff]
    %v4265 = vld [vmem:[#allocation11 + $0x40] sm:$0xff]
    %v4266 = vld [vmem:[#allocation11 + $0x48] sm:$0xff]
    %v4267 = vld [vmem:[#allocation11 + $0x50] sm:$0xff]
    %v4268 = vld [vmem:[#allocation11 + $0x58] sm:$0xff]
    %v4269 = vld [vmem:[#allocation11 + $0x60] sm:$0xff]
    %v4270 = vld [vmem:[#allocation11 + $0x68] sm:$0xff]
    %v4271 = vld [vmem:[#allocation11 + $0x70] sm:$0xff]
    %v4272 = vld [vmem:[#allocation11 + $0x78] sm:$0xff]
    %v4273 = vld [vmem:[#allocation11 + $0x80] sm:$0xff]
    %v4274 = vld [vmem:[#allocation11 + $0x88] sm:$0xff]
    %v4275 = vld [vmem:[#allocation11 + $0x90] sm:$0xff]
    %v4276 = vld [vmem:[#allocation11 + $0x98] sm:$0xff]
    %v4277 = vld [vmem:[#allocation11 + $0xa0] sm:$0xff]
    %v4278 = vld [vmem:[#allocation11 + $0xa8] sm:$0xff]
    %v4279 = vld [vmem:[#allocation11 + $0xb0] sm:$0xff]
    %v4280 = vld [vmem:[#allocation11 + $0xb8] sm:$0xff]
    %v4281 = vld [vmem:[#allocation11 + $0xc0] sm:$0xff]
    %v4282 = vld [vmem:[#allocation11 + $0xc8] sm:$0xff]
    %v4283 = vld [vmem:[#allocation11 + $0xd0] sm:$0xff]
    %v4284 = vld [vmem:[#allocation11 + $0xd8] sm:$0xff]
    %v4285 = vld [vmem:[#allocation11 + $0xe0] sm:$0xff]
    %v4286 = vld [vmem:[#allocation11 + $0xe8] sm:$0xff]
    %v4287 = vld [vmem:[#allocation11 + $0xf0] sm:$0xff]
    %v4288 = vld [vmem:[#allocation11 + $0xf8] sm:$0xff]
    %v4289 = vld [vmem:[#allocation11 + $0x100] sm:$0xff]
    %v4290 = vld [vmem:[#allocation11 + $0x108] sm:$0xff]
    %v4291 = vld [vmem:[#allocation11 + $0x110] sm:$0xff]
    %v4292 = vld [vmem:[#allocation11 + $0x118] sm:$0xff]
    %v4293 = vld [vmem:[#allocation11 + $0x120] sm:$0xff]
    %v4294 = vld [vmem:[#allocation11 + $0x128] sm:$0xff]
    %v4295 = vld [vmem:[#allocation11 + $0x130] sm:$0xff]
    %v4296 = vld [vmem:[#allocation11 + $0x138] sm:$0xff]
    %v4297 = vld [vmem:[#allocation11 + $0x140] sm:$0xff]
    %v4298 = vld [vmem:[#allocation11 + $0x148] sm:$0xff]
    %v4299 = vld [vmem:[#allocation11 + $0x150] sm:$0xff]
    %v4300 = vld [vmem:[#allocation11 + $0x158] sm:$0xff]
    %v4301 = vld [vmem:[#allocation11 + $0x160] sm:$0xff]
    %v4302 = vld [vmem:[#allocation11 + $0x168] sm:$0xff]
    %v4303 = vld [vmem:[#allocation11 + $0x170] sm:$0xff]
    %v4304 = vld [vmem:[#allocation11 + $0x178] sm:$0xff]
    %v4305 = vld [vmem:[#allocation11 + $0x180] sm:$0xff]
    %v4306 = vld [vmem:[#allocation11 + $0x188] sm:$0xff]
    %v4307 = vld [vmem:[#allocation11 + $0x190] sm:$0xff]
    %v4308 = vld [vmem:[#allocation11 + $0x198] sm:$0xff]
    %v4309 = vld [vmem:[#allocation11 + $0x1a0] sm:$0xff]
    %v4310 = vld [vmem:[#allocation11 + $0x1a8] sm:$0xff]
    %v4311 = vld [vmem:[#allocation11 + $0x1b0] sm:$0xff]
    %v4312 = vld [vmem:[#allocation11 + $0x1b8] sm:$0xff]
    %v4313 = vld [vmem:[#allocation11 + $0x1c0] sm:$0xff]
    %v4314 = vld [vmem:[#allocation11 + $0x1c8] sm:$0xff]
    %v4315 = vld [vmem:[#allocation11 + $0x1d0] sm:$0xff]
    %v4316 = vld [vmem:[#allocation11 + $0x1d8] sm:$0xff]
    %v4317 = vld [vmem:[#allocation11 + $0x1e0] sm:$0xff]
    %v4318 = vld [vmem:[#allocation11 + $0x1e8] sm:$0xff]
    %v4319 = vld [vmem:[#allocation11 + $0x1f0] sm:$0xff]
    %v4320 = vld [vmem:[#allocation11 + $0x1f8] sm:$0xff]
    %4321 = vmatprep.subr.mxu0 %v4258
    %4322 = vmatpush1.msra.mxu0 %v4257
    %4323 = vmatprep.subr.mxu0 %v4262
    %4324 = vmatpush1.msra.mxu0 %v4261
    %4325 = vmatprep.subr.mxu0 %v4266
    %4326 = vmatpush1.msra.mxu0 %v4265
    %4327 = vmatprep.subr.mxu0 %v4270
    %4328 = vmatpush1.msra.mxu0 %v4269
    %4329 = vmatprep.subr.mxu0 %v4274
    %4330 = vmatpush1.msra.mxu0 %v4273
    %4331 = vmatprep.subr.mxu0 %v4278
    %4332 = vmatpush1.msra.mxu0 %v4277
    %4333 = vmatprep.subr.mxu0 %v4282
    %4334 = vmatpush1.msra.mxu0 %v4281
    %4335 = vmatprep.subr.mxu0 %v4286
    %4336 = vmatpush1.msra.mxu0 %v4285
    %4337 = vmatprep.subr.mxu0 %v4290
    %4338 = vmatpush1.msra.mxu0 %v4289
    %4339 = vmatprep.subr.mxu0 %v4294
    %4340 = vmatpush1.msra.mxu0 %v4293
    %4341 = vmatprep.subr.mxu0 %v4298
    %4342 = vmatpush1.msra.mxu0 %v4297
    %4343 = vmatprep.subr.mxu0 %v4302
    %4344 = vmatpush1.msra.mxu0 %v4301
    %4345 = vmatprep.subr.mxu0 %v4306
    %4346 = vmatpush1.msra.mxu0 %v4305
    %4347 = vmatprep.subr.mxu0 %v4310
    %4348 = vmatpush1.msra.mxu0 %v4309
    %4349 = vmatprep.subr.mxu0 %v4314
    %4350 = vmatpush1.msra.mxu0 %v4313
    %4351 = vmatprep.subr.mxu0 %v4318
    %4352 = vmatpush1.msra.mxu0 %v4317
    %4353 = vmatprep.subr.mxu0 0.0
    %4354 = vmatpush1.msra.mxu0 0.0
    %4355 = vmatprep.subr.mxu0 0.0
    %4356 = vmatpush1.msra.mxu0 0.0
    %4357 = vmatprep.subr.mxu0 0.0
    %4358 = vmatpush1.msra.mxu0 0.0
    %4359 = vmatprep.subr.mxu0 0.0
    %4360 = vmatpush1.msra.mxu0 0.0
    %4361 = vmatprep.subr.mxu0 0.0
    %4362 = vmatpush1.msra.mxu0 0.0
    %4363 = vmatprep.subr.mxu0 0.0
    %4364 = vmatpush1.msra.mxu0 0.0
    %4365 = vmatprep.subr.mxu0 0.0
    %4366 = vmatpush1.msra.mxu0 0.0
    %4367 = vmatprep.subr.mxu0 0.0
    %4368 = vmatpush1.msra.mxu0 0.0
    %4369 = vmatprep.subr.mxu0 0.0
    %4370 = vmatpush1.msra.mxu0 0.0
    %4371 = vmatprep.subr.mxu0 0.0
    %4372 = vmatpush1.msra.mxu0 0.0
    %4373 = vmatprep.subr.mxu0 0.0
    %4374 = vmatpush1.msra.mxu0 0.0
    %4375 = vmatprep.subr.mxu0 0.0
    %4376 = vmatpush1.msra.mxu0 0.0
    %4377 = vmatprep.subr.mxu0 0.0
    %4378 = vmatpush1.msra.mxu0 0.0
    %4379 = vmatprep.subr.mxu0 0.0
    %4380 = vmatpush1.msra.mxu0 0.0
    %4381 = vmatprep.subr.mxu0 0.0
    %4382 = vmatpush1.msra.mxu0 0.0
    %4383 = vmatprep.subr.mxu0 0.0
    %4384 = vmatpush1.msra.mxu0 0.0
    %4385 = vmatprep.mubr.f32.mxu0 0.0
    %4386 = vmatmul.mubr.f32.gmra.mrb[0].mxu0 %v4221
    %v4387 = vpop.f32.mrb[0].mxu0
    %v4388 = vadd.f32 0.0, %v4387
    %v4389 = vpop.f32.mrb[0].mxu0
    %v4390 = vadd.f32 0.0, %v4389
    %4391 = vdwg.mxu0
    %4392 = vmatprep.subr.mxu0 %v4260
    %4393 = vmatpush1.msra.mxu0 %v4259
    %4394 = vmatprep.subr.mxu0 %v4264
    %4395 = vmatpush1.msra.mxu0 %v4263
    %4396 = vmatprep.subr.mxu0 %v4268
    %4397 = vmatpush1.msra.mxu0 %v4267
    %4398 = vmatprep.subr.mxu0 %v4272
    %4399 = vmatpush1.msra.mxu0 %v4271
    %4400 = vmatprep.subr.mxu0 %v4276
    %4401 = vmatpush1.msra.mxu0 %v4275
    %4402 = vmatprep.subr.mxu0 %v4280
    %4403 = vmatpush1.msra.mxu0 %v4279
    %4404 = vmatprep.subr.mxu0 %v4284
    %4405 = vmatpush1.msra.mxu0 %v4283
    %4406 = vmatprep.subr.mxu0 %v4288
    %4407 = vmatpush1.msra.mxu0 %v4287
    %4408 = vmatprep.subr.mxu0 %v4292
    %4409 = vmatpush1.msra.mxu0 %v4291
    %4410 = vmatprep.subr.mxu0 %v4296
    %4411 = vmatpush1.msra.mxu0 %v4295
    %4412 = vmatprep.subr.mxu0 %v4300
    %4413 = vmatpush1.msra.mxu0 %v4299
    %4414 = vmatprep.subr.mxu0 %v4304
    %4415 = vmatpush1.msra.mxu0 %v4303
    %4416 = vmatprep.subr.mxu0 %v4308
    %4417 = vmatpush1.msra.mxu0 %v4307
    %4418 = vmatprep.subr.mxu0 %v4312
    %4419 = vmatpush1.msra.mxu0 %v4311
    %4420 = vmatprep.subr.mxu0 %v4316
    %4421 = vmatpush1.msra.mxu0 %v4315
    %4422 = vmatprep.subr.mxu0 %v4320
    %4423 = vmatpush1.msra.mxu0 %v4319
    %4424 = vmatprep.subr.mxu0 0.0
    %4425 = vmatpush1.msra.mxu0 0.0
    %4426 = vmatprep.subr.mxu0 0.0
    %4427 = vmatpush1.msra.mxu0 0.0
    %4428 = vmatprep.subr.mxu0 0.0
    %4429 = vmatpush1.msra.mxu0 0.0
    %4430 = vmatprep.subr.mxu0 0.0
    %4431 = vmatpush1.msra.mxu0 0.0
    %4432 = vmatprep.subr.mxu0 0.0
    %4433 = vmatpush1.msra.mxu0 0.0
    %4434 = vmatprep.subr.mxu0 0.0
    %4435 = vmatpush1.msra.mxu0 0.0
    %4436 = vmatprep.subr.mxu0 0.0
    %4437 = vmatpush1.msra.mxu0 0.0
    %4438 = vmatprep.subr.mxu0 0.0
    %4439 = vmatpush1.msra.mxu0 0.0
    %4440 = vmatprep.subr.mxu0 0.0
    %4441 = vmatpush1.msra.mxu0 0.0
    %4442 = vmatprep.subr.mxu0 0.0
    %4443 = vmatpush1.msra.mxu0 0.0
    %4444 = vmatprep.subr.mxu0 0.0
    %4445 = vmatpush1.msra.mxu0 0.0
    %4446 = vmatprep.subr.mxu0 0.0
    %4447 = vmatpush1.msra.mxu0 0.0
    %4448 = vmatprep.subr.mxu0 0.0
    %4449 = vmatpush1.msra.mxu0 0.0
    %4450 = vmatprep.subr.mxu0 0.0
    %4451 = vmatpush1.msra.mxu0 0.0
    %4452 = vmatprep.subr.mxu0 0.0
    %4453 = vmatpush1.msra.mxu0 0.0
    %4454 = vmatprep.subr.mxu0 0.0
    %4455 = vmatpush1.msra.mxu0 0.0
    %4456 = vmatprep.mubr.f32.mxu0 0.0
    %4457 = vmatmul.mubr.f32.gmra.mrb[0].mxu0 %v4221
    %v4458 = vpop.f32.mrb[0].mxu0
    %v4459 = vadd.f32 0.0, %v4458
    %v4460 = vpop.f32.mrb[0].mxu0
    %v4461 = vadd.f32 0.0, %v4460
    %4462 = vdwg.mxu0
    %v4467 = vcombine.low %v4388, %v4390
    %v4468 = vcombine.low %v4459, %v4461
    %v4470 = vunpack.c.l.s4 1966171168
    %v4471 = vunpack.c.0.s8 %v4470
    %v4472 = vlaneseq
    %v4473 = vshrl.u32 %v4472, 7
    %v4474 = vsub.s32 %v4471, %v4473
    %v4475 = vrot.slane %v4467, %v4474
    %v4477 = vunpack.c.l.s4 1966171168
    %v4478 = vunpack.c.0.s8 %v4477
    %v4479 = vlaneseq
    %v4480 = vshrl.u32 %v4479, 7
    %v4481 = vsub.s32 %v4478, %v4480
    %v4482 = vrot.slane %v4468, %v4481
    %v4483 = vcombine.low %v4475, %v4482
    %v4485 = vunpack.c.l.s4 1966171168
    %v4486 = vunpack.c.0.s8 %v4485
    %v4487 = vlaneseq
    %v4488 = vshrl.u32 %v4487, 7
    %v4489 = vsub.s32 %v4486, %v4488
    %v4490 = vrot.slane %v4483, %v4489
    %v4492 = vadd.f32 %v4256, %v4490
    %s4493 = scalar_lea.vmem [#allocation2], 32
    %v4494 = vld [vmem:[%s4493] ss:$8 sm:$0xf]
    %v4495 = vld [vmem:[#allocation13] sm:$0xff]
    %v4496 = vld [vmem:[#allocation13 + $0x8] sm:$0xff]
    %v4497 = vld [vmem:[#allocation13 + $0x10] sm:$0xff]
    %v4498 = vld [vmem:[#allocation13 + $0x18] sm:$0xff]
    %v4499 = vld [vmem:[#allocation13 + $0x20] sm:$0xff]
    %v4500 = vld [vmem:[#allocation13 + $0x28] sm:$0xff]
    %v4501 = vld [vmem:[#allocation13 + $0x30] sm:$0xff]
    %v4502 = vld [vmem:[#allocation13 + $0x38] sm:$0xff]
    %v4503 = vld [vmem:[#allocation13 + $0x40] sm:$0xff]
    %v4504 = vld [vmem:[#allocation13 + $0x48] sm:$0xff]
    %v4505 = vld [vmem:[#allocation13 + $0x50] sm:$0xff]
    %v4506 = vld [vmem:[#allocation13 + $0x58] sm:$0xff]
    %v4507 = vld [vmem:[#allocation13 + $0x60] sm:$0xff]
    %v4508 = vld [vmem:[#allocation13 + $0x68] sm:$0xff]
    %v4509 = vld [vmem:[#allocation13 + $0x70] sm:$0xff]
    %v4510 = vld [vmem:[#allocation13 + $0x78] sm:$0xff]
    %v4511 = vld [vmem:[#allocation13 + $0x80] sm:$0xff]
    %v4512 = vld [vmem:[#allocation13 + $0x88] sm:$0xff]
    %v4513 = vld [vmem:[#allocation13 + $0x90] sm:$0xff]
    %v4514 = vld [vmem:[#allocation13 + $0x98] sm:$0xff]
    %v4515 = vld [vmem:[#allocation13 + $0xa0] sm:$0xff]
    %v4516 = vld [vmem:[#allocation13 + $0xa8] sm:$0xff]
    %v4517 = vld [vmem:[#allocation13 + $0xb0] sm:$0xff]
    %v4518 = vld [vmem:[#allocation13 + $0xb8] sm:$0xff]
    %v4519 = vld [vmem:[#allocation13 + $0xc0] sm:$0xff]
    %v4520 = vld [vmem:[#allocation13 + $0xc8] sm:$0xff]
    %v4521 = vld [vmem:[#allocation13 + $0xd0] sm:$0xff]
    %v4522 = vld [vmem:[#allocation13 + $0xd8] sm:$0xff]
    %v4523 = vld [vmem:[#allocation13 + $0xe0] sm:$0xff]
    %v4524 = vld [vmem:[#allocation13 + $0xe8] sm:$0xff]
    %v4525 = vld [vmem:[#allocation13 + $0xf0] sm:$0xff]
    %v4526 = vld [vmem:[#allocation13 + $0xf8] sm:$0xff]
    %v4527 = vld [vmem:[#allocation13 + $0x100] sm:$0xff]
    %v4528 = vld [vmem:[#allocation13 + $0x108] sm:$0xff]
    %v4529 = vld [vmem:[#allocation13 + $0x110] sm:$0xff]
    %v4530 = vld [vmem:[#allocation13 + $0x118] sm:$0xff]
    %v4531 = vld [vmem:[#allocation13 + $0x120] sm:$0xff]
    %v4532 = vld [vmem:[#allocation13 + $0x128] sm:$0xff]
    %v4533 = vld [vmem:[#allocation13 + $0x130] sm:$0xff]
    %v4534 = vld [vmem:[#allocation13 + $0x138] sm:$0xff]
    %v4535 = vld [vmem:[#allocation13 + $0x140] sm:$0xff]
    %v4536 = vld [vmem:[#allocation13 + $0x148] sm:$0xff]
    %v4537 = vld [vmem:[#allocation13 + $0x150] sm:$0xff]
    %v4538 = vld [vmem:[#allocation13 + $0x158] sm:$0xff]
    %v4539 = vld [vmem:[#allocation13 + $0x160] sm:$0xff]
    %v4540 = vld [vmem:[#allocation13 + $0x168] sm:$0xff]
    %v4541 = vld [vmem:[#allocation13 + $0x170] sm:$0xff]
    %v4542 = vld [vmem:[#allocation13 + $0x178] sm:$0xff]
    %v4543 = vld [vmem:[#allocation13 + $0x180] sm:$0xff]
    %v4544 = vld [vmem:[#allocation13 + $0x188] sm:$0xff]
    %v4545 = vld [vmem:[#allocation13 + $0x190] sm:$0xff]
    %v4546 = vld [vmem:[#allocation13 + $0x198] sm:$0xff]
    %v4547 = vld [vmem:[#allocation13 + $0x1a0] sm:$0xff]
    %v4548 = vld [vmem:[#allocation13 + $0x1a8] sm:$0xff]
    %v4549 = vld [vmem:[#allocation13 + $0x1b0] sm:$0xff]
    %v4550 = vld [vmem:[#allocation13 + $0x1b8] sm:$0xff]
    %v4551 = vld [vmem:[#allocation13 + $0x1c0] sm:$0xff]
    %v4552 = vld [vmem:[#allocation13 + $0x1c8] sm:$0xff]
    %v4553 = vld [vmem:[#allocation13 + $0x1d0] sm:$0xff]
    %v4554 = vld [vmem:[#allocation13 + $0x1d8] sm:$0xff]
    %v4555 = vld [vmem:[#allocation13 + $0x1e0] sm:$0xff]
    %v4556 = vld [vmem:[#allocation13 + $0x1e8] sm:$0xff]
    %v4557 = vld [vmem:[#allocation13 + $0x1f0] sm:$0xff]
    %v4558 = vld [vmem:[#allocation13 + $0x1f8] sm:$0xff]
    %4559 = vmatprep.subr.mxu0 %v4496
    %4560 = vmatpush1.msra.mxu0 %v4495
    %4561 = vmatprep.subr.mxu0 %v4500
    %4562 = vmatpush1.msra.mxu0 %v4499
    %4563 = vmatprep.subr.mxu0 %v4504
    %4564 = vmatpush1.msra.mxu0 %v4503
    %4565 = vmatprep.subr.mxu0 %v4508
    %4566 = vmatpush1.msra.mxu0 %v4507
    %4567 = vmatprep.subr.mxu0 %v4512
    %4568 = vmatpush1.msra.mxu0 %v4511
    %4569 = vmatprep.subr.mxu0 %v4516
    %4570 = vmatpush1.msra.mxu0 %v4515
    %4571 = vmatprep.subr.mxu0 %v4520
    %4572 = vmatpush1.msra.mxu0 %v4519
    %4573 = vmatprep.subr.mxu0 %v4524
    %4574 = vmatpush1.msra.mxu0 %v4523
    %4575 = vmatprep.subr.mxu0 %v4528
    %4576 = vmatpush1.msra.mxu0 %v4527
    %4577 = vmatprep.subr.mxu0 %v4532
    %4578 = vmatpush1.msra.mxu0 %v4531
    %4579 = vmatprep.subr.mxu0 %v4536
    %4580 = vmatpush1.msra.mxu0 %v4535
    %4581 = vmatprep.subr.mxu0 %v4540
    %4582 = vmatpush1.msra.mxu0 %v4539
    %4583 = vmatprep.subr.mxu0 %v4544
    %4584 = vmatpush1.msra.mxu0 %v4543
    %4585 = vmatprep.subr.mxu0 %v4548
    %4586 = vmatpush1.msra.mxu0 %v4547
    %4587 = vmatprep.subr.mxu0 %v4552
    %4588 = vmatpush1.msra.mxu0 %v4551
    %4589 = vmatprep.subr.mxu0 %v4556
    %4590 = vmatpush1.msra.mxu0 %v4555
    %4591 = vmatprep.subr.mxu0 0.0
    %4592 = vmatpush1.msra.mxu0 0.0
    %4593 = vmatprep.subr.mxu0 0.0
    %4594 = vmatpush1.msra.mxu0 0.0
    %4595 = vmatprep.subr.mxu0 0.0
    %4596 = vmatpush1.msra.mxu0 0.0
    %4597 = vmatprep.subr.mxu0 0.0
    %4598 = vmatpush1.msra.mxu0 0.0
    %4599 = vmatprep.subr.mxu0 0.0
    %4600 = vmatpush1.msra.mxu0 0.0
    %4601 = vmatprep.subr.mxu0 0.0
    %4602 = vmatpush1.msra.mxu0 0.0
    %4603 = vmatprep.subr.mxu0 0.0
    %4604 = vmatpush1.msra.mxu0 0.0
    %4605 = vmatprep.subr.mxu0 0.0
    %4606 = vmatpush1.msra.mxu0 0.0
    %4607 = vmatprep.subr.mxu0 0.0
    %4608 = vmatpush1.msra.mxu0 0.0
    %4609 = vmatprep.subr.mxu0 0.0
    %4610 = vmatpush1.msra.mxu0 0.0
    %4611 = vmatprep.subr.mxu0 0.0
    %4612 = vmatpush1.msra.mxu0 0.0
    %4613 = vmatprep.subr.mxu0 0.0
    %4614 = vmatpush1.msra.mxu0 0.0
    %4615 = vmatprep.subr.mxu0 0.0
    %4616 = vmatpush1.msra.mxu0 0.0
    %4617 = vmatprep.subr.mxu0 0.0
    %4618 = vmatpush1.msra.mxu0 0.0
    %4619 = vmatprep.subr.mxu0 0.0
    %4620 = vmatpush1.msra.mxu0 0.0
    %4621 = vmatprep.subr.mxu0 0.0
    %4622 = vmatpush1.msra.mxu0 0.0
    %4623 = vmatprep.mubr.f32.mxu0 0.0
    %4624 = vmatmul.mubr.f32.gmra.mrb[0].mxu0 %v4252
    %v4625 = vpop.f32.mrb[0].mxu0
    %v4626 = vadd.f32 0.0, %v4625
    %v4627 = vpop.f32.mrb[0].mxu0
    %v4628 = vadd.f32 0.0, %v4627
    %4629 = vdwg.mxu0
    %4630 = vmatprep.subr.mxu0 %v4498
    %4631 = vmatpush1.msra.mxu0 %v4497
    %4632 = vmatprep.subr.mxu0 %v4502
    %4633 = vmatpush1.msra.mxu0 %v4501
    %4634 = vmatprep.subr.mxu0 %v4506
    %4635 = vmatpush1.msra.mxu0 %v4505
    %4636 = vmatprep.subr.mxu0 %v4510
    %4637 = vmatpush1.msra.mxu0 %v4509
    %4638 = vmatprep.subr.mxu0 %v4514
    %4639 = vmatpush1.msra.mxu0 %v4513
    %4640 = vmatprep.subr.mxu0 %v4518
    %4641 = vmatpush1.msra.mxu0 %v4517
    %4642 = vmatprep.subr.mxu0 %v4522
    %4643 = vmatpush1.msra.mxu0 %v4521
    %4644 = vmatprep.subr.mxu0 %v4526
    %4645 = vmatpush1.msra.mxu0 %v4525
    %4646 = vmatprep.subr.mxu0 %v4530
    %4647 = vmatpush1.msra.mxu0 %v4529
    %4648 = vmatprep.subr.mxu0 %v4534
    %4649 = vmatpush1.msra.mxu0 %v4533
    %4650 = vmatprep.subr.mxu0 %v4538
    %4651 = vmatpush1.msra.mxu0 %v4537
    %4652 = vmatprep.subr.mxu0 %v4542
    %4653 = vmatpush1.msra.mxu0 %v4541
    %4654 = vmatprep.subr.mxu0 %v4546
    %4655 = vmatpush1.msra.mxu0 %v4545
    %4656 = vmatprep.subr.mxu0 %v4550
    %4657 = vmatpush1.msra.mxu0 %v4549
    %4658 = vmatprep.subr.mxu0 %v4554
    %4659 = vmatpush1.msra.mxu0 %v4553
    %4660 = vmatprep.subr.mxu0 %v4558
    %4661 = vmatpush1.msra.mxu0 %v4557
    %4662 = vmatprep.subr.mxu0 0.0
    %4663 = vmatpush1.msra.mxu0 0.0
    %4664 = vmatprep.subr.mxu0 0.0
    %4665 = vmatpush1.msra.mxu0 0.0
    %4666 = vmatprep.subr.mxu0 0.0
    %4667 = vmatpush1.msra.mxu0 0.0
    %4668 = vmatprep.subr.mxu0 0.0
    %4669 = vmatpush1.msra.mxu0 0.0
    %4670 = vmatprep.subr.mxu0 0.0
    %4671 = vmatpush1.msra.mxu0 0.0
    %4672 = vmatprep.subr.mxu0 0.0
    %4673 = vmatpush1.msra.mxu0 0.0
    %4674 = vmatprep.subr.mxu0 0.0
    %4675 = vmatpush1.msra.mxu0 0.0
    %4676 = vmatprep.subr.mxu0 0.0
    %4677 = vmatpush1.msra.mxu0 0.0
    %4678 = vmatprep.subr.mxu0 0.0
    %4679 = vmatpush1.msra.mxu0 0.0
    %4680 = vmatprep.subr.mxu0 0.0
    %4681 = vmatpush1.msra.mxu0 0.0
    %4682 = vmatprep.subr.mxu0 0.0
    %4683 = vmatpush1.msra.mxu0 0.0
    %4684 = vmatprep.subr.mxu0 0.0
    %4685 = vmatpush1.msra.mxu0 0.0
    %4686 = vmatprep.subr.mxu0 0.0
    %4687 = vmatpush1.msra.mxu0 0.0
    %4688 = vmatprep.subr.mxu0 0.0
    %4689 = vmatpush1.msra.mxu0 0.0
    %4690 = vmatprep.subr.mxu0 0.0
    %4691 = vmatpush1.msra.mxu0 0.0
    %4692 = vmatprep.subr.mxu0 0.0
    %4693 = vmatpush1.msra.mxu0 0.0
    %4694 = vmatprep.mubr.f32.mxu0 0.0
    %4695 = vmatmul.mubr.f32.gmra.mrb[0].mxu0 %v4252
    %v4696 = vpop.f32.mrb[0].mxu0
    %v4697 = vadd.f32 0.0, %v4696
    %v4698 = vpop.f32.mrb[0].mxu0
    %v4699 = vadd.f32 0.0, %v4698
    %4700 = vdwg.mxu0
    %v4705 = vcombine.low %v4626, %v4628
    %v4706 = vcombine.low %v4697, %v4699
    %v4708 = vunpack.c.l.s4 1966171168
    %v4709 = vunpack.c.0.s8 %v4708
    %v4710 = vlaneseq
    %v4711 = vshrl.u32 %v4710, 7
    %v4712 = vsub.s32 %v4709, %v4711
    %v4713 = vrot.slane %v4705, %v4712
    %v4715 = vunpack.c.l.s4 1966171168
    %v4716 = vunpack.c.0.s8 %v4715
    %v4717 = vlaneseq
    %v4718 = vshrl.u32 %v4717, 7
    %v4719 = vsub.s32 %v4716, %v4718
    %v4720 = vrot.slane %v4706, %v4719
    %v4721 = vcombine.low %v4713, %v4720
    %v4723 = vunpack.c.l.s4 1966171168
    %v4724 = vunpack.c.0.s8 %v4723
    %v4725 = vlaneseq
    %v4726 = vshrl.u32 %v4725, 7
    %v4727 = vsub.s32 %v4724, %v4726
    %v4728 = vrot.slane %v4721, %v4727
    %v4730 = vadd.f32 %v4494, %v4728
    %v4731 = vxor.u32 %v4492, 2147483648
    %v4732 = vmul.f32 %v4731, 1.442695
    %v4733 = vpow.pop %v4732
    %v4734 = vadd.f32 %v4733, 1.0
    %v4735 = vrcp.pop %v4734
    %v4736 = vmul.f32 1.0, %v4735
    %v4738 = vrot.slane %v4492, 1
    %v4740 = vxor.u32 %v4738, 2147483648
    %v4741 = vmul.f32 %v4740, 1.442695
    %v4742 = vpow.pop %v4741
    %v4743 = vadd.f32 %v4742, 1.0
    %v4744 = vrcp.pop %v4743
    %v4745 = vmul.f32 1.0, %v4744
    %v4746 = vrot.slane %v4492, 2
    %v4748 = vtanh.pop %v4746
    %v4749 = vrot.slane %v4492, 3
    %v4751 = vxor.u32 %v4749, 2147483648
    %v4752 = vmul.f32 %v4751, 1.442695
    %v4753 = vpow.pop %v4752
    %v4754 = vadd.f32 %v4753, 1.0
    %v4755 = vrcp.pop %v4754
    %v4756 = vmul.f32 1.0, %v4755
    %v4757 = vmul.f32 %v4745, %v4219
    %v4758 = vmul.f32 %v4736, %v4748
    %v4759 = vadd.f32 %v4757, %v4758
    %v4760 = vtanh.pop %v4759
    %v4761 = vmul.f32 %v4756, %v4760
    %v4762 = vxor.u32 %v4730, 2147483648
    %v4763 = vmul.f32 %v4762, 1.442695
    %v4764 = vpow.pop %v4763
    %v4765 = vadd.f32 %v4764, 1.0
    %v4766 = vrcp.pop %v4765
    %v4767 = vmul.f32 1.0, %v4766
    %v4769 = vrot.slane %v4730, 1
    %v4771 = vxor.u32 %v4769, 2147483648
    %v4772 = vmul.f32 %v4771, 1.442695
    %v4773 = vpow.pop %v4772
    %v4774 = vadd.f32 %v4773, 1.0
    %v4775 = vrcp.pop %v4774
    %v4776 = vmul.f32 1.0, %v4775
    %v4777 = vrot.slane %v4730, 2
    %v4779 = vtanh.pop %v4777
    %v4780 = vrot.slane %v4730, 3
    %v4782 = vxor.u32 %v4780, 2147483648
    %v4783 = vmul.f32 %v4782, 1.442695
    %v4784 = vpow.pop %v4783
    %v4785 = vadd.f32 %v4784, 1.0
    %v4786 = vrcp.pop %v4785
    %v4787 = vmul.f32 1.0, %v4786
    %v4788 = vmul.f32 %v4776, %v4250
    %v4789 = vmul.f32 %v4767, %v4779
    %v4790 = vadd.f32 %v4788, %v4789
    %v4791 = vtanh.pop %v4790
    %v4792 = vmul.f32 %v4787, %v4791
    %4793 = vst [vmem:[#allocation3 + $0x7] sm:$0x1] %v4761
    %4794 = vst [vmem:[#allocation4] sm:$0x1] %v4792
    %v4795 = vld [vmem:[#allocation3] sm:$0xff]
    %v4796 = vld [vmem:[#allocation14] sm:$0xff]
    %v4797 = vld [vmem:[#allocation14 + $0x8] sm:$0xff]
    %v4798 = vld [vmem:[#allocation14 + $0x10] sm:$0xff]
    %v4799 = vld [vmem:[#allocation14 + $0x18] sm:$0xff]
    %v4800 = vld [vmem:[#allocation14 + $0x20] sm:$0xff]
    %v4801 = vld [vmem:[#allocation14 + $0x28] sm:$0xff]
    %v4802 = vld [vmem:[#allocation14 + $0x30] sm:$0xff]
    %v4803 = vld [vmem:[#allocation14 + $0x38] sm:$0xff]
    %v4804 = vld [vmem:[#allocation14 + $0x40] sm:$0xff]
    %v4805 = vld [vmem:[#allocation14 + $0x48] sm:$0xff]
    %v4806 = vld [vmem:[#allocation14 + $0x50] sm:$0xff]
    %v4807 = vld [vmem:[#allocation14 + $0x58] sm:$0xff]
    %v4808 = vld [vmem:[#allocation14 + $0x60] sm:$0xff]
    %v4809 = vld [vmem:[#allocation14 + $0x68] sm:$0xff]
    %v4810 = vld [vmem:[#allocation14 + $0x70] sm:$0xff]
    %v4811 = vld [vmem:[#allocation14 + $0x78] sm:$0xff]
    %v4812 = vld [vmem:[#allocation4] sm:$0xff]
    %v4813 = vld [vmem:[#allocation16] sm:$0xff]
    %v4814 = vld [vmem:[#allocation16 + $0x8] sm:$0xff]
    %v4815 = vld [vmem:[#allocation16 + $0x10] sm:$0xff]
    %v4816 = vld [vmem:[#allocation16 + $0x18] sm:$0xff]
    %v4817 = vld [vmem:[#allocation16 + $0x20] sm:$0xff]
    %v4818 = vld [vmem:[#allocation16 + $0x28] sm:$0xff]
    %v4819 = vld [vmem:[#allocation16 + $0x30] sm:$0xff]
    %v4820 = vld [vmem:[#allocation16 + $0x38] sm:$0xff]
    %v4821 = vld [vmem:[#allocation16 + $0x40] sm:$0xff]
    %v4822 = vld [vmem:[#allocation16 + $0x48] sm:$0xff]
    %v4823 = vld [vmem:[#allocation16 + $0x50] sm:$0xff]
    %v4824 = vld [vmem:[#allocation16 + $0x58] sm:$0xff]
    %v4825 = vld [vmem:[#allocation16 + $0x60] sm:$0xff]
    %v4826 = vld [vmem:[#allocation16 + $0x68] sm:$0xff]
    %v4827 = vld [vmem:[#allocation16 + $0x70] sm:$0xff]
    %v4828 = vld [vmem:[#allocation16 + $0x78] sm:$0xff]
    %4829 = vmatprep.subr.mxu0 0.0
    %4830 = vmatpush1.msra.mxu0 %v4813
    %4831 = vmatprep.subr.mxu0 0.0
    %4832 = vmatpush1.msra.mxu0 %v4814
    %4833 = vmatprep.subr.mxu0 0.0
    %4834 = vmatpush1.msra.mxu0 %v4815
    %4835 = vmatprep.subr.mxu0 0.0
    %4836 = vmatpush1.msra.mxu0 %v4816
    %4837 = vmatprep.subr.mxu0 0.0
    %4838 = vmatpush1.msra.mxu0 %v4817
    %4839 = vmatprep.subr.mxu0 0.0
    %4840 = vmatpush1.msra.mxu0 %v4818
    %4841 = vmatprep.subr.mxu0 0.0
    %4842 = vmatpush1.msra.mxu0 %v4819
    %4843 = vmatprep.subr.mxu0 0.0
    %4844 = vmatpush1.msra.mxu0 %v4820
    %4845 = vmatprep.subr.mxu0 0.0
    %4846 = vmatpush1.msra.mxu0 %v4821
    %4847 = vmatprep.subr.mxu0 0.0
    %4848 = vmatpush1.msra.mxu0 %v4822
    %4849 = vmatprep.subr.mxu0 0.0
    %4850 = vmatpush1.msra.mxu0 %v4823
    %4851 = vmatprep.subr.mxu0 0.0
    %4852 = vmatpush1.msra.mxu0 %v4824
    %4853 = vmatprep.subr.mxu0 0.0
    %4854 = vmatpush1.msra.mxu0 %v4825
    %4855 = vmatprep.subr.mxu0 0.0
    %4856 = vmatpush1.msra.mxu0 %v4826
    %4857 = vmatprep.subr.mxu0 0.0
    %4858 = vmatpush1.msra.mxu0 %v4827
    %4859 = vmatprep.subr.mxu0 0.0
    %4860 = vmatpush1.msra.mxu0 %v4828
    %4861 = vmatprep.subr.mxu0 0.0
    %4862 = vmatpush1.msra.mxu0 0.0
    %4863 = vmatprep.subr.mxu0 0.0
    %4864 = vmatpush1.msra.mxu0 0.0
    %4865 = vmatprep.subr.mxu0 0.0
    %4866 = vmatpush1.msra.mxu0 0.0
    %4867 = vmatprep.subr.mxu0 0.0
    %4868 = vmatpush1.msra.mxu0 0.0
    %4869 = vmatprep.subr.mxu0 0.0
    %4870 = vmatpush1.msra.mxu0 0.0
    %4871 = vmatprep.subr.mxu0 0.0
    %4872 = vmatpush1.msra.mxu0 0.0
    %4873 = vmatprep.subr.mxu0 0.0
    %4874 = vmatpush1.msra.mxu0 0.0
    %4875 = vmatprep.subr.mxu0 0.0
    %4876 = vmatpush1.msra.mxu0 0.0
    %4877 = vmatprep.subr.mxu0 0.0
    %4878 = vmatpush1.msra.mxu0 0.0
    %4879 = vmatprep.subr.mxu0 0.0
    %4880 = vmatpush1.msra.mxu0 0.0
    %4881 = vmatprep.subr.mxu0 0.0
    %4882 = vmatpush1.msra.mxu0 0.0
    %4883 = vmatprep.subr.mxu0 0.0
    %4884 = vmatpush1.msra.mxu0 0.0
    %4885 = vmatprep.subr.mxu0 0.0
    %4886 = vmatpush1.msra.mxu0 0.0
    %4887 = vmatprep.subr.mxu0 0.0
    %4888 = vmatpush1.msra.mxu0 0.0
    %4889 = vmatprep.subr.mxu0 0.0
    %4890 = vmatpush1.msra.mxu0 0.0
    %4891 = vmatprep.subr.mxu0 0.0
    %4892 = vmatpush1.msra.mxu0 0.0
    %4893 = vmatprep.mubr.f32.mxu0 0.0
    %4894 = vmatmul.mubr.f32.gmra.mrb[0].mxu0 %v4812
    %v4895 = vpop.f32.mrb[0].mxu0
    %v4896 = vadd.f32 0.0, %v4895
    %v4897 = vpop.f32.mrb[0].mxu0
    %4898 = vdwg.mxu0
    %4899 = vmatprep.subr.mxu0 0.0
    %4900 = vmatpush1.msra.mxu0 %v4796
    %4901 = vmatprep.subr.mxu0 0.0
    %4902 = vmatpush1.msra.mxu0 %v4797
    %4903 = vmatprep.subr.mxu0 0.0
    %4904 = vmatpush1.msra.mxu0 %v4798
    %4905 = vmatprep.subr.mxu0 0.0
    %4906 = vmatpush1.msra.mxu0 %v4799
    %4907 = vmatprep.subr.mxu0 0.0
    %4908 = vmatpush1.msra.mxu0 %v4800
    %4909 = vmatprep.subr.mxu0 0.0
    %4910 = vmatpush1.msra.mxu0 %v4801
    %4911 = vmatprep.subr.mxu0 0.0
    %4912 = vmatpush1.msra.mxu0 %v4802
    %4913 = vmatprep.subr.mxu0 0.0
    %4914 = vmatpush1.msra.mxu0 %v4803
    %4915 = vmatprep.subr.mxu0 0.0
    %4916 = vmatpush1.msra.mxu0 %v4804
    %4917 = vmatprep.subr.mxu0 0.0
    %4918 = vmatpush1.msra.mxu0 %v4805
    %4919 = vmatprep.subr.mxu0 0.0
    %4920 = vmatpush1.msra.mxu0 %v4806
    %4921 = vmatprep.subr.mxu0 0.0
    %4922 = vmatpush1.msra.mxu0 %v4807
    %4923 = vmatprep.subr.mxu0 0.0
    %4924 = vmatpush1.msra.mxu0 %v4808
    %4925 = vmatprep.subr.mxu0 0.0
    %4926 = vmatpush1.msra.mxu0 %v4809
    %4927 = vmatprep.subr.mxu0 0.0
    %4928 = vmatpush1.msra.mxu0 %v4810
    %4929 = vmatprep.subr.mxu0 0.0
    %4930 = vmatpush1.msra.mxu0 %v4811
    %4931 = vmatprep.subr.mxu0 0.0
    %4932 = vmatpush1.msra.mxu0 0.0
    %4933 = vmatprep.subr.mxu0 0.0
    %4934 = vmatpush1.msra.mxu0 0.0
    %4935 = vmatprep.subr.mxu0 0.0
    %4936 = vmatpush1.msra.mxu0 0.0
    %4937 = vmatprep.subr.mxu0 0.0
    %4938 = vmatpush1.msra.mxu0 0.0
    %4939 = vmatprep.subr.mxu0 0.0
    %4940 = vmatpush1.msra.mxu0 0.0
    %4941 = vmatprep.subr.mxu0 0.0
    %4942 = vmatpush1.msra.mxu0 0.0
    %4943 = vmatprep.subr.mxu0 0.0
    %4944 = vmatpush1.msra.mxu0 0.0
    %4945 = vmatprep.subr.mxu0 0.0
    %4946 = vmatpush1.msra.mxu0 0.0
    %4947 = vmatprep.subr.mxu0 0.0
    %4948 = vmatpush1.msra.mxu0 0.0
    %4949 = vmatprep.subr.mxu0 0.0
    %4950 = vmatpush1.msra.mxu0 0.0
    %4951 = vmatprep.subr.mxu0 0.0
    %4952 = vmatpush1.msra.mxu0 0.0
    %4953 = vmatprep.subr.mxu0 0.0
    %4954 = vmatpush1.msra.mxu0 0.0
    %4955 = vmatprep.subr.mxu0 0.0
    %4956 = vmatpush1.msra.mxu0 0.0
    %4957 = vmatprep.subr.mxu0 0.0
    %4958 = vmatpush1.msra.mxu0 0.0
    %4959 = vmatprep.subr.mxu0 0.0
    %4960 = vmatpush1.msra.mxu0 0.0
    %4961 = vmatprep.subr.mxu0 0.0
    %4962 = vmatpush1.msra.mxu0 0.0
    %4963 = vmatprep.mubr.f32.mxu0 0.0
    %4964 = vmatmul.mubr.f32.gmra.mrb[0].mxu0 %v4795
    %v4965 = vpop.f32.mrb[0].mxu0
    %v4966 = vadd.f32 %v4896, %v4965
    %v4967 = vpop.f32.mrb[0].mxu0
    %4968 = vdwg.mxu0
    %v4969 = vld [vmem:[%s7] sm:$0x1]
    %v4971 = vlaneseq
    %v4972 = vshrl.u32 %v4971, 7
    %v4973 = vsub.s32 0, %v4972
    %v4974 = vrot.slane %v4969, %v4973
    %v4976 = vadd.f32 %v4966, %v4974
    %4977 = vst [vmem:[#allocation17] sm:$0xff] %v4976
    // Predicated region
    $region62: #{tpu_custom_call.1} parent=1 // pred_check
      _
    $region63: #{tpu_custom_call.1} parent=1 // pred_check_branch
      %4979 = sbr.rel (0) target = $region65
    $region64: #{tpu_custom_call.1} parent=1 // pred_region
      %s4981 = ssub.s32 128, 128
      %4982 = vsyncadd [#allocation7], %s4981
      %s4984 = sshll.u32 [#allocation17], 4
      %s4985 = int_to_ptr.vmem [resolvable:$true] %s4984
      %4987 = dma.vmem_to_hbm [thread:$0]  %s4985, 128, %s8, [#allocation7]
    $region65: #{tpu_custom_call.1} parent=1 // pred_fallthru
      _
    // Predicated region
    $region66: #{tpu_custom_call.1} parent=1 // pred_check
      _
    $region67: #{tpu_custom_call.1} parent=1 // pred_check_branch
      %4989 = sbr.rel (0) target = $region69
    $region68: #{tpu_custom_call.1} parent=1 // pred_region
      %4990 = dma.done [#allocation7], 128
    $region69: #{tpu_custom_call.1} parent=1 // pred_fallthru
      _
    %4991 = vsyncpa [#allocation6], 1
    %4992 = vsyncpa [#allocation9], 1
    %4993 = vsyncpa [#allocation12], 1
    %4994 = vsyncpa [#allocation15], 1
    %4995 = vsyncpa [#allocation7], 1

</llo_original>
